<compile_context>
chip_gen: v7x
topology: tpu7x:2x2x1
jax: 0.10.0
libtpu: 0.0.40
codegen_flags: <defaults>
</compile_context>

<pallas_src>
import jax
import jax.numpy as jnp
import numpy as np
from jax import lax
from jax.experimental import pallas as pl
from jax.experimental.pallas import tpu as pltpu

H_IN, W_IN, C_IN = 8, 8, 7          # 5 static + 1 target + 1 agent channels
NUM_ACTIONS = 6
MAX_MODULES = [4, 4, 4, 4]          # sum = 16 -> task-descriptor width
DESC_DIM = sum(MAX_MODULES)
HIDDEN = 64

H1 = H_IN - 1        # after first 2x2 conv   -> 7
HP = H1 // 2         # after 2x2 maxpool      -> 3
H2 = HP - 1          # after second 2x2 conv  -> 2
H3 = H2 - 1          # after third 2x2 conv   -> 1
assert H3 == 1, "script assumes the final feature map is 1x1 spatially"
FEAT_DIM = 64 * H3 * H3             # = 64

C1 = 24              # fused conv-1 out  (8 static | 8 target | 8 agent)
C2 = 48              # fused conv-2 out  (16 s | 16 t | 16 a)
C3 = 64              # fused conv-3 out  (32 target_post | 32 agent) == features
OUT_W = 128          # lane-dense output slab width


def _round_up(x, m):
    return ((x + m - 1) // m) * m


# ------------------------------ kernel helpers ------------------------------
def _conv2x2_relu(x, w_ref, b_ref):
    """2x2 valid conv + bias + ReLU.

    x     : value (Hi, Wi, BT, Cin), batch on sublanes, channels on lanes.
    w_ref : VMEM ref (2, 2, Cin, Cout).
    b_ref : VMEM ref (1, Cout).
    returns value (Hi-1, Wi-1, BT, Cout).
    """
    Hi, Wi, BT, Cin = x.shape
    Cout = w_ref.shape[-1]
    Ho, Wo = Hi - 1, Wi - 1
    acc = None
    for dy in (0, 1):
        for dx in (0, 1):
            tap = x[dy:dy + Ho, dx:dx + Wo]          # leading-dim slice
            tap = tap.reshape(Ho * Wo * BT, Cin)     # layout-trivial (BT % 8 == 0)
            p = jnp.dot(tap, w_ref[dy, dx], preferred_element_type=jnp.float32)
            acc = p if acc is None else acc + p
    y = jnp.maximum(acc + b_ref[...], 0.0)
    return y.reshape(Ho, Wo, BT, Cout)


def _maxpool2x2(y):
    """2x2 stride-2 max pool (floor mode, like nn.MaxPool2d((2,2))).

    Whole-plane pairwise maxima + leading-dim concat: no tiny masked stores.
    """
    Hi, Wi = y.shape[0], y.shape[1]
    Ho, Wo = Hi // 2, Wi // 2
    rows = [jnp.maximum(y[2 * i:2 * i + 1], y[2 * i + 1:2 * i + 2])
            for i in range(Ho)]
    r = jnp.concatenate(rows, axis=0)                          # (Ho, Wi, BT, C)
    cols = [jnp.maximum(r[:, 2 * j:2 * j + 1], r[:, 2 * j + 1:2 * j + 2])
            for j in range(Wo)]
    return jnp.concatenate(cols, axis=1)                       # (Ho, Wo, BT, C)


# --------------------------------- kernel -----------------------------------
def acmodel_kernel(img_ref, desc_ref,
                   w1, b1, w2, b2, w3, b3,          # fused block-diagonal convs
                   wh1f, wh1d, bh1, wh2, bh2,       # fused actor+critic heads
                   out_ref):
    x = img_ref[...]                       # (8, 8, BT, 7)
    y1 = _conv2x2_relu(x, w1, b1)          # (7, 7, BT, 24)   [s1 | t1 | a1]
    p1 = _maxpool2x2(y1)                   # (3, 3, BT, 24)
    y2 = _conv2x2_relu(p1, w2, b2)         # (2, 2, BT, 48)   [s2 | t2 | a2]
    y3 = _conv2x2_relu(y2, w3, b3)         # (1, 1, BT, 64)   [target_post | agent]

    BT = y3.shape[2]
    feat = y3.reshape(BT, C3)              # == PyTorch flatten of 1x1 NCHW maps
    dsc = desc_ref[...]                    # (BT, 16)

    pre = (jnp.dot(feat, wh1f[...], preferred_element_type=jnp.float32)
           + jnp.dot(dsc, wh1d[...], preferred_element_type=jnp.float32)
           + bh1[...])
    h = jnp.tanh(pre)                      # (BT, 128) = [actor_h | critic_h]
    y = jnp.dot(h, wh2[...], preferred_element_type=jnp.float32) + bh2[...]
    # y lanes: 0:6 actor logits, 6 critic value, 7:128 exactly 0 (zero weights).

    lane = lax.broadcasted_iota(jnp.int32, y.shape, 1)
    is_logit = lane < NUM_ACTIONS
    masked = jnp.where(is_logit, y, -jnp.inf)
    m = jnp.max(masked, axis=-1, keepdims=True)
    lse = jnp.log(jnp.sum(jnp.exp(masked - m), axis=-1, keepdims=True)) + m
    # lanes 0:6 -> log_softmax(logits); lane 6 -> value; lanes 7:128 -> 0.
    out_ref[...] = jnp.where(is_logit, y - lse, y)
    # TODO(synk): torch.distributions.Categorical is a host-side object; we
    # return its normalized logits (log-probs) instead of a distribution.


# --------------------------------- wrapper ----------------------------------
def _full_spec(shape):
    nd = len(shape)
    return pl.BlockSpec(shape, lambda *_, nd=nd: (0,) * nd)


def acmodel_forward(img, desc, kparams, *, block_n=64):
    """img: (N, 8, 8, 7) NHWC, desc: (N, 16). Returns (logp (N,6), value (N,))."""
    assert block_n % 8 == 0
    N = img.shape[0]
    f32 = jnp.float32
    BT = min(block_n, _round_up(N, 8))     # batch tile (multiple of 8)
    Npad = _round_up(N, BT)

    # Host-side layout plumbing: batch on the sublane axis, pad batch.
    img_t = jnp.transpose(img.astype(f32), (1, 2, 0, 3))      # (H, W, N, C)
    desc_p = desc.astype(f32)
    pad = Npad - N
    if pad:
        img_t = jnp.pad(img_t, ((0, 0), (0, 0), (0, pad), (0, 0)))
        desc_p = jnp.pad(desc_p, ((0, pad), (0, 0)))

    in_specs = [
        pl.BlockSpec((H_IN, W_IN, BT, C_IN), lambda n: (0, 0, n, 0)),
        pl.BlockSpec((BT, DESC_DIM), lambda n: (n, 0)),
    ] + [_full_spec(p.shape) for p in kparams]
    out_specs = pl.BlockSpec((BT, OUT_W), lambda n: (n, 0))

    out = pl.pallas_call(
        acmodel_kernel,
        out_shape=jax.ShapeDtypeStruct((Npad, OUT_W), f32),
        grid_spec=pltpu.PrefetchScalarGridSpec(
            num_scalar_prefetch=0,
            grid=(Npad // BT,),
            in_specs=in_specs,
            out_specs=out_specs),
        compiler_params=pltpu.CompilerParams(
            dimension_semantics=("parallel",)),
    )(img_t, desc_p, *kparams)

    logp = out[:N, :NUM_ACTIONS]
    value = out[:N, NUM_ACTIONS]
    return logp, value


# ------------------------- deterministic parameters -------------------------
def build_params(key):
    ks = jax.random.split(key, 16)
    kit = iter(ks)

    def conv_p(cin, cout):               # PyTorch default Conv2d init style
        kw, kb = jax.random.split(next(kit))
        bound = (cin * 4) ** -0.5
        w = jax.random.uniform(kw, (2, 2, cin, cout), jnp.float32, -bound, bound)
        b = jax.random.uniform(kb, (cout,), jnp.float32, -bound, bound)
        return w, b

    def lin_p(din, dout):                # init_params: N(0,1) rows, L2-normalized
        w = jax.random.normal(next(kit), (dout, din), jnp.float32)
        w = w / jnp.sqrt(jnp.sum(w * w, axis=1, keepdims=True))
        return w.T, jnp.zeros((dout,), jnp.float32)   # (in,out), zero bias

    P = {}
    P['ws1'], P['bs1'] = conv_p(5, 8)
    P['ws2'], P['bs2'] = conv_p(8, 16)
    P['wt1'], P['bt1'] = conv_p(1, 8)
    P['wt2'], P['bt2'] = conv_p(8, 16)
    P['wp'], P['bp'] = conv_p(32, 32)
    P['wa1'], P['ba1'] = conv_p(1, 8)
    P['wa2'], P['ba2'] = conv_p(8, 16)
    P['wa3'], P['ba3'] = conv_p(16, 32)
    P['actor_w1'], P['actor_b1'] = lin_p(FEAT_DIM + DESC_DIM, HIDDEN)
    P['actor_w2'], P['actor_b2'] = lin_p(HIDDEN, NUM_ACTIONS)
    P['critic_w1'], P['critic_b1'] = lin_p(FEAT_DIM + DESC_DIM, HIDDEN)
    P['critic_w2'], P['critic_b2'] = lin_p(HIDDEN, 1)
    return P


def kernel_param_list(P):
    """Fuse the three conv branches (block-diagonal) and the two heads."""
    f32 = jnp.float32
    w1 = jnp.zeros((2, 2, C_IN, C1), f32)
    w1 = w1.at[:, :, 0:5, 0:8].set(P['ws1'])       # static  ch 0:5  -> out 0:8
    w1 = w1.at[:, :, 5:6, 8:16].set(P['wt1'])      # target  ch 5    -> out 8:16
    w1 = w1.at[:, :, 6:7, 16:24].set(P['wa1'])     # agent   ch 6    -> out 16:24
    b1 = jnp.concatenate([P['bs1'], P['bt1'], P['ba1']]).reshape(1, C1)

    w2 = jnp.zeros((2, 2, C1, C2), f32)
    w2 = w2.at[:, :, 0:8, 0:16].set(P['ws2'])
    w2 = w2.at[:, :, 8:16, 16:32].set(P['wt2'])
    w2 = w2.at[:, :, 16:24, 32:48].set(P['wa2'])
    b2 = jnp.concatenate([P['bs2'], P['bt2'], P['ba2']]).reshape(1, C2)

    w3 = jnp.zeros((2, 2, C2, C3), f32)
    w3 = w3.at[:, :, 0:32, 0:32].set(P['wp'])      # target_post on cat(s2,t2)
    w3 = w3.at[:, :, 32:48, 32:64].set(P['wa3'])   # agent third conv
    b3 = jnp.concatenate([P['bp'], P['ba3']]).reshape(1, C3)

    # Fused heads: columns 0:64 actor, 64:128 critic.
    wh1f = jnp.concatenate([P['actor_w1'][:FEAT_DIM],
                            P['critic_w1'][:FEAT_DIM]], axis=1)      # (64, 128)
    wh1d = jnp.concatenate([P['actor_w1'][FEAT_DIM:],
                            P['critic_w1'][FEAT_DIM:]], axis=1)      # (16, 128)
    bh1 = jnp.concatenate([P['actor_b1'], P['critic_b1']]).reshape(1, 2 * HIDDEN)

    wh2 = jnp.zeros((2 * HIDDEN, OUT_W), f32)
    wh2 = wh2.at[0:HIDDEN, 0:NUM_ACTIONS].set(P['actor_w2'])
    wh2 = wh2.at[HIDDEN:2 * HIDDEN, NUM_ACTIONS:NUM_ACTIONS + 1].set(P['critic_w2'])
    bh2 = jnp.zeros((1, OUT_W), f32)
    bh2 = bh2.at[0, 0:NUM_ACTIONS].set(P['actor_b2'])
    bh2 = bh2.at[0, NUM_ACTIONS].set(P['critic_b2'][0])

    return [w1, b1, w2, b2, w3, b3, wh1f, wh1d, bh1, wh2, bh2]


# ------------------------------ pure-JAX reference ---------------------------
def forward_ref(img, desc, P):
    prec = lax.Precision.HIGHEST
    conv = lambda x, w, b: lax.conv_general_dilated(
        x, w, (1, 1), 'VALID',
        dimension_numbers=('NHWC', 'HWIO', 'NHWC'), precision=prec) + b
    relu = lambda x: jnp.maximum(x, 0.0)
    pool = lambda x: lax.reduce_window(x, -jnp.inf, lax.max,
                                       (1, 2, 2, 1), (1, 2, 2, 1), 'VALID')
    xs, xt, xa = img[..., 0:5], img[..., 5:6], img[..., 6:7]
    s = relu(conv(pool(relu(conv(xs, P['ws1'], P['bs1']))), P['ws2'], P['bs2']))
    t = relu(conv(pool(relu(conv(xt, P['wt1'], P['bt1']))), P['wt2'], P['bt2']))
    tt = relu(conv(jnp.concatenate([s, t], axis=-1), P['wp'], P['bp']))
    a = pool(relu(conv(xa, P['wa1'], P['ba1'])))
    a = relu(conv(a, P['wa2'], P['ba2']))
    a = relu(conv(a, P['wa3'], P['ba3']))
    feat = jnp.concatenate([tt, a], axis=-1).reshape(img.shape[0], -1)
    f = jnp.concatenate([feat, desc], axis=-1)
    ha = jnp.tanh(jnp.dot(f, P['actor_w1'], precision=prec) + P['actor_b1'])
    logits = jnp.dot(ha, P['actor_w2'], precision=prec) + P['actor_b2']
    logp = jax.nn.log_softmax(logits, axis=1)
    hc = jnp.tanh(jnp.dot(f, P['critic_w1'], precision=prec) + P['critic_b1'])
    value = (jnp.dot(hc, P['critic_w2'], precision=prec) + P['critic_b2'])[:, 0]
    return logp, value


# ----------------------------------- main ------------------------------------
if __name__ == "__main__":
    key = jax.random.PRNGKey(0)
    kp, kimg = jax.random.split(key)
    P = build_params(kp)

    N = 40                                    # exercises padding + multi-step grid
    img = jax.random.uniform(kimg, (N, H_IN, W_IN, C_IN), jnp.float32)

    # Task descriptor for task_id=0 (host-side glue, matches the PyTorch one-hot
    # build): static_object_dict[0]=1, target_object_dict[0]=2, agent_dyn_dict[0]=3
    static_obj, target_obj, agent_dyn = 1, 2, 3
    desc = jnp.zeros((N, DESC_DIM), jnp.float32)
    desc = desc.at[:, static_obj].set(1.0)
    desc = desc.at[:, sum(MAX_MODULES[:1]) + target_obj].set(1.0)
    desc = desc.at[:, sum(MAX_MODULES[:2]) + agent_dyn].set(1.0)

    kparams = kernel_param_list(P)
    logp, value = acmodel_forward(img, desc, kparams, block_n=16)
    jax.block_until_ready((logp, value))

    logp_ref, value_ref = forward_ref(img, desc, P)
    np.testing.assert_allclose(np.asarray(logp), np.asarray(logp_ref),
                               rtol=2e-3, atol=2e-3)
    np.testing.assert_allclose(np.asarray(value), np.asarray(value_ref),
                               rtol=2e-3, atol=2e-3)
    print("KERNEL_OK")
</pallas_src>

<mosaic_0001>
module attributes {stable_mosaic.version = 11 : i64} {
  func.func @acmodel_kernel(%arg0: i32, %arg1: memref<8x8x16x7xf32, #tpu.memory_space<vmem>>, %arg2: memref<16x16xf32, #tpu.memory_space<vmem>>, %arg3: memref<2x2x7x24xf32, #tpu.memory_space<vmem>>, %arg4: memref<1x24xf32, #tpu.memory_space<vmem>>, %arg5: memref<2x2x24x48xf32, #tpu.memory_space<vmem>>, %arg6: memref<1x48xf32, #tpu.memory_space<vmem>>, %arg7: memref<2x2x48x64xf32, #tpu.memory_space<vmem>>, %arg8: memref<1x64xf32, #tpu.memory_space<vmem>>, %arg9: memref<64x128xf32, #tpu.memory_space<vmem>>, %arg10: memref<16x128xf32, #tpu.memory_space<vmem>>, %arg11: memref<1x128xf32, #tpu.memory_space<vmem>>, %arg12: memref<128x128xf32, #tpu.memory_space<vmem>>, %arg13: memref<1x128xf32, #tpu.memory_space<vmem>>, %arg14: memref<16x128xf32, #tpu.memory_space<vmem>>) attributes {dimension_semantics = [#tpu.dimension_semantics<parallel>], iteration_bounds = array<i64: 3>, scalar_prefetch = 0 : i64, scratch_operands = 0 : i64, tpu.core_type = #tpu.core_type<tc>, window_params = [{transform_indices = @transform_0, window_bounds = array<i64: 8, 8, 16, 7>}, {transform_indices = @transform_1, window_bounds = array<i64: 16, 16>}, {pipeline_mode = #tpu.pipeline_mode<synchronous>, transform_indices = @transform_2, window_bounds = array<i64: 2, 2, 7, 24>}, {pipeline_mode = #tpu.pipeline_mode<synchronous>, transform_indices = @transform_3, window_bounds = array<i64: 1, 24>}, {pipeline_mode = #tpu.pipeline_mode<synchronous>, transform_indices = @transform_4, window_bounds = array<i64: 2, 2, 24, 48>}, {pipeline_mode = #tpu.pipeline_mode<synchronous>, transform_indices = @transform_5, window_bounds = array<i64: 1, 48>}, {pipeline_mode = #tpu.pipeline_mode<synchronous>, transform_indices = @transform_6, window_bounds = array<i64: 2, 2, 48, 64>}, {pipeline_mode = #tpu.pipeline_mode<synchronous>, transform_indices = @transform_7, window_bounds = array<i64: 1, 64>}, {pipeline_mode = #tpu.pipeline_mode<synchronous>, transform_indices = @transform_8, window_bounds = array<i64: 64, 128>}, {pipeline_mode = #tpu.pipeline_mode<synchronous>, transform_indices = @transform_9, window_bounds = array<i64: 16, 128>}, {pipeline_mode = #tpu.pipeline_mode<synchronous>, transform_indices = @transform_10, window_bounds = array<i64: 1, 128>}, {pipeline_mode = #tpu.pipeline_mode<synchronous>, transform_indices = @transform_11, window_bounds = array<i64: 128, 128>}, {pipeline_mode = #tpu.pipeline_mode<synchronous>, transform_indices = @transform_12, window_bounds = array<i64: 1, 128>}, {transform_indices = @transform_13, window_bounds = array<i64: 16, 128>}]} {
    %c0 = arith.constant 0 : index
    %c0_0 = arith.constant 0 : index
    %c0_1 = arith.constant 0 : index
    %c0_2 = arith.constant 0 : index
    %0 = vector.load %arg1[%c0, %c0_0, %c0_1, %c0_2] : memref<8x8x16x7xf32, #tpu.memory_space<vmem>>, vector<8x8x16x7xf32>
    %1 = vector.extract_strided_slice %0 {offsets = [0, 0, 0, 0], sizes = [7, 7, 16, 7], strides = [1, 1, 1, 1]} : vector<8x8x16x7xf32> to vector<7x7x16x7xf32>
    %2 = vector.shape_cast %1 : vector<7x7x16x7xf32> to vector<784x7xf32>
    %c0_3 = arith.constant 0 : index
    %c0_4 = arith.constant 0 : index
    %c0_5 = arith.constant 0 : index
    %c0_6 = arith.constant 0 : index
    %3 = vector.load %arg3[%c0_3, %c0_4, %c0_5, %c0_6] : memref<2x2x7x24xf32, #tpu.memory_space<vmem>>, vector<1x1x7x24xf32>
    %4 = vector.shape_cast %3 : vector<1x1x7x24xf32> to vector<7x24xf32>
    %cst = arith.constant dense<0.000000e+00> : vector<784x24xf32>
    %5 = tpu.matmul %2, %4, %cst {dimension_numbers = #tpu.dot_dimension_numbers<[1], [0], [0], [1], [0, 0, 1, 1], [], []>} : vector<784x7xf32>, vector<7x24xf32>, vector<784x24xf32> -> vector<784x24xf32>
    %6 = vector.extract_strided_slice %0 {offsets = [0, 1, 0, 0], sizes = [7, 7, 16, 7], strides = [1, 1, 1, 1]} : vector<8x8x16x7xf32> to vector<7x7x16x7xf32>
    %7 = vector.shape_cast %6 : vector<7x7x16x7xf32> to vector<784x7xf32>
    %c0_7 = arith.constant 0 : index
    %c1 = arith.constant 1 : index
    %c0_8 = arith.constant 0 : index
    %c0_9 = arith.constant 0 : index
    %8 = vector.load %arg3[%c0_7, %c1, %c0_8, %c0_9] : memref<2x2x7x24xf32, #tpu.memory_space<vmem>>, vector<1x1x7x24xf32>
    %9 = vector.shape_cast %8 : vector<1x1x7x24xf32> to vector<7x24xf32>
    %cst_10 = arith.constant dense<0.000000e+00> : vector<784x24xf32>
    %10 = tpu.matmul %7, %9, %cst_10 {dimension_numbers = #tpu.dot_dimension_numbers<[1], [0], [0], [1], [0, 0, 1, 1], [], []>} : vector<784x7xf32>, vector<7x24xf32>, vector<784x24xf32> -> vector<784x24xf32>
    %11 = arith.addf %5, %10 : vector<784x24xf32>
    %12 = vector.extract_strided_slice %0 {offsets = [1, 0, 0, 0], sizes = [7, 7, 16, 7], strides = [1, 1, 1, 1]} : vector<8x8x16x7xf32> to vector<7x7x16x7xf32>
    %13 = vector.shape_cast %12 : vector<7x7x16x7xf32> to vector<784x7xf32>
    %c1_11 = arith.constant 1 : index
    %c0_12 = arith.constant 0 : index
    %c0_13 = arith.constant 0 : index
    %c0_14 = arith.constant 0 : index
    %14 = vector.load %arg3[%c1_11, %c0_12, %c0_13, %c0_14] : memref<2x2x7x24xf32, #tpu.memory_space<vmem>>, vector<1x1x7x24xf32>
    %15 = vector.shape_cast %14 : vector<1x1x7x24xf32> to vector<7x24xf32>
    %cst_15 = arith.constant dense<0.000000e+00> : vector<784x24xf32>
    %16 = tpu.matmul %13, %15, %cst_15 {dimension_numbers = #tpu.dot_dimension_numbers<[1], [0], [0], [1], [0, 0, 1, 1], [], []>} : vector<784x7xf32>, vector<7x24xf32>, vector<784x24xf32> -> vector<784x24xf32>
    %17 = arith.addf %11, %16 : vector<784x24xf32>
    %18 = vector.extract_strided_slice %0 {offsets = [1, 1, 0, 0], sizes = [7, 7, 16, 7], strides = [1, 1, 1, 1]} : vector<8x8x16x7xf32> to vector<7x7x16x7xf32>
    %19 = vector.shape_cast %18 : vector<7x7x16x7xf32> to vector<784x7xf32>
    %c1_16 = arith.constant 1 : index
    %c1_17 = arith.constant 1 : index
    %c0_18 = arith.constant 0 : index
    %c0_19 = arith.constant 0 : index
    %20 = vector.load %arg3[%c1_16, %c1_17, %c0_18, %c0_19] : memref<2x2x7x24xf32, #tpu.memory_space<vmem>>, vector<1x1x7x24xf32>
    %21 = vector.shape_cast %20 : vector<1x1x7x24xf32> to vector<7x24xf32>
    %cst_20 = arith.constant dense<0.000000e+00> : vector<784x24xf32>
    %22 = tpu.matmul %19, %21, %cst_20 {dimension_numbers = #tpu.dot_dimension_numbers<[1], [0], [0], [1], [0, 0, 1, 1], [], []>} : vector<784x7xf32>, vector<7x24xf32>, vector<784x24xf32> -> vector<784x24xf32>
    %23 = arith.addf %17, %22 : vector<784x24xf32>
    %c0_21 = arith.constant 0 : index
    %c0_22 = arith.constant 0 : index
    %24 = vector.load %arg4[%c0_21, %c0_22] : memref<1x24xf32, #tpu.memory_space<vmem>>, vector<1x24xf32>
    %25 = vector.broadcast %24 : vector<1x24xf32> to vector<784x24xf32>
    %26 = arith.addf %23, %25 : vector<784x24xf32>
    %cst_23 = arith.constant 0.000000e+00 : f32
    %27 = vector.broadcast %cst_23 : f32 to vector<784x24xf32>
    %28 = arith.maximumf %26, %27 : vector<784x24xf32>
    %29 = vector.shape_cast %28 : vector<784x24xf32> to vector<7x7x16x24xf32>
    %30 = vector.extract_strided_slice %29 {offsets = [0, 0, 0, 0], sizes = [1, 7, 16, 24], strides = [1, 1, 1, 1]} : vector<7x7x16x24xf32> to vector<1x7x16x24xf32>
    %31 = vector.extract_strided_slice %29 {offsets = [1, 0, 0, 0], sizes = [1, 7, 16, 24], strides = [1, 1, 1, 1]} : vector<7x7x16x24xf32> to vector<1x7x16x24xf32>
    %32 = arith.maximumf %30, %31 : vector<1x7x16x24xf32>
    %33 = vector.extract_strided_slice %29 {offsets = [2, 0, 0, 0], sizes = [1, 7, 16, 24], strides = [1, 1, 1, 1]} : vector<7x7x16x24xf32> to vector<1x7x16x24xf32>
    %34 = vector.extract_strided_slice %29 {offsets = [3, 0, 0, 0], sizes = [1, 7, 16, 24], strides = [1, 1, 1, 1]} : vector<7x7x16x24xf32> to vector<1x7x16x24xf32>
    %35 = arith.maximumf %33, %34 : vector<1x7x16x24xf32>
    %36 = vector.extract_strided_slice %29 {offsets = [4, 0, 0, 0], sizes = [1, 7, 16, 24], strides = [1, 1, 1, 1]} : vector<7x7x16x24xf32> to vector<1x7x16x24xf32>
    %37 = vector.extract_strided_slice %29 {offsets = [5, 0, 0, 0], sizes = [1, 7, 16, 24], strides = [1, 1, 1, 1]} : vector<7x7x16x24xf32> to vector<1x7x16x24xf32>
    %38 = arith.maximumf %36, %37 : vector<1x7x16x24xf32>
    %39 = tpu.concatenate %32, %35, %38 in 0 : vector<1x7x16x24xf32>, vector<1x7x16x24xf32>, vector<1x7x16x24xf32> -> vector<3x7x16x24xf32>
    %40 = vector.extract_strided_slice %39 {offsets = [0, 0, 0, 0], sizes = [3, 1, 16, 24], strides = [1, 1, 1, 1]} : vector<3x7x16x24xf32> to vector<3x1x16x24xf32>
    %41 = vector.extract_strided_slice %39 {offsets = [0, 1, 0, 0], sizes = [3, 1, 16, 24], strides = [1, 1, 1, 1]} : vector<3x7x16x24xf32> to vector<3x1x16x24xf32>
    %42 = arith.maximumf %40, %41 : vector<3x1x16x24xf32>
    %43 = vector.extract_strided_slice %39 {offsets = [0, 2, 0, 0], sizes = [3, 1, 16, 24], strides = [1, 1, 1, 1]} : vector<3x7x16x24xf32> to vector<3x1x16x24xf32>
    %44 = vector.extract_strided_slice %39 {offsets = [0, 3, 0, 0], sizes = [3, 1, 16, 24], strides = [1, 1, 1, 1]} : vector<3x7x16x24xf32> to vector<3x1x16x24xf32>
    %45 = arith.maximumf %43, %44 : vector<3x1x16x24xf32>
    %46 = vector.extract_strided_slice %39 {offsets = [0, 4, 0, 0], sizes = [3, 1, 16, 24], strides = [1, 1, 1, 1]} : vector<3x7x16x24xf32> to vector<3x1x16x24xf32>
    %47 = vector.extract_strided_slice %39 {offsets = [0, 5, 0, 0], sizes = [3, 1, 16, 24], strides = [1, 1, 1, 1]} : vector<3x7x16x24xf32> to vector<3x1x16x24xf32>
    %48 = arith.maximumf %46, %47 : vector<3x1x16x24xf32>
    %49 = tpu.concatenate %42, %45, %48 in 1 : vector<3x1x16x24xf32>, vector<3x1x16x24xf32>, vector<3x1x16x24xf32> -> vector<3x3x16x24xf32>
    %50 = vector.extract_strided_slice %49 {offsets = [0, 0, 0, 0], sizes = [2, 2, 16, 24], strides = [1, 1, 1, 1]} : vector<3x3x16x24xf32> to vector<2x2x16x24xf32>
    %51 = vector.shape_cast %50 : vector<2x2x16x24xf32> to vector<64x24xf32>
    %c0_24 = arith.constant 0 : index
    %c0_25 = arith.constant 0 : index
    %c0_26 = arith.constant 0 : index
    %c0_27 = arith.constant 0 : index
    %52 = vector.load %arg5[%c0_24, %c0_25, %c0_26, %c0_27] : memref<2x2x24x48xf32, #tpu.memory_space<vmem>>, vector<1x1x24x48xf32>
    %53 = vector.shape_cast %52 : vector<1x1x24x48xf32> to vector<24x48xf32>
    %cst_28 = arith.constant dense<0.000000e+00> : vector<64x48xf32>
    %54 = tpu.matmul %51, %53, %cst_28 {dimension_numbers = #tpu.dot_dimension_numbers<[1], [0], [0], [1], [0, 0, 1, 1], [], []>} : vector<64x24xf32>, vector<24x48xf32>, vector<64x48xf32> -> vector<64x48xf32>
    %55 = vector.extract_strided_slice %49 {offsets = [0, 1, 0, 0], sizes = [2, 2, 16, 24], strides = [1, 1, 1, 1]} : vector<3x3x16x24xf32> to vector<2x2x16x24xf32>
    %56 = vector.shape_cast %55 : vector<2x2x16x24xf32> to vector<64x24xf32>
    %c0_29 = arith.constant 0 : index
    %c1_30 = arith.constant 1 : index
    %c0_31 = arith.constant 0 : index
    %c0_32 = arith.constant 0 : index
    %57 = vector.load %arg5[%c0_29, %c1_30, %c0_31, %c0_32] : memref<2x2x24x48xf32, #tpu.memory_space<vmem>>, vector<1x1x24x48xf32>
    %58 = vector.shape_cast %57 : vector<1x1x24x48xf32> to vector<24x48xf32>
    %cst_33 = arith.constant dense<0.000000e+00> : vector<64x48xf32>
    %59 = tpu.matmul %56, %58, %cst_33 {dimension_numbers = #tpu.dot_dimension_numbers<[1], [0], [0], [1], [0, 0, 1, 1], [], []>} : vector<64x24xf32>, vector<24x48xf32>, vector<64x48xf32> -> vector<64x48xf32>
    %60 = arith.addf %54, %59 : vector<64x48xf32>
    %61 = vector.extract_strided_slice %49 {offsets = [1, 0, 0, 0], sizes = [2, 2, 16, 24], strides = [1, 1, 1, 1]} : vector<3x3x16x24xf32> to vector<2x2x16x24xf32>
    %62 = vector.shape_cast %61 : vector<2x2x16x24xf32> to vector<64x24xf32>
    %c1_34 = arith.constant 1 : index
    %c0_35 = arith.constant 0 : index
    %c0_36 = arith.constant 0 : index
    %c0_37 = arith.constant 0 : index
    %63 = vector.load %arg5[%c1_34, %c0_35, %c0_36, %c0_37] : memref<2x2x24x48xf32, #tpu.memory_space<vmem>>, vector<1x1x24x48xf32>
    %64 = vector.shape_cast %63 : vector<1x1x24x48xf32> to vector<24x48xf32>
    %cst_38 = arith.constant dense<0.000000e+00> : vector<64x48xf32>
    %65 = tpu.matmul %62, %64, %cst_38 {dimension_numbers = #tpu.dot_dimension_numbers<[1], [0], [0], [1], [0, 0, 1, 1], [], []>} : vector<64x24xf32>, vector<24x48xf32>, vector<64x48xf32> -> vector<64x48xf32>
    %66 = arith.addf %60, %65 : vector<64x48xf32>
    %67 = vector.extract_strided_slice %49 {offsets = [1, 1, 0, 0], sizes = [2, 2, 16, 24], strides = [1, 1, 1, 1]} : vector<3x3x16x24xf32> to vector<2x2x16x24xf32>
    %68 = vector.shape_cast %67 : vector<2x2x16x24xf32> to vector<64x24xf32>
    %c1_39 = arith.constant 1 : index
    %c1_40 = arith.constant 1 : index
    %c0_41 = arith.constant 0 : index
    %c0_42 = arith.constant 0 : index
    %69 = vector.load %arg5[%c1_39, %c1_40, %c0_41, %c0_42] : memref<2x2x24x48xf32, #tpu.memory_space<vmem>>, vector<1x1x24x48xf32>
    %70 = vector.shape_cast %69 : vector<1x1x24x48xf32> to vector<24x48xf32>
    %cst_43 = arith.constant dense<0.000000e+00> : vector<64x48xf32>
    %71 = tpu.matmul %68, %70, %cst_43 {dimension_numbers = #tpu.dot_dimension_numbers<[1], [0], [0], [1], [0, 0, 1, 1], [], []>} : vector<64x24xf32>, vector<24x48xf32>, vector<64x48xf32> -> vector<64x48xf32>
    %72 = arith.addf %66, %71 : vector<64x48xf32>
    %c0_44 = arith.constant 0 : index
    %c0_45 = arith.constant 0 : index
    %73 = vector.load %arg6[%c0_44, %c0_45] : memref<1x48xf32, #tpu.memory_space<vmem>>, vector<1x48xf32>
    %74 = vector.broadcast %73 : vector<1x48xf32> to vector<64x48xf32>
    %75 = arith.addf %72, %74 : vector<64x48xf32>
    %cst_46 = arith.constant 0.000000e+00 : f32
    %76 = vector.broadcast %cst_46 : f32 to vector<64x48xf32>
    %77 = arith.maximumf %75, %76 : vector<64x48xf32>
    %78 = vector.shape_cast %77 : vector<64x48xf32> to vector<2x2x16x48xf32>
    %79 = vector.extract_strided_slice %78 {offsets = [0, 0, 0, 0], sizes = [1, 1, 16, 48], strides = [1, 1, 1, 1]} : vector<2x2x16x48xf32> to vector<1x1x16x48xf32>
    %80 = vector.shape_cast %79 : vector<1x1x16x48xf32> to vector<16x48xf32>
    %c0_47 = arith.constant 0 : index
    %c0_48 = arith.constant 0 : index
    %c0_49 = arith.constant 0 : index
    %c0_50 = arith.constant 0 : index
    %81 = vector.load %arg7[%c0_47, %c0_48, %c0_49, %c0_50] : memref<2x2x48x64xf32, #tpu.memory_space<vmem>>, vector<1x1x48x64xf32>
    %82 = vector.shape_cast %81 : vector<1x1x48x64xf32> to vector<48x64xf32>
    %cst_51 = arith.constant dense<0.000000e+00> : vector<16x64xf32>
    %83 = tpu.matmul %80, %82, %cst_51 {dimension_numbers = #tpu.dot_dimension_numbers<[1], [0], [0], [1], [0, 0, 1, 1], [], []>} : vector<16x48xf32>, vector<48x64xf32>, vector<16x64xf32> -> vector<16x64xf32>
    %84 = vector.extract_strided_slice %78 {offsets = [0, 1, 0, 0], sizes = [1, 1, 16, 48], strides = [1, 1, 1, 1]} : vector<2x2x16x48xf32> to vector<1x1x16x48xf32>
    %85 = vector.shape_cast %84 : vector<1x1x16x48xf32> to vector<16x48xf32>
    %c0_52 = arith.constant 0 : index
    %c1_53 = arith.constant 1 : index
    %c0_54 = arith.constant 0 : index
    %c0_55 = arith.constant 0 : index
    %86 = vector.load %arg7[%c0_52, %c1_53, %c0_54, %c0_55] : memref<2x2x48x64xf32, #tpu.memory_space<vmem>>, vector<1x1x48x64xf32>
    %87 = vector.shape_cast %86 : vector<1x1x48x64xf32> to vector<48x64xf32>
    %cst_56 = arith.constant dense<0.000000e+00> : vector<16x64xf32>
    %88 = tpu.matmul %85, %87, %cst_56 {dimension_numbers = #tpu.dot_dimension_numbers<[1], [0], [0], [1], [0, 0, 1, 1], [], []>} : vector<16x48xf32>, vector<48x64xf32>, vector<16x64xf32> -> vector<16x64xf32>
    %89 = arith.addf %83, %88 : vector<16x64xf32>
    %90 = vector.extract_strided_slice %78 {offsets = [1, 0, 0, 0], sizes = [1, 1, 16, 48], strides = [1, 1, 1, 1]} : vector<2x2x16x48xf32> to vector<1x1x16x48xf32>
    %91 = vector.shape_cast %90 : vector<1x1x16x48xf32> to vector<16x48xf32>
    %c1_57 = arith.constant 1 : index
    %c0_58 = arith.constant 0 : index
    %c0_59 = arith.constant 0 : index
    %c0_60 = arith.constant 0 : index
    %92 = vector.load %arg7[%c1_57, %c0_58, %c0_59, %c0_60] : memref<2x2x48x64xf32, #tpu.memory_space<vmem>>, vector<1x1x48x64xf32>
    %93 = vector.shape_cast %92 : vector<1x1x48x64xf32> to vector<48x64xf32>
    %cst_61 = arith.constant dense<0.000000e+00> : vector<16x64xf32>
    %94 = tpu.matmul %91, %93, %cst_61 {dimension_numbers = #tpu.dot_dimension_numbers<[1], [0], [0], [1], [0, 0, 1, 1], [], []>} : vector<16x48xf32>, vector<48x64xf32>, vector<16x64xf32> -> vector<16x64xf32>
    %95 = arith.addf %89, %94 : vector<16x64xf32>
    %96 = vector.extract_strided_slice %78 {offsets = [1, 1, 0, 0], sizes = [1, 1, 16, 48], strides = [1, 1, 1, 1]} : vector<2x2x16x48xf32> to vector<1x1x16x48xf32>
    %97 = vector.shape_cast %96 : vector<1x1x16x48xf32> to vector<16x48xf32>
    %c1_62 = arith.constant 1 : index
    %c1_63 = arith.constant 1 : index
    %c0_64 = arith.constant 0 : index
    %c0_65 = arith.constant 0 : index
    %98 = vector.load %arg7[%c1_62, %c1_63, %c0_64, %c0_65] : memref<2x2x48x64xf32, #tpu.memory_space<vmem>>, vector<1x1x48x64xf32>
    %99 = vector.shape_cast %98 : vector<1x1x48x64xf32> to vector<48x64xf32>
    %cst_66 = arith.constant dense<0.000000e+00> : vector<16x64xf32>
    %100 = tpu.matmul %97, %99, %cst_66 {dimension_numbers = #tpu.dot_dimension_numbers<[1], [0], [0], [1], [0, 0, 1, 1], [], []>} : vector<16x48xf32>, vector<48x64xf32>, vector<16x64xf32> -> vector<16x64xf32>
    %101 = arith.addf %95, %100 : vector<16x64xf32>
    %c0_67 = arith.constant 0 : index
    %c0_68 = arith.constant 0 : index
    %102 = vector.load %arg8[%c0_67, %c0_68] : memref<1x64xf32, #tpu.memory_space<vmem>>, vector<1x64xf32>
    %103 = vector.broadcast %102 : vector<1x64xf32> to vector<16x64xf32>
    %104 = arith.addf %101, %103 : vector<16x64xf32>
    %cst_69 = arith.constant 0.000000e+00 : f32
    %105 = vector.broadcast %cst_69 : f32 to vector<16x64xf32>
    %106 = arith.maximumf %104, %105 : vector<16x64xf32>
    %107 = vector.shape_cast %106 : vector<16x64xf32> to vector<1x1x16x64xf32>
    %108 = vector.shape_cast %107 : vector<1x1x16x64xf32> to vector<16x64xf32>
    %c0_70 = arith.constant 0 : index
    %c0_71 = arith.constant 0 : index
    %109 = vector.load %arg2[%c0_70, %c0_71] : memref<16x16xf32, #tpu.memory_space<vmem>>, vector<16x16xf32>
    %c0_72 = arith.constant 0 : index
    %c0_73 = arith.constant 0 : index
    %110 = vector.load %arg9[%c0_72, %c0_73] : memref<64x128xf32, #tpu.memory_space<vmem>>, vector<64x128xf32>
    %cst_74 = arith.constant dense<0.000000e+00> : vector<16x128xf32>
    %111 = tpu.matmul %108, %110, %cst_74 {dimension_numbers = #tpu.dot_dimension_numbers<[1], [0], [0], [1], [0, 0, 1, 1], [], []>} : vector<16x64xf32>, vector<64x128xf32>, vector<16x128xf32> -> vector<16x128xf32>
    %c0_75 = arith.constant 0 : index
    %c0_76 = arith.constant 0 : index
    %112 = vector.load %arg10[%c0_75, %c0_76] : memref<16x128xf32, #tpu.memory_space<vmem>>, vector<16x128xf32>
    %cst_77 = arith.constant dense<0.000000e+00> : vector<16x128xf32>
    %113 = tpu.matmul %109, %112, %cst_77 {dimension_numbers = #tpu.dot_dimension_numbers<[1], [0], [0], [1], [0, 0, 1, 1], [], []>} : vector<16x16xf32>, vector<16x128xf32>, vector<16x128xf32> -> vector<16x128xf32>
    %114 = arith.addf %111, %113 : vector<16x128xf32>
    %c0_78 = arith.constant 0 : index
    %c0_79 = arith.constant 0 : index
    %115 = vector.load %arg11[%c0_78, %c0_79] : memref<1x128xf32, #tpu.memory_space<vmem>>, vector<1x128xf32>
    %116 = vector.broadcast %115 : vector<1x128xf32> to vector<16x128xf32>
    %117 = arith.addf %114, %116 : vector<16x128xf32>
    %118 = math.tanh %117 : vector<16x128xf32>
    %c0_80 = arith.constant 0 : index
    %c0_81 = arith.constant 0 : index
    %119 = vector.load %arg12[%c0_80, %c0_81] : memref<128x128xf32, #tpu.memory_space<vmem>>, vector<128x128xf32>
    %cst_82 = arith.constant dense<0.000000e+00> : vector<16x128xf32>
    %120 = tpu.matmul %118, %119, %cst_82 {dimension_numbers = #tpu.dot_dimension_numbers<[1], [0], [0], [1], [0, 0, 1, 1], [], []>} : vector<16x128xf32>, vector<128x128xf32>, vector<16x128xf32> -> vector<16x128xf32>
    %c0_83 = arith.constant 0 : index
    %c0_84 = arith.constant 0 : index
    %121 = vector.load %arg13[%c0_83, %c0_84] : memref<1x128xf32, #tpu.memory_space<vmem>>, vector<1x128xf32>
    %122 = vector.broadcast %121 : vector<1x128xf32> to vector<16x128xf32>
    %123 = arith.addf %120, %122 : vector<16x128xf32>
    %124 = tpu.iota {dimensions = array<i32: 1>} : vector<16x128xi32>
    %c6_i32 = arith.constant 6 : i32
    %125 = vector.broadcast %c6_i32 : i32 to vector<16x128xi32>
    %126 = arith.cmpi slt, %124, %125 : vector<16x128xi32>
    %cst_85 = arith.constant 0xFF800000 : f32
    %127 = vector.broadcast %cst_85 : f32 to vector<16x128xf32>
    %128 = arith.select %126, %123, %127 : vector<16x128xi1>, vector<16x128xf32>
    %cst_86 = arith.constant dense<0xFF800000> : vector<16xf32>
    %129 = vector.multi_reduction <maximumf>, %128, %cst_86 [1] : vector<16x128xf32> to vector<16xf32>
    %130 = vector.shape_cast %129 : vector<16xf32> to vector<16x1xf32>
    %131 = vector.broadcast %130 : vector<16x1xf32> to vector<16x128xf32>
    %132 = arith.subf %128, %131 : vector<16x128xf32>
    %133 = math.exp %132 : vector<16x128xf32>
    %cst_87 = arith.constant dense<0.000000e+00> : vector<16xf32>
    %134 = vector.multi_reduction <add>, %133, %cst_87 [1] : vector<16x128xf32> to vector<16xf32>
    %135 = vector.shape_cast %134 : vector<16xf32> to vector<16x1xf32>
    %136 = math.log %135 : vector<16x1xf32>
    %137 = arith.addf %136, %130 : vector<16x1xf32>
    %138 = vector.broadcast %137 : vector<16x1xf32> to vector<16x128xf32>
    %139 = arith.subf %123, %138 : vector<16x128xf32>
    %140 = arith.select %126, %139, %123 : vector<16x128xi1>, vector<16x128xf32>
    %c0_88 = arith.constant 0 : index
    %c0_89 = arith.constant 0 : index
    %141 = vector.load %arg14[%c0_88, %c0_89] : memref<16x128xf32, #tpu.memory_space<vmem>>, vector<16x128xf32>
    tpu.vector_store %arg14[%c0_88, %c0_89], %140 {strides = array<i32>} : memref<16x128xf32, #tpu.memory_space<vmem>>, vector<16x128xf32>,
    return
  }
  func.func @transform_0(%arg0: i32) -> (i32, i32, i32, i32) {
    %c0_i32 = arith.constant 0 : i32
    %c0_i32_0 = arith.constant 0 : i32
    %c0_i32_1 = arith.constant 0 : i32
    %c0_i32_2 = arith.constant 0 : i32
    return %c0_i32, %c0_i32_0, %arg0, %c0_i32_1 : i32, i32, i32, i32
  }
  func.func @transform_1(%arg0: i32) -> (i32, i32) {
    %c0_i32 = arith.constant 0 : i32
    %c0_i32_0 = arith.constant 0 : i32
    return %arg0, %c0_i32 : i32, i32
  }
  func.func @transform_2(%arg0: i32) -> (i32, i32, i32, i32) {
    %c0_i32 = arith.constant 0 : i32
    %c0_i32_0 = arith.constant 0 : i32
    %c0_i32_1 = arith.constant 0 : i32
    %c0_i32_2 = arith.constant 0 : i32
    %c0_i32_3 = arith.constant 0 : i32
    return %c0_i32, %c0_i32_0, %c0_i32_1, %c0_i32_2 : i32, i32, i32, i32
  }
  func.func @transform_3(%arg0: i32) -> (i32, i32) {
    %c0_i32 = arith.constant 0 : i32
    %c0_i32_0 = arith.constant 0 : i32
    %c0_i32_1 = arith.constant 0 : i32
    return %c0_i32, %c0_i32_0 : i32, i32
  }
  func.func @transform_4(%arg0: i32) -> (i32, i32, i32, i32) {
    %c0_i32 = arith.constant 0 : i32
    %c0_i32_0 = arith.constant 0 : i32
    %c0_i32_1 = arith.constant 0 : i32
    %c0_i32_2 = arith.constant 0 : i32
    %c0_i32_3 = arith.constant 0 : i32
    return %c0_i32, %c0_i32_0, %c0_i32_1, %c0_i32_2 : i32, i32, i32, i32
  }
  func.func @transform_5(%arg0: i32) -> (i32, i32) {
    %c0_i32 = arith.constant 0 : i32
    %c0_i32_0 = arith.constant 0 : i32
    %c0_i32_1 = arith.constant 0 : i32
    return %c0_i32, %c0_i32_0 : i32, i32
  }
  func.func @transform_6(%arg0: i32) -> (i32, i32, i32, i32) {
    %c0_i32 = arith.constant 0 : i32
    %c0_i32_0 = arith.constant 0 : i32
    %c0_i32_1 = arith.constant 0 : i32
    %c0_i32_2 = arith.constant 0 : i32
    %c0_i32_3 = arith.constant 0 : i32
    return %c0_i32, %c0_i32_0, %c0_i32_1, %c0_i32_2 : i32, i32, i32, i32
  }
  func.func @transform_7(%arg0: i32) -> (i32, i32) {
    %c0_i32 = arith.constant 0 : i32
    %c0_i32_0 = arith.constant 0 : i32
    %c0_i32_1 = arith.constant 0 : i32
    return %c0_i32, %c0_i32_0 : i32, i32
  }
  func.func @transform_8(%arg0: i32) -> (i32, i32) {
    %c0_i32 = arith.constant 0 : i32
    %c0_i32_0 = arith.constant 0 : i32
    %c0_i32_1 = arith.constant 0 : i32
    return %c0_i32, %c0_i32_0 : i32, i32
  }
  func.func @transform_9(%arg0: i32) -> (i32, i32) {
    %c0_i32 = arith.constant 0 : i32
    %c0_i32_0 = arith.constant 0 : i32
    %c0_i32_1 = arith.constant 0 : i32
    return %c0_i32, %c0_i32_0 : i32, i32
  }
  func.func @transform_10(%arg0: i32) -> (i32, i32) {
    %c0_i32 = arith.constant 0 : i32
    %c0_i32_0 = arith.constant 0 : i32
    %c0_i32_1 = arith.constant 0 : i32
    return %c0_i32, %c0_i32_0 : i32, i32
  }
  func.func @transform_11(%arg0: i32) -> (i32, i32) {
    %c0_i32 = arith.constant 0 : i32
    %c0_i32_0 = arith.constant 0 : i32
    %c0_i32_1 = arith.constant 0 : i32
    return %c0_i32, %c0_i32_0 : i32, i32
  }
  func.func @transform_12(%arg0: i32) -> (i32, i32) {
    %c0_i32 = arith.constant 0 : i32
    %c0_i32_0 = arith.constant 0 : i32
    %c0_i32_1 = arith.constant 0 : i32
    return %c0_i32, %c0_i32_0 : i32, i32
  }
  func.func @transform_13(%arg0: i32) -> (i32, i32) {
    %c0_i32 = arith.constant 0 : i32
    %c0_i32_0 = arith.constant 0 : i32
    return %arg0, %c0_i32 : i32, i32
  }
}

</mosaic_0001>

<llo_original>
// kernel: tpu_custom_call.1
$region0: #{tpu_custom_call.1}
  #allocation0 [shape = 'u32[]', space=smem, size = 0x4, offset = 0x4, fixed_abs, tag = 'smem constant byte address 0x4 - core index']
  #allocation1 [shape = 'u32[144,128]{1,0:T(1,128)}', space=vmem, size = 0x12000, scoped, tag = 'internal scratch']
  %s0 = inlined_call_operand.vmem [shape: f32[8,8,48,7], index: 0, kind: input, shape index: {}]
  %s1 = inlined_call_operand.vmem [shape: f32[48,16], index: 1, kind: input, shape index: {}]
  %s2 = inlined_call_operand.vmem [shape: f32[2,2,7,24], index: 2, kind: input, shape index: {}]
  %s3 = inlined_call_operand.vmem [shape: f32[1,24], index: 3, kind: input, shape index: {}]
  %s4 = inlined_call_operand.vmem [shape: f32[2,2,24,48], index: 4, kind: input, shape index: {}]
  %s5 = inlined_call_operand.vmem [shape: f32[1,48], index: 5, kind: input, shape index: {}]
  %s6 = inlined_call_operand.vmem [shape: f32[2,2,48,64], index: 6, kind: input, shape index: {}]
  %s7 = inlined_call_operand.vmem [shape: f32[1,64], index: 7, kind: input, shape index: {}]
  %s8 = inlined_call_operand.vmem [shape: f32[64,128], index: 8, kind: input, shape index: {}]
  %s9 = inlined_call_operand.vmem [shape: f32[16,128], index: 9, kind: input, shape index: {}]
  %s10 = inlined_call_operand.vmem [shape: f32[1,128], index: 10, kind: input, shape index: {}]
  %s11 = inlined_call_operand.vmem [shape: f32[128,128], index: 11, kind: input, shape index: {}]
  %s12 = inlined_call_operand.vmem [shape: f32[1,128], index: 12, kind: input, shape index: {}]
  %s13 = inlined_call_operand.hbm [shape: f32[48,128], index: 13, kind: output, shape index: {}]
  %s14 = sld [smem:[#allocation0]]
  $region123: #{tpu_custom_call.1} parent=0
    _
  %s16 = ssub.s32 1, %s14
  %s17 = scalar_select 0, %s16, %s14
  $region1: #{tpu_custom_call.1} parent=0
    #allocation2 [shape = 'u8[1048576]{0}', space=vmem, size = 0x100000, scoped, tag = 'input window, operand 0']
    #allocation3 [shape = 'u8[16384]{0}', space=vmem, size = 0x4000, scoped, tag = 'output window, operand 0']
    #allocation4 [shape = 's32[2]{0}', space=sflag, size = 0x8, scoped, tag = 'scoped memory for tpu_custom_call.1']
    %18 = vsyncpa [#allocation4], 0
    %s19 = scalar_lea.sflag [#allocation4], 1
    %20 = vsyncpa %s19, 0
    loop: start=0, step=1, limit=5
    $region2: #{tpu_custom_call.1} parent=1 // loop_pre_header
      _
    $region3: #{tpu_custom_call.1} parent=1 // loop_header
      %s22 = sphi 0, %s26
      %p23 = scmp.ge.s32.totalorder %s22, 5
      %s32 = sphi 0, %s34
      %s35 = sphi 0, %s32
      %s36 = sphi 0, %s35
      %s52 = sphi 0, %s36
      %s58 = sphi 0, %s60
      %s61 = sphi 0, %s58
      %s62 = sphi 0, %s61
      %s78 = sphi 0, %s62
      %s82 = sphi 0, %s82
      %s84 = sphi 0, %s82
      %s85 = sphi 0, %s84
      %s99 = sphi 0, %s85
      %s103 = sphi 0, %s103
      %s105 = sphi 0, %s103
      %s106 = sphi 0, %s105
      %s120 = sphi 0, %s106
      %s124 = sphi 0, %s124
      %s126 = sphi 0, %s124
      %s127 = sphi 0, %s126
      %s141 = sphi 0, %s127
      %s145 = sphi 0, %s145
      %s147 = sphi 0, %s145
      %s148 = sphi 0, %s147
      %s162 = sphi 0, %s148
      %s166 = sphi 0, %s166
      %s168 = sphi 0, %s166
      %s169 = sphi 0, %s168
      %s183 = sphi 0, %s169
      %s187 = sphi 0, %s187
      %s189 = sphi 0, %s187
      %s190 = sphi 0, %s189
      %s204 = sphi 0, %s190
      %s208 = sphi 0, %s208
      %s210 = sphi 0, %s208
      %s211 = sphi 0, %s210
      %s225 = sphi 0, %s211
      %s229 = sphi 0, %s229
      %s231 = sphi 0, %s229
      %s232 = sphi 0, %s231
      %s246 = sphi 0, %s232
      %s250 = sphi 0, %s250
      %s252 = sphi 0, %s250
      %s253 = sphi 0, %s252
      %s267 = sphi 0, %s253
      %s271 = sphi 0, %s271
      %s273 = sphi 0, %s271
      %s274 = sphi 0, %s273
      %s288 = sphi 0, %s274
      %s292 = sphi 0, %s292
      %s294 = sphi 0, %s292
      %s295 = sphi 0, %s294
      %s309 = sphi 0, %s295
      %s315 = sphi 0, %s317
      %s318 = sphi 0, %s315
      %s319 = sphi 0, %s318
      %s335 = sphi 0, %s319
    $region4: #{tpu_custom_call.1} parent=1 // loop_header_branch
      %25 = sbr.rel (%p23) target = $region8
    $region5: #{tpu_custom_call.1} parent=1 // loop_body
      %s27 = ssub.s32 %s22, 1
      %s28 = ssub.s32 %s22, 2
      %s29 = sadd.s32 %s22, 1
      %s30 = ssub.s32 %s22, %s29
      %p31 = scmp.eq.s32.totalorder %s30, 0
      %s33 = sadd.s32 %s32, 1
      %s34 = scalar_select %p31, %s32, %s33
      %p37 = pneg %p31
      %p38 = scmp.eq.s32.totalorder %s22, 2
      %p39 = por %p37, %p38
      %p40 = scmp.ne.s32.totalorder %s32, %s35
      %p41 = scmp.eq.s32.totalorder %s22, 0
      %p42 = por %p40, %p41
      %p43 = scmp.ne.s32.totalorder %s32, %s35
      %p44 = scmp.eq.s32.totalorder %s27, 2
      %p45 = por %p43, %p44
      %p46 = scmp.ne.s32.totalorder %s35, %s36
      %p47 = scmp.eq.s32.totalorder %s27, 0
      %p48 = por %p46, %p47
      %p49 = scmp.ne.s32.totalorder %s35, %s36
      %p50 = scmp.eq.s32.totalorder %s28, 2
      %p51 = por %p49, %p50
      %p53 = scmp.ne.s32.totalorder %s36, %s52
      %p54 = scmp.eq.s32.totalorder %s28, 0
      %p55 = por %p53, %p54
      %s56 = ssub.s32 %s22, %s29
      %p57 = scmp.eq.s32.totalorder %s56, 0
      %s59 = sadd.s32 %s58, 1
      %s60 = scalar_select %p57, %s58, %s59
      %p63 = pneg %p57
      %p64 = scmp.eq.s32.totalorder %s22, 2
      %p65 = por %p63, %p64
      %p66 = scmp.ne.s32.totalorder %s58, %s61
      %p67 = scmp.eq.s32.totalorder %s22, 0
      %p68 = por %p66, %p67
      %p69 = scmp.ne.s32.totalorder %s58, %s61
      %p70 = scmp.eq.s32.totalorder %s27, 2
      %p71 = por %p69, %p70
      %p72 = scmp.ne.s32.totalorder %s61, %s62
      %p73 = scmp.eq.s32.totalorder %s27, 0
      %p74 = por %p72, %p73
      %p75 = scmp.ne.s32.totalorder %s61, %s62
      %p76 = scmp.eq.s32.totalorder %s28, 2
      %p77 = por %p75, %p76
      %p79 = scmp.ne.s32.totalorder %s62, %s78
      %p80 = scmp.eq.s32.totalorder %s28, 0
      %p81 = por %p79, %p80
      %s83 = sadd.s32 %s82, 1
      %p86 = scmp.eq.s32.totalorder %s22, 2
      %p87 = scmp.ne.s32.totalorder %s82, %s84
      %p88 = scmp.eq.s32.totalorder %s22, 0
      %p89 = por %p87, %p88
      %p90 = scmp.ne.s32.totalorder %s82, %s84
      %p91 = scmp.eq.s32.totalorder %s27, 2
      %p92 = por %p90, %p91
      %p93 = scmp.ne.s32.totalorder %s84, %s85
      %p94 = scmp.eq.s32.totalorder %s27, 0
      %p95 = por %p93, %p94
      %p96 = scmp.ne.s32.totalorder %s84, %s85
      %p97 = scmp.eq.s32.totalorder %s28, 2
      %p98 = por %p96, %p97
      %p100 = scmp.ne.s32.totalorder %s85, %s99
      %p101 = scmp.eq.s32.totalorder %s28, 0
      %p102 = por %p100, %p101
      %s104 = sadd.s32 %s103, 1
      %p107 = scmp.eq.s32.totalorder %s22, 2
      %p108 = scmp.ne.s32.totalorder %s103, %s105
      %p109 = scmp.eq.s32.totalorder %s22, 0
      %p110 = por %p108, %p109
      %p111 = scmp.ne.s32.totalorder %s103, %s105
      %p112 = scmp.eq.s32.totalorder %s27, 2
      %p113 = por %p111, %p112
      %p114 = scmp.ne.s32.totalorder %s105, %s106
      %p115 = scmp.eq.s32.totalorder %s27, 0
      %p116 = por %p114, %p115
      %p117 = scmp.ne.s32.totalorder %s105, %s106
      %p118 = scmp.eq.s32.totalorder %s28, 2
      %p119 = por %p117, %p118
      %p121 = scmp.ne.s32.totalorder %s106, %s120
      %p122 = scmp.eq.s32.totalorder %s28, 0
      %p123 = por %p121, %p122
      %s125 = sadd.s32 %s124, 1
      %p128 = scmp.eq.s32.totalorder %s22, 2
      %p129 = scmp.ne.s32.totalorder %s124, %s126
      %p130 = scmp.eq.s32.totalorder %s22, 0
      %p131 = por %p129, %p130
      %p132 = scmp.ne.s32.totalorder %s124, %s126
      %p133 = scmp.eq.s32.totalorder %s27, 2
      %p134 = por %p132, %p133
      %p135 = scmp.ne.s32.totalorder %s126, %s127
      %p136 = scmp.eq.s32.totalorder %s27, 0
      %p137 = por %p135, %p136
      %p138 = scmp.ne.s32.totalorder %s126, %s127
      %p139 = scmp.eq.s32.totalorder %s28, 2
      %p140 = por %p138, %p139
      %p142 = scmp.ne.s32.totalorder %s127, %s141
      %p143 = scmp.eq.s32.totalorder %s28, 0
      %p144 = por %p142, %p143
      %s146 = sadd.s32 %s145, 1
      %p149 = scmp.eq.s32.totalorder %s22, 2
      %p150 = scmp.ne.s32.totalorder %s145, %s147
      %p151 = scmp.eq.s32.totalorder %s22, 0
      %p152 = por %p150, %p151
      %p153 = scmp.ne.s32.totalorder %s145, %s147
      %p154 = scmp.eq.s32.totalorder %s27, 2
      %p155 = por %p153, %p154
      %p156 = scmp.ne.s32.totalorder %s147, %s148
      %p157 = scmp.eq.s32.totalorder %s27, 0
      %p158 = por %p156, %p157
      %p159 = scmp.ne.s32.totalorder %s147, %s148
      %p160 = scmp.eq.s32.totalorder %s28, 2
      %p161 = por %p159, %p160
      %p163 = scmp.ne.s32.totalorder %s148, %s162
      %p164 = scmp.eq.s32.totalorder %s28, 0
      %p165 = por %p163, %p164
      %s167 = sadd.s32 %s166, 1
      %p170 = scmp.eq.s32.totalorder %s22, 2
      %p171 = scmp.ne.s32.totalorder %s166, %s168
      %p172 = scmp.eq.s32.totalorder %s22, 0
      %p173 = por %p171, %p172
      %p174 = scmp.ne.s32.totalorder %s166, %s168
      %p175 = scmp.eq.s32.totalorder %s27, 2
      %p176 = por %p174, %p175
      %p177 = scmp.ne.s32.totalorder %s168, %s169
      %p178 = scmp.eq.s32.totalorder %s27, 0
      %p179 = por %p177, %p178
      %p180 = scmp.ne.s32.totalorder %s168, %s169
      %p181 = scmp.eq.s32.totalorder %s28, 2
      %p182 = por %p180, %p181
      %p184 = scmp.ne.s32.totalorder %s169, %s183
      %p185 = scmp.eq.s32.totalorder %s28, 0
      %p186 = por %p184, %p185
      %s188 = sadd.s32 %s187, 1
      %p191 = scmp.eq.s32.totalorder %s22, 2
      %p192 = scmp.ne.s32.totalorder %s187, %s189
      %p193 = scmp.eq.s32.totalorder %s22, 0
      %p194 = por %p192, %p193
      %p195 = scmp.ne.s32.totalorder %s187, %s189
      %p196 = scmp.eq.s32.totalorder %s27, 2
      %p197 = por %p195, %p196
      %p198 = scmp.ne.s32.totalorder %s189, %s190
      %p199 = scmp.eq.s32.totalorder %s27, 0
      %p200 = por %p198, %p199
      %p201 = scmp.ne.s32.totalorder %s189, %s190
      %p202 = scmp.eq.s32.totalorder %s28, 2
      %p203 = por %p201, %p202
      %p205 = scmp.ne.s32.totalorder %s190, %s204
      %p206 = scmp.eq.s32.totalorder %s28, 0
      %p207 = por %p205, %p206
      %s209 = sadd.s32 %s208, 1
      %p212 = scmp.eq.s32.totalorder %s22, 2
      %p213 = scmp.ne.s32.totalorder %s208, %s210
      %p214 = scmp.eq.s32.totalorder %s22, 0
      %p215 = por %p213, %p214
      %p216 = scmp.ne.s32.totalorder %s208, %s210
      %p217 = scmp.eq.s32.totalorder %s27, 2
      %p218 = por %p216, %p217
      %p219 = scmp.ne.s32.totalorder %s210, %s211
      %p220 = scmp.eq.s32.totalorder %s27, 0
      %p221 = por %p219, %p220
      %p222 = scmp.ne.s32.totalorder %s210, %s211
      %p223 = scmp.eq.s32.totalorder %s28, 2
      %p224 = por %p222, %p223
      %p226 = scmp.ne.s32.totalorder %s211, %s225
      %p227 = scmp.eq.s32.totalorder %s28, 0
      %p228 = por %p226, %p227
      %s230 = sadd.s32 %s229, 1
      %p233 = scmp.eq.s32.totalorder %s22, 2
      %p234 = scmp.ne.s32.totalorder %s229, %s231
      %p235 = scmp.eq.s32.totalorder %s22, 0
      %p236 = por %p234, %p235
      %p237 = scmp.ne.s32.totalorder %s229, %s231
      %p238 = scmp.eq.s32.totalorder %s27, 2
      %p239 = por %p237, %p238
      %p240 = scmp.ne.s32.totalorder %s231, %s232
      %p241 = scmp.eq.s32.totalorder %s27, 0
      %p242 = por %p240, %p241
      %p243 = scmp.ne.s32.totalorder %s231, %s232
      %p244 = scmp.eq.s32.totalorder %s28, 2
      %p245 = por %p243, %p244
      %p247 = scmp.ne.s32.totalorder %s232, %s246
      %p248 = scmp.eq.s32.totalorder %s28, 0
      %p249 = por %p247, %p248
      %s251 = sadd.s32 %s250, 1
      %p254 = scmp.eq.s32.totalorder %s22, 2
      %p255 = scmp.ne.s32.totalorder %s250, %s252
      %p256 = scmp.eq.s32.totalorder %s22, 0
      %p257 = por %p255, %p256
      %p258 = scmp.ne.s32.totalorder %s250, %s252
      %p259 = scmp.eq.s32.totalorder %s27, 2
      %p260 = por %p258, %p259
      %p261 = scmp.ne.s32.totalorder %s252, %s253
      %p262 = scmp.eq.s32.totalorder %s27, 0
      %p263 = por %p261, %p262
      %p264 = scmp.ne.s32.totalorder %s252, %s253
      %p265 = scmp.eq.s32.totalorder %s28, 2
      %p266 = por %p264, %p265
      %p268 = scmp.ne.s32.totalorder %s253, %s267
      %p269 = scmp.eq.s32.totalorder %s28, 0
      %p270 = por %p268, %p269
      %s272 = sadd.s32 %s271, 1
      %p275 = scmp.eq.s32.totalorder %s22, 2
      %p276 = scmp.ne.s32.totalorder %s271, %s273
      %p277 = scmp.eq.s32.totalorder %s22, 0
      %p278 = por %p276, %p277
      %p279 = scmp.ne.s32.totalorder %s271, %s273
      %p280 = scmp.eq.s32.totalorder %s27, 2
      %p281 = por %p279, %p280
      %p282 = scmp.ne.s32.totalorder %s273, %s274
      %p283 = scmp.eq.s32.totalorder %s27, 0
      %p284 = por %p282, %p283
      %p285 = scmp.ne.s32.totalorder %s273, %s274
      %p286 = scmp.eq.s32.totalorder %s28, 2
      %p287 = por %p285, %p286
      %p289 = scmp.ne.s32.totalorder %s274, %s288
      %p290 = scmp.eq.s32.totalorder %s28, 0
      %p291 = por %p289, %p290
      %s293 = sadd.s32 %s292, 1
      %p296 = scmp.eq.s32.totalorder %s22, 2
      %p297 = scmp.ne.s32.totalorder %s292, %s294
      %p298 = scmp.eq.s32.totalorder %s22, 0
      %p299 = por %p297, %p298
      %p300 = scmp.ne.s32.totalorder %s292, %s294
      %p301 = scmp.eq.s32.totalorder %s27, 2
      %p302 = por %p300, %p301
      %p303 = scmp.ne.s32.totalorder %s294, %s295
      %p304 = scmp.eq.s32.totalorder %s27, 0
      %p305 = por %p303, %p304
      %p306 = scmp.ne.s32.totalorder %s294, %s295
      %p307 = scmp.eq.s32.totalorder %s28, 2
      %p308 = por %p306, %p307
      %p310 = scmp.ne.s32.totalorder %s295, %s309
      %p311 = scmp.eq.s32.totalorder %s28, 0
      %p312 = por %p310, %p311
      %s313 = ssub.s32 %s22, %s29
      %p314 = scmp.eq.s32.totalorder %s313, 0
      %s316 = sadd.s32 %s315, 1
      %s317 = scalar_select %p314, %s315, %s316
      %p320 = pneg %p314
      %p321 = scmp.eq.s32.totalorder %s22, 2
      %p322 = por %p320, %p321
      %p323 = scmp.ne.s32.totalorder %s315, %s318
      %p324 = scmp.eq.s32.totalorder %s22, 0
      %p325 = por %p323, %p324
      %p326 = scmp.ne.s32.totalorder %s315, %s318
      %p327 = scmp.eq.s32.totalorder %s27, 2
      %p328 = por %p326, %p327
      %p329 = scmp.ne.s32.totalorder %s318, %s319
      %p330 = scmp.eq.s32.totalorder %s27, 0
      %p331 = por %p329, %p330
      %p332 = scmp.ne.s32.totalorder %s318, %s319
      %p333 = scmp.eq.s32.totalorder %s28, 2
      %p334 = por %p332, %p333
      %p336 = scmp.ne.s32.totalorder %s319, %s335
      %p337 = scmp.eq.s32.totalorder %s28, 0
      %p338 = por %p336, %p337
      %p339 = scmp.le.s32.totalorder 1, %s22
      %p340 = scmp.lt.s32.totalorder %s22, 4
      %p341 = pnand %p339, %p340
      %p342 = pneg %p341
      // Predicated region
      $region9: #{tpu_custom_call.1} parent=5 // pred_check
        _
      $region10: #{tpu_custom_call.1} parent=5 // pred_check_branch
        %344 = sbr.rel (%p341) target = $region12
      $region11: #{tpu_custom_call.1} parent=5 // pred_region
        %s345 = ssub.s32 %s22, 1
        // Predicated region
        $region13: #{tpu_custom_call.1} parent=11 // pred_check
          %p346 = pneg %p95
        $region14: #{tpu_custom_call.1} parent=11 // pred_check_branch
          %348 = sbr.rel (%p346) target = $region16
        $region15: #{tpu_custom_call.1} parent=11 // pred_region
          _
        $region16: #{tpu_custom_call.1} parent=11 // pred_fallthru
          _
        // Predicated region
        $region17: #{tpu_custom_call.1} parent=11 // pred_check
          %p349 = pneg %p116
        $region18: #{tpu_custom_call.1} parent=11 // pred_check_branch
          %351 = sbr.rel (%p349) target = $region20
        $region19: #{tpu_custom_call.1} parent=11 // pred_region
          _
        $region20: #{tpu_custom_call.1} parent=11 // pred_fallthru
          _
        // Predicated region
        $region21: #{tpu_custom_call.1} parent=11 // pred_check
          %p352 = pneg %p137
        $region22: #{tpu_custom_call.1} parent=11 // pred_check_branch
          %354 = sbr.rel (%p352) target = $region24
        $region23: #{tpu_custom_call.1} parent=11 // pred_region
          _
        $region24: #{tpu_custom_call.1} parent=11 // pred_fallthru
          _
        // Predicated region
        $region25: #{tpu_custom_call.1} parent=11 // pred_check
          %p355 = pneg %p158
        $region26: #{tpu_custom_call.1} parent=11 // pred_check_branch
          %357 = sbr.rel (%p355) target = $region28
        $region27: #{tpu_custom_call.1} parent=11 // pred_region
          _
        $region28: #{tpu_custom_call.1} parent=11 // pred_fallthru
          _
        // Predicated region
        $region29: #{tpu_custom_call.1} parent=11 // pred_check
          %p358 = pneg %p179
        $region30: #{tpu_custom_call.1} parent=11 // pred_check_branch
          %360 = sbr.rel (%p358) target = $region32
        $region31: #{tpu_custom_call.1} parent=11 // pred_region
          _
        $region32: #{tpu_custom_call.1} parent=11 // pred_fallthru
          _
        // Predicated region
        $region33: #{tpu_custom_call.1} parent=11 // pred_check
          %p361 = pneg %p200
        $region34: #{tpu_custom_call.1} parent=11 // pred_check_branch
          %363 = sbr.rel (%p361) target = $region36
        $region35: #{tpu_custom_call.1} parent=11 // pred_region
          _
        $region36: #{tpu_custom_call.1} parent=11 // pred_fallthru
          _
        // Predicated region
        $region37: #{tpu_custom_call.1} parent=11 // pred_check
          %p364 = pneg %p221
        $region38: #{tpu_custom_call.1} parent=11 // pred_check_branch
          %366 = sbr.rel (%p364) target = $region40
        $region39: #{tpu_custom_call.1} parent=11 // pred_region
          _
        $region40: #{tpu_custom_call.1} parent=11 // pred_fallthru
          _
        // Predicated region
        $region41: #{tpu_custom_call.1} parent=11 // pred_check
          %p367 = pneg %p242
        $region42: #{tpu_custom_call.1} parent=11 // pred_check_branch
          %369 = sbr.rel (%p367) target = $region44
        $region43: #{tpu_custom_call.1} parent=11 // pred_region
          _
        $region44: #{tpu_custom_call.1} parent=11 // pred_fallthru
          _
        // Predicated region
        $region45: #{tpu_custom_call.1} parent=11 // pred_check
          %p370 = pneg %p263
        $region46: #{tpu_custom_call.1} parent=11 // pred_check_branch
          %372 = sbr.rel (%p370) target = $region48
        $region47: #{tpu_custom_call.1} parent=11 // pred_region
          _
        $region48: #{tpu_custom_call.1} parent=11 // pred_fallthru
          _
        // Predicated region
        $region49: #{tpu_custom_call.1} parent=11 // pred_check
          %p373 = pneg %p284
        $region50: #{tpu_custom_call.1} parent=11 // pred_check_branch
          %375 = sbr.rel (%p373) target = $region52
        $region51: #{tpu_custom_call.1} parent=11 // pred_region
          _
        $region52: #{tpu_custom_call.1} parent=11 // pred_fallthru
          _
        // Predicated region
        $region53: #{tpu_custom_call.1} parent=11 // pred_check
          %p376 = pneg %p305
        $region54: #{tpu_custom_call.1} parent=11 // pred_check_branch
          %378 = sbr.rel (%p376) target = $region56
        $region55: #{tpu_custom_call.1} parent=11 // pred_region
          _
        $region56: #{tpu_custom_call.1} parent=11 // pred_fallthru
          _
      $region12: #{tpu_custom_call.1} parent=5 // pred_fallthru
        _
      %p379 = scmp.lt.s32.totalorder %s22, 3
      // Predicated region
      $region57: #{tpu_custom_call.1} parent=5 // pred_check
        %p380 = pneg %p379
      $region58: #{tpu_custom_call.1} parent=5 // pred_check_branch
        %382 = sbr.rel (%p380) target = $region60
      $region59: #{tpu_custom_call.1} parent=5 // pred_region
        // Predicated region
        $region61: #{tpu_custom_call.1} parent=59 // pred_check
          %p383 = pneg %p42
        $region62: #{tpu_custom_call.1} parent=59 // pred_check_branch
          %385 = sbr.rel (%p383) target = $region64
        $region63: #{tpu_custom_call.1} parent=59 // pred_region
          %s386 = sand.u32 %s32, 1
          %s387 = sand.u32 %s32, 1
          %s388 = smul.addr %s387, 1024
          %s389 = scalar_lea.vmem [#allocation2], %s388
          %s390 = smul.u32 2, %s22
          %s391 = smul.addr %s390, 8
          %s392 = scalar_lea.vmem %s0, %s391
          // Predicated region
          $region65: #{tpu_custom_call.1} parent=63 // pred_check
            _
          $region66: #{tpu_custom_call.1} parent=63 // pred_check_branch
            %394 = sbr.rel (0) target = $region68
          $region67: #{tpu_custom_call.1} parent=63 // pred_region
            // Predicated region
            $region69: #{tpu_custom_call.1} parent=67 // pred_check
              _
            $region70: #{tpu_custom_call.1} parent=67 // pred_check_branch
              %396 = sbr.rel (0) target = $region72
            $region71: #{tpu_custom_call.1} parent=67 // pred_region
              // Predicated region
              $region84: #{tpu_custom_call.1} parent=71 // pred_check
                _
              $region85: #{tpu_custom_call.1} parent=71 // pred_check_branch
                %665 = sbr.rel (0) target = $region87
              $region86: #{tpu_custom_call.1} parent=71 // pred_region
                loop: start=0, step=1, limit=1
                $region88: #{tpu_custom_call.1} parent=86 // loop_pre_header
                  _
                $region89: #{tpu_custom_call.1} parent=86 // loop_header
                  %s667 = sphi 0, %s671
                  %p668 = scmp.ge.s32.totalorder %s667, 1
                  %s672 = sphi %s392, %s392
                  %s673 = sphi %s389, %s389
                $region90: #{tpu_custom_call.1} parent=86 // loop_header_branch
                  %670 = sbr.rel (%p668) target = $region94
                $region91: #{tpu_custom_call.1} parent=86 // loop_body
                  %v674 = vld [vmem:[%s672] sm:$0xff]
                  %675 = vst [vmem:[%s673] sm:$0xff] %v674
                  %v676 = vld [vmem:[%s672 + $0x8] sm:$0xff]
                  %677 = vst [vmem:[%s673 + $0x8] sm:$0xff] %v676
                  %v678 = vld [vmem:[%s672 + $0x30] sm:$0xff]
                  %679 = vst [vmem:[%s673 + $0x10] sm:$0xff] %v678
                  %v680 = vld [vmem:[%s672 + $0x38] sm:$0xff]
                  %681 = vst [vmem:[%s673 + $0x18] sm:$0xff] %v680
                  %v682 = vld [vmem:[%s672 + $0x60] sm:$0xff]
                  %683 = vst [vmem:[%s673 + $0x20] sm:$0xff] %v682
                  %v684 = vld [vmem:[%s672 + $0x68] sm:$0xff]
                  %685 = vst [vmem:[%s673 + $0x28] sm:$0xff] %v684
                  %v686 = vld [vmem:[%s672 + $0x90] sm:$0xff]
                  %687 = vst [vmem:[%s673 + $0x30] sm:$0xff] %v686
                  %v688 = vld [vmem:[%s672 + $0x98] sm:$0xff]
                  %689 = vst [vmem:[%s673 + $0x38] sm:$0xff] %v688
                  %v690 = vld [vmem:[%s672 + $0xc0] sm:$0xff]
                  %691 = vst [vmem:[%s673 + $0x40] sm:$0xff] %v690
                  %v692 = vld [vmem:[%s672 + $0xc8] sm:$0xff]
                  %693 = vst [vmem:[%s673 + $0x48] sm:$0xff] %v692
                  %v694 = vld [vmem:[%s672 + $0xf0] sm:$0xff]
                  %695 = vst [vmem:[%s673 + $0x50] sm:$0xff] %v694
                  %v696 = vld [vmem:[%s672 + $0xf8] sm:$0xff]
                  %697 = vst [vmem:[%s673 + $0x58] sm:$0xff] %v696
                  %v698 = vld [vmem:[%s672 + $0x120] sm:$0xff]
                  %699 = vst [vmem:[%s673 + $0x60] sm:$0xff] %v698
                  %v700 = vld [vmem:[%s672 + $0x128] sm:$0xff]
                  %701 = vst [vmem:[%s673 + $0x68] sm:$0xff] %v700
                  %v702 = vld [vmem:[%s672 + $0x150] sm:$0xff]
                  %703 = vst [vmem:[%s673 + $0x70] sm:$0xff] %v702
                  %v704 = vld [vmem:[%s672 + $0x158] sm:$0xff]
                  %705 = vst [vmem:[%s673 + $0x78] sm:$0xff] %v704
                  %v706 = vld [vmem:[%s672 + $0x180] sm:$0xff]
                  %707 = vst [vmem:[%s673 + $0x80] sm:$0xff] %v706
                  %v708 = vld [vmem:[%s672 + $0x188] sm:$0xff]
                  %709 = vst [vmem:[%s673 + $0x88] sm:$0xff] %v708
                  %v710 = vld [vmem:[%s672 + $0x1b0] sm:$0xff]
                  %711 = vst [vmem:[%s673 + $0x90] sm:$0xff] %v710
                  %v712 = vld [vmem:[%s672 + $0x1b8] sm:$0xff]
                  %713 = vst [vmem:[%s673 + $0x98] sm:$0xff] %v712
                  %v714 = vld [vmem:[%s672 + $0x1e0] sm:$0xff]
                  %715 = vst [vmem:[%s673 + $0xa0] sm:$0xff] %v714
                  %v716 = vld [vmem:[%s672 + $0x1e8] sm:$0xff]
                  %717 = vst [vmem:[%s673 + $0xa8] sm:$0xff] %v716
                  %v718 = vld [vmem:[%s672 + $0x210] sm:$0xff]
                  %719 = vst [vmem:[%s673 + $0xb0] sm:$0xff] %v718
                  %v720 = vld [vmem:[%s672 + $0x218] sm:$0xff]
                  %721 = vst [vmem:[%s673 + $0xb8] sm:$0xff] %v720
                  %v722 = vld [vmem:[%s672 + $0x240] sm:$0xff]
                  %723 = vst [vmem:[%s673 + $0xc0] sm:$0xff] %v722
                  %v724 = vld [vmem:[%s672 + $0x248] sm:$0xff]
                  %725 = vst [vmem:[%s673 + $0xc8] sm:$0xff] %v724
                  %v726 = vld [vmem:[%s672 + $0x270] sm:$0xff]
                  %727 = vst [vmem:[%s673 + $0xd0] sm:$0xff] %v726
                  %v728 = vld [vmem:[%s672 + $0x278] sm:$0xff]
                  %729 = vst [vmem:[%s673 + $0xd8] sm:$0xff] %v728
                  %v730 = vld [vmem:[%s672 + $0x2a0] sm:$0xff]
                  %731 = vst [vmem:[%s673 + $0xe0] sm:$0xff] %v730
                  %v732 = vld [vmem:[%s672 + $0x2a8] sm:$0xff]
                  %733 = vst [vmem:[%s673 + $0xe8] sm:$0xff] %v732
                  %v734 = vld [vmem:[%s672 + $0x2d0] sm:$0xff]
                  %735 = vst [vmem:[%s673 + $0xf0] sm:$0xff] %v734
                  %v736 = vld [vmem:[%s672 + $0x2d8] sm:$0xff]
                  %737 = vst [vmem:[%s673 + $0xf8] sm:$0xff] %v736
                  %v738 = vld [vmem:[%s672 + $0x300] sm:$0xff]
                  %739 = vst [vmem:[%s673 + $0x100] sm:$0xff] %v738
                  %v740 = vld [vmem:[%s672 + $0x308] sm:$0xff]
                  %741 = vst [vmem:[%s673 + $0x108] sm:$0xff] %v740
                  %v742 = vld [vmem:[%s672 + $0x330] sm:$0xff]
                  %743 = vst [vmem:[%s673 + $0x110] sm:$0xff] %v742
                  %v744 = vld [vmem:[%s672 + $0x338] sm:$0xff]
                  %745 = vst [vmem:[%s673 + $0x118] sm:$0xff] %v744
                  %v746 = vld [vmem:[%s672 + $0x360] sm:$0xff]
                  %747 = vst [vmem:[%s673 + $0x120] sm:$0xff] %v746
                  %v748 = vld [vmem:[%s672 + $0x368] sm:$0xff]
                  %749 = vst [vmem:[%s673 + $0x128] sm:$0xff] %v748
                  %v750 = vld [vmem:[%s672 + $0x390] sm:$0xff]
                  %751 = vst [vmem:[%s673 + $0x130] sm:$0xff] %v750
                  %v752 = vld [vmem:[%s672 + $0x398] sm:$0xff]
                  %753 = vst [vmem:[%s673 + $0x138] sm:$0xff] %v752
                  %v754 = vld [vmem:[%s672 + $0x3c0] sm:$0xff]
                  %755 = vst [vmem:[%s673 + $0x140] sm:$0xff] %v754
                  %v756 = vld [vmem:[%s672 + $0x3c8] sm:$0xff]
                  %757 = vst [vmem:[%s673 + $0x148] sm:$0xff] %v756
                  %v758 = vld [vmem:[%s672 + $0x3f0] sm:$0xff]
                  %759 = vst [vmem:[%s673 + $0x150] sm:$0xff] %v758
                  %v760 = vld [vmem:[%s672 + $0x3f8] sm:$0xff]
                  %761 = vst [vmem:[%s673 + $0x158] sm:$0xff] %v760
                  %v762 = vld [vmem:[%s672 + $0x420] sm:$0xff]
                  %763 = vst [vmem:[%s673 + $0x160] sm:$0xff] %v762
                  %v764 = vld [vmem:[%s672 + $0x428] sm:$0xff]
                  %765 = vst [vmem:[%s673 + $0x168] sm:$0xff] %v764
                  %v766 = vld [vmem:[%s672 + $0x450] sm:$0xff]
                  %767 = vst [vmem:[%s673 + $0x170] sm:$0xff] %v766
                  %v768 = vld [vmem:[%s672 + $0x458] sm:$0xff]
                  %769 = vst [vmem:[%s673 + $0x178] sm:$0xff] %v768
                  %v770 = vld [vmem:[%s672 + $0x480] sm:$0xff]
                  %771 = vst [vmem:[%s673 + $0x180] sm:$0xff] %v770
                  %v772 = vld [vmem:[%s672 + $0x488] sm:$0xff]
                  %773 = vst [vmem:[%s673 + $0x188] sm:$0xff] %v772
                  %v774 = vld [vmem:[%s672 + $0x4b0] sm:$0xff]
                  %775 = vst [vmem:[%s673 + $0x190] sm:$0xff] %v774
                  %v776 = vld [vmem:[%s672 + $0x4b8] sm:$0xff]
                  %777 = vst [vmem:[%s673 + $0x198] sm:$0xff] %v776
                  %v778 = vld [vmem:[%s672 + $0x4e0] sm:$0xff]
                  %779 = vst [vmem:[%s673 + $0x1a0] sm:$0xff] %v778
                  %v780 = vld [vmem:[%s672 + $0x4e8] sm:$0xff]
                  %781 = vst [vmem:[%s673 + $0x1a8] sm:$0xff] %v780
                  %v782 = vld [vmem:[%s672 + $0x510] sm:$0xff]
                  %783 = vst [vmem:[%s673 + $0x1b0] sm:$0xff] %v782
                  %v784 = vld [vmem:[%s672 + $0x518] sm:$0xff]
                  %785 = vst [vmem:[%s673 + $0x1b8] sm:$0xff] %v784
                  %v786 = vld [vmem:[%s672 + $0x540] sm:$0xff]
                  %787 = vst [vmem:[%s673 + $0x1c0] sm:$0xff] %v786
                  %v788 = vld [vmem:[%s672 + $0x548] sm:$0xff]
                  %789 = vst [vmem:[%s673 + $0x1c8] sm:$0xff] %v788
                  %v790 = vld [vmem:[%s672 + $0x570] sm:$0xff]
                  %791 = vst [vmem:[%s673 + $0x1d0] sm:$0xff] %v790
                  %v792 = vld [vmem:[%s672 + $0x578] sm:$0xff]
                  %793 = vst [vmem:[%s673 + $0x1d8] sm:$0xff] %v792
                  %v794 = vld [vmem:[%s672 + $0x5a0] sm:$0xff]
                  %795 = vst [vmem:[%s673 + $0x1e0] sm:$0xff] %v794
                  %v796 = vld [vmem:[%s672 + $0x5a8] sm:$0xff]
                  %797 = vst [vmem:[%s673 + $0x1e8] sm:$0xff] %v796
                  %v798 = vld [vmem:[%s672 + $0x5d0] sm:$0xff]
                  %799 = vst [vmem:[%s673 + $0x1f0] sm:$0xff] %v798
                  %v800 = vld [vmem:[%s672 + $0x5d8] sm:$0xff]
                  %801 = vst [vmem:[%s673 + $0x1f8] sm:$0xff] %v800
                  %v802 = vld [vmem:[%s672 + $0x600] sm:$0xff]
                  %803 = vst [vmem:[%s673 + $0x200] sm:$0xff] %v802
                  %v804 = vld [vmem:[%s672 + $0x608] sm:$0xff]
                  %805 = vst [vmem:[%s673 + $0x208] sm:$0xff] %v804
                  %v806 = vld [vmem:[%s672 + $0x630] sm:$0xff]
                  %807 = vst [vmem:[%s673 + $0x210] sm:$0xff] %v806
                  %v808 = vld [vmem:[%s672 + $0x638] sm:$0xff]
                  %809 = vst [vmem:[%s673 + $0x218] sm:$0xff] %v808
                  %v810 = vld [vmem:[%s672 + $0x660] sm:$0xff]
                  %811 = vst [vmem:[%s673 + $0x220] sm:$0xff] %v810
                  %v812 = vld [vmem:[%s672 + $0x668] sm:$0xff]
                  %813 = vst [vmem:[%s673 + $0x228] sm:$0xff] %v812
                  %v814 = vld [vmem:[%s672 + $0x690] sm:$0xff]
                  %815 = vst [vmem:[%s673 + $0x230] sm:$0xff] %v814
                  %v816 = vld [vmem:[%s672 + $0x698] sm:$0xff]
                  %817 = vst [vmem:[%s673 + $0x238] sm:$0xff] %v816
                  %v818 = vld [vmem:[%s672 + $0x6c0] sm:$0xff]
                  %819 = vst [vmem:[%s673 + $0x240] sm:$0xff] %v818
                  %v820 = vld [vmem:[%s672 + $0x6c8] sm:$0xff]
                  %821 = vst [vmem:[%s673 + $0x248] sm:$0xff] %v820
                  %v822 = vld [vmem:[%s672 + $0x6f0] sm:$0xff]
                  %823 = vst [vmem:[%s673 + $0x250] sm:$0xff] %v822
                  %v824 = vld [vmem:[%s672 + $0x6f8] sm:$0xff]
                  %825 = vst [vmem:[%s673 + $0x258] sm:$0xff] %v824
                  %v826 = vld [vmem:[%s672 + $0x720] sm:$0xff]
                  %827 = vst [vmem:[%s673 + $0x260] sm:$0xff] %v826
                  %v828 = vld [vmem:[%s672 + $0x728] sm:$0xff]
                  %829 = vst [vmem:[%s673 + $0x268] sm:$0xff] %v828
                  %v830 = vld [vmem:[%s672 + $0x750] sm:$0xff]
                  %831 = vst [vmem:[%s673 + $0x270] sm:$0xff] %v830
                  %v832 = vld [vmem:[%s672 + $0x758] sm:$0xff]
                  %833 = vst [vmem:[%s673 + $0x278] sm:$0xff] %v832
                  %v834 = vld [vmem:[%s672 + $0x780] sm:$0xff]
                  %835 = vst [vmem:[%s673 + $0x280] sm:$0xff] %v834
                  %v836 = vld [vmem:[%s672 + $0x788] sm:$0xff]
                  %837 = vst [vmem:[%s673 + $0x288] sm:$0xff] %v836
                  %v838 = vld [vmem:[%s672 + $0x7b0] sm:$0xff]
                  %839 = vst [vmem:[%s673 + $0x290] sm:$0xff] %v838
                  %v840 = vld [vmem:[%s672 + $0x7b8] sm:$0xff]
                  %841 = vst [vmem:[%s673 + $0x298] sm:$0xff] %v840
                  %v842 = vld [vmem:[%s672 + $0x7e0] sm:$0xff]
                  %843 = vst [vmem:[%s673 + $0x2a0] sm:$0xff] %v842
                  %v844 = vld [vmem:[%s672 + $0x7e8] sm:$0xff]
                  %845 = vst [vmem:[%s673 + $0x2a8] sm:$0xff] %v844
                  %v846 = vld [vmem:[%s672 + $0x810] sm:$0xff]
                  %847 = vst [vmem:[%s673 + $0x2b0] sm:$0xff] %v846
                  %v848 = vld [vmem:[%s672 + $0x818] sm:$0xff]
                  %849 = vst [vmem:[%s673 + $0x2b8] sm:$0xff] %v848
                  %v850 = vld [vmem:[%s672 + $0x840] sm:$0xff]
                  %851 = vst [vmem:[%s673 + $0x2c0] sm:$0xff] %v850
                  %v852 = vld [vmem:[%s672 + $0x848] sm:$0xff]
                  %853 = vst [vmem:[%s673 + $0x2c8] sm:$0xff] %v852
                  %v854 = vld [vmem:[%s672 + $0x870] sm:$0xff]
                  %855 = vst [vmem:[%s673 + $0x2d0] sm:$0xff] %v854
                  %v856 = vld [vmem:[%s672 + $0x878] sm:$0xff]
                  %857 = vst [vmem:[%s673 + $0x2d8] sm:$0xff] %v856
                  %v858 = vld [vmem:[%s672 + $0x8a0] sm:$0xff]
                  %859 = vst [vmem:[%s673 + $0x2e0] sm:$0xff] %v858
                  %v860 = vld [vmem:[%s672 + $0x8a8] sm:$0xff]
                  %861 = vst [vmem:[%s673 + $0x2e8] sm:$0xff] %v860
                  %v862 = vld [vmem:[%s672 + $0x8d0] sm:$0xff]
                  %863 = vst [vmem:[%s673 + $0x2f0] sm:$0xff] %v862
                  %v864 = vld [vmem:[%s672 + $0x8d8] sm:$0xff]
                  %865 = vst [vmem:[%s673 + $0x2f8] sm:$0xff] %v864
                  %v866 = vld [vmem:[%s672 + $0x900] sm:$0xff]
                  %867 = vst [vmem:[%s673 + $0x300] sm:$0xff] %v866
                  %v868 = vld [vmem:[%s672 + $0x908] sm:$0xff]
                  %869 = vst [vmem:[%s673 + $0x308] sm:$0xff] %v868
                  %v870 = vld [vmem:[%s672 + $0x930] sm:$0xff]
                  %871 = vst [vmem:[%s673 + $0x310] sm:$0xff] %v870
                  %v872 = vld [vmem:[%s672 + $0x938] sm:$0xff]
                  %873 = vst [vmem:[%s673 + $0x318] sm:$0xff] %v872
                  %v874 = vld [vmem:[%s672 + $0x960] sm:$0xff]
                  %875 = vst [vmem:[%s673 + $0x320] sm:$0xff] %v874
                  %v876 = vld [vmem:[%s672 + $0x968] sm:$0xff]
                  %877 = vst [vmem:[%s673 + $0x328] sm:$0xff] %v876
                  %v878 = vld [vmem:[%s672 + $0x990] sm:$0xff]
                  %879 = vst [vmem:[%s673 + $0x330] sm:$0xff] %v878
                  %v880 = vld [vmem:[%s672 + $0x998] sm:$0xff]
                  %881 = vst [vmem:[%s673 + $0x338] sm:$0xff] %v880
                  %v882 = vld [vmem:[%s672 + $0x9c0] sm:$0xff]
                  %883 = vst [vmem:[%s673 + $0x340] sm:$0xff] %v882
                  %v884 = vld [vmem:[%s672 + $0x9c8] sm:$0xff]
                  %885 = vst [vmem:[%s673 + $0x348] sm:$0xff] %v884
                  %v886 = vld [vmem:[%s672 + $0x9f0] sm:$0xff]
                  %887 = vst [vmem:[%s673 + $0x350] sm:$0xff] %v886
                  %v888 = vld [vmem:[%s672 + $0x9f8] sm:$0xff]
                  %889 = vst [vmem:[%s673 + $0x358] sm:$0xff] %v888
                  %v890 = vld [vmem:[%s672 + $0xa20] sm:$0xff]
                  %891 = vst [vmem:[%s673 + $0x360] sm:$0xff] %v890
                  %v892 = vld [vmem:[%s672 + $0xa28] sm:$0xff]
                  %893 = vst [vmem:[%s673 + $0x368] sm:$0xff] %v892
                  %v894 = vld [vmem:[%s672 + $0xa50] sm:$0xff]
                  %895 = vst [vmem:[%s673 + $0x370] sm:$0xff] %v894
                  %v896 = vld [vmem:[%s672 + $0xa58] sm:$0xff]
                  %897 = vst [vmem:[%s673 + $0x378] sm:$0xff] %v896
                  %v898 = vld [vmem:[%s672 + $0xa80] sm:$0xff]
                  %899 = vst [vmem:[%s673 + $0x380] sm:$0xff] %v898
                  %v900 = vld [vmem:[%s672 + $0xa88] sm:$0xff]
                  %901 = vst [vmem:[%s673 + $0x388] sm:$0xff] %v900
                  %v902 = vld [vmem:[%s672 + $0xab0] sm:$0xff]
                  %903 = vst [vmem:[%s673 + $0x390] sm:$0xff] %v902
                  %v904 = vld [vmem:[%s672 + $0xab8] sm:$0xff]
                  %905 = vst [vmem:[%s673 + $0x398] sm:$0xff] %v904
                  %v906 = vld [vmem:[%s672 + $0xae0] sm:$0xff]
                  %907 = vst [vmem:[%s673 + $0x3a0] sm:$0xff] %v906
                  %v908 = vld [vmem:[%s672 + $0xae8] sm:$0xff]
                  %909 = vst [vmem:[%s673 + $0x3a8] sm:$0xff] %v908
                  %v910 = vld [vmem:[%s672 + $0xb10] sm:$0xff]
                  %911 = vst [vmem:[%s673 + $0x3b0] sm:$0xff] %v910
                  %v912 = vld [vmem:[%s672 + $0xb18] sm:$0xff]
                  %913 = vst [vmem:[%s673 + $0x3b8] sm:$0xff] %v912
                  %v914 = vld [vmem:[%s672 + $0xb40] sm:$0xff]
                  %915 = vst [vmem:[%s673 + $0x3c0] sm:$0xff] %v914
                  %v916 = vld [vmem:[%s672 + $0xb48] sm:$0xff]
                  %917 = vst [vmem:[%s673 + $0x3c8] sm:$0xff] %v916
                  %v918 = vld [vmem:[%s672 + $0xb70] sm:$0xff]
                  %919 = vst [vmem:[%s673 + $0x3d0] sm:$0xff] %v918
                  %v920 = vld [vmem:[%s672 + $0xb78] sm:$0xff]
                  %921 = vst [vmem:[%s673 + $0x3d8] sm:$0xff] %v920
                  %v922 = vld [vmem:[%s672 + $0xba0] sm:$0xff]
                  %923 = vst [vmem:[%s673 + $0x3e0] sm:$0xff] %v922
                  %v924 = vld [vmem:[%s672 + $0xba8] sm:$0xff]
                  %925 = vst [vmem:[%s673 + $0x3e8] sm:$0xff] %v924
                  %v926 = vld [vmem:[%s672 + $0xbd0] sm:$0xff]
                  %927 = vst [vmem:[%s673 + $0x3f0] sm:$0xff] %v926
                  %v928 = vld [vmem:[%s672 + $0xbd8] sm:$0xff]
                  %929 = vst [vmem:[%s673 + $0x3f8] sm:$0xff] %v928
                $region92: #{tpu_custom_call.1} parent=86 // loop_footer
                  %s671 = sadd.s32 1, %s667
                $region93: #{tpu_custom_call.1} parent=86 // loop_footer_branch
                  %666 = sbr.rel target = $region89
                $region94: #{tpu_custom_call.1} parent=86 // loop_exit
                  _
              $region87: #{tpu_custom_call.1} parent=71 // pred_fallthru
                _
              // Predicated region
              $region95: #{tpu_custom_call.1} parent=71 // pred_check
                _
              $region96: #{tpu_custom_call.1} parent=71 // pred_check_branch
                %931 = sbr.rel target = $region98
              $region97: #{tpu_custom_call.1} parent=71 // pred_region
                _
              $region98: #{tpu_custom_call.1} parent=71 // pred_fallthru
                _
            $region72: #{tpu_custom_call.1} parent=67 // pred_fallthru
              _
            // Predicated region
            $region73: #{tpu_custom_call.1} parent=67 // pred_check
              _
            $region74: #{tpu_custom_call.1} parent=67 // pred_check_branch
              %398 = sbr.rel target = $region76
            $region75: #{tpu_custom_call.1} parent=67 // pred_region
              loop: start=0, step=1, limit=1
              $region77: #{tpu_custom_call.1} parent=75 // loop_pre_header
                _
              $region78: #{tpu_custom_call.1} parent=75 // loop_header
                %s401 = sphi 0, %s405
                %p402 = scmp.ge.s32.totalorder %s401, 1
                %s406 = sphi %s392, %s392
                %s407 = sphi %s389, %s389
              $region79: #{tpu_custom_call.1} parent=75 // loop_header_branch
                %404 = sbr.rel (%p402) target = $region83
              $region80: #{tpu_custom_call.1} parent=75 // loop_body
                %v408 = vld [vmem:[%s406] sm:$0xff]
                %409 = vst [vmem:[%s407] sm:$0xff] %v408
                %v410 = vld [vmem:[%s406 + $0x8] sm:$0xff]
                %411 = vst [vmem:[%s407 + $0x8] sm:$0xff] %v410
                %v412 = vld [vmem:[%s406 + $0x30] sm:$0xff]
                %413 = vst [vmem:[%s407 + $0x10] sm:$0xff] %v412
                %v414 = vld [vmem:[%s406 + $0x38] sm:$0xff]
                %415 = vst [vmem:[%s407 + $0x18] sm:$0xff] %v414
                %v416 = vld [vmem:[%s406 + $0x60] sm:$0xff]
                %417 = vst [vmem:[%s407 + $0x20] sm:$0xff] %v416
                %v418 = vld [vmem:[%s406 + $0x68] sm:$0xff]
                %419 = vst [vmem:[%s407 + $0x28] sm:$0xff] %v418
                %v420 = vld [vmem:[%s406 + $0x90] sm:$0xff]
                %421 = vst [vmem:[%s407 + $0x30] sm:$0xff] %v420
                %v422 = vld [vmem:[%s406 + $0x98] sm:$0xff]
                %423 = vst [vmem:[%s407 + $0x38] sm:$0xff] %v422
                %v424 = vld [vmem:[%s406 + $0xc0] sm:$0xff]
                %425 = vst [vmem:[%s407 + $0x40] sm:$0xff] %v424
                %v426 = vld [vmem:[%s406 + $0xc8] sm:$0xff]
                %427 = vst [vmem:[%s407 + $0x48] sm:$0xff] %v426
                %v428 = vld [vmem:[%s406 + $0xf0] sm:$0xff]
                %429 = vst [vmem:[%s407 + $0x50] sm:$0xff] %v428
                %v430 = vld [vmem:[%s406 + $0xf8] sm:$0xff]
                %431 = vst [vmem:[%s407 + $0x58] sm:$0xff] %v430
                %v432 = vld [vmem:[%s406 + $0x120] sm:$0xff]
                %433 = vst [vmem:[%s407 + $0x60] sm:$0xff] %v432
                %v434 = vld [vmem:[%s406 + $0x128] sm:$0xff]
                %435 = vst [vmem:[%s407 + $0x68] sm:$0xff] %v434
                %v436 = vld [vmem:[%s406 + $0x150] sm:$0xff]
                %437 = vst [vmem:[%s407 + $0x70] sm:$0xff] %v436
                %v438 = vld [vmem:[%s406 + $0x158] sm:$0xff]
                %439 = vst [vmem:[%s407 + $0x78] sm:$0xff] %v438
                %v440 = vld [vmem:[%s406 + $0x180] sm:$0xff]
                %441 = vst [vmem:[%s407 + $0x80] sm:$0xff] %v440
                %v442 = vld [vmem:[%s406 + $0x188] sm:$0xff]
                %443 = vst [vmem:[%s407 + $0x88] sm:$0xff] %v442
                %v444 = vld [vmem:[%s406 + $0x1b0] sm:$0xff]
                %445 = vst [vmem:[%s407 + $0x90] sm:$0xff] %v444
                %v446 = vld [vmem:[%s406 + $0x1b8] sm:$0xff]
                %447 = vst [vmem:[%s407 + $0x98] sm:$0xff] %v446
                %v448 = vld [vmem:[%s406 + $0x1e0] sm:$0xff]
                %449 = vst [vmem:[%s407 + $0xa0] sm:$0xff] %v448
                %v450 = vld [vmem:[%s406 + $0x1e8] sm:$0xff]
                %451 = vst [vmem:[%s407 + $0xa8] sm:$0xff] %v450
                %v452 = vld [vmem:[%s406 + $0x210] sm:$0xff]
                %453 = vst [vmem:[%s407 + $0xb0] sm:$0xff] %v452
                %v454 = vld [vmem:[%s406 + $0x218] sm:$0xff]
                %455 = vst [vmem:[%s407 + $0xb8] sm:$0xff] %v454
                %v456 = vld [vmem:[%s406 + $0x240] sm:$0xff]
                %457 = vst [vmem:[%s407 + $0xc0] sm:$0xff] %v456
                %v458 = vld [vmem:[%s406 + $0x248] sm:$0xff]
                %459 = vst [vmem:[%s407 + $0xc8] sm:$0xff] %v458
                %v460 = vld [vmem:[%s406 + $0x270] sm:$0xff]
                %461 = vst [vmem:[%s407 + $0xd0] sm:$0xff] %v460
                %v462 = vld [vmem:[%s406 + $0x278] sm:$0xff]
                %463 = vst [vmem:[%s407 + $0xd8] sm:$0xff] %v462
                %v464 = vld [vmem:[%s406 + $0x2a0] sm:$0xff]
                %465 = vst [vmem:[%s407 + $0xe0] sm:$0xff] %v464
                %v466 = vld [vmem:[%s406 + $0x2a8] sm:$0xff]
                %467 = vst [vmem:[%s407 + $0xe8] sm:$0xff] %v466
                %v468 = vld [vmem:[%s406 + $0x2d0] sm:$0xff]
                %469 = vst [vmem:[%s407 + $0xf0] sm:$0xff] %v468
                %v470 = vld [vmem:[%s406 + $0x2d8] sm:$0xff]
                %471 = vst [vmem:[%s407 + $0xf8] sm:$0xff] %v470
                %v472 = vld [vmem:[%s406 + $0x300] sm:$0xff]
                %473 = vst [vmem:[%s407 + $0x100] sm:$0xff] %v472
                %v474 = vld [vmem:[%s406 + $0x308] sm:$0xff]
                %475 = vst [vmem:[%s407 + $0x108] sm:$0xff] %v474
                %v476 = vld [vmem:[%s406 + $0x330] sm:$0xff]
                %477 = vst [vmem:[%s407 + $0x110] sm:$0xff] %v476
                %v478 = vld [vmem:[%s406 + $0x338] sm:$0xff]
                %479 = vst [vmem:[%s407 + $0x118] sm:$0xff] %v478
                %v480 = vld [vmem:[%s406 + $0x360] sm:$0xff]
                %481 = vst [vmem:[%s407 + $0x120] sm:$0xff] %v480
                %v482 = vld [vmem:[%s406 + $0x368] sm:$0xff]
                %483 = vst [vmem:[%s407 + $0x128] sm:$0xff] %v482
                %v484 = vld [vmem:[%s406 + $0x390] sm:$0xff]
                %485 = vst [vmem:[%s407 + $0x130] sm:$0xff] %v484
                %v486 = vld [vmem:[%s406 + $0x398] sm:$0xff]
                %487 = vst [vmem:[%s407 + $0x138] sm:$0xff] %v486
                %v488 = vld [vmem:[%s406 + $0x3c0] sm:$0xff]
                %489 = vst [vmem:[%s407 + $0x140] sm:$0xff] %v488
                %v490 = vld [vmem:[%s406 + $0x3c8] sm:$0xff]
                %491 = vst [vmem:[%s407 + $0x148] sm:$0xff] %v490
                %v492 = vld [vmem:[%s406 + $0x3f0] sm:$0xff]
                %493 = vst [vmem:[%s407 + $0x150] sm:$0xff] %v492
                %v494 = vld [vmem:[%s406 + $0x3f8] sm:$0xff]
                %495 = vst [vmem:[%s407 + $0x158] sm:$0xff] %v494
                %v496 = vld [vmem:[%s406 + $0x420] sm:$0xff]
                %497 = vst [vmem:[%s407 + $0x160] sm:$0xff] %v496
                %v498 = vld [vmem:[%s406 + $0x428] sm:$0xff]
                %499 = vst [vmem:[%s407 + $0x168] sm:$0xff] %v498
                %v500 = vld [vmem:[%s406 + $0x450] sm:$0xff]
                %501 = vst [vmem:[%s407 + $0x170] sm:$0xff] %v500
                %v502 = vld [vmem:[%s406 + $0x458] sm:$0xff]
                %503 = vst [vmem:[%s407 + $0x178] sm:$0xff] %v502
                %v504 = vld [vmem:[%s406 + $0x480] sm:$0xff]
                %505 = vst [vmem:[%s407 + $0x180] sm:$0xff] %v504
                %v506 = vld [vmem:[%s406 + $0x488] sm:$0xff]
                %507 = vst [vmem:[%s407 + $0x188] sm:$0xff] %v506
                %v508 = vld [vmem:[%s406 + $0x4b0] sm:$0xff]
                %509 = vst [vmem:[%s407 + $0x190] sm:$0xff] %v508
                %v510 = vld [vmem:[%s406 + $0x4b8] sm:$0xff]
                %511 = vst [vmem:[%s407 + $0x198] sm:$0xff] %v510
                %v512 = vld [vmem:[%s406 + $0x4e0] sm:$0xff]
                %513 = vst [vmem:[%s407 + $0x1a0] sm:$0xff] %v512
                %v514 = vld [vmem:[%s406 + $0x4e8] sm:$0xff]
                %515 = vst [vmem:[%s407 + $0x1a8] sm:$0xff] %v514
                %v516 = vld [vmem:[%s406 + $0x510] sm:$0xff]
                %517 = vst [vmem:[%s407 + $0x1b0] sm:$0xff] %v516
                %v518 = vld [vmem:[%s406 + $0x518] sm:$0xff]
                %519 = vst [vmem:[%s407 + $0x1b8] sm:$0xff] %v518
                %v520 = vld [vmem:[%s406 + $0x540] sm:$0xff]
                %521 = vst [vmem:[%s407 + $0x1c0] sm:$0xff] %v520
                %v522 = vld [vmem:[%s406 + $0x548] sm:$0xff]
                %523 = vst [vmem:[%s407 + $0x1c8] sm:$0xff] %v522
                %v524 = vld [vmem:[%s406 + $0x570] sm:$0xff]
                %525 = vst [vmem:[%s407 + $0x1d0] sm:$0xff] %v524
                %v526 = vld [vmem:[%s406 + $0x578] sm:$0xff]
                %527 = vst [vmem:[%s407 + $0x1d8] sm:$0xff] %v526
                %v528 = vld [vmem:[%s406 + $0x5a0] sm:$0xff]
                %529 = vst [vmem:[%s407 + $0x1e0] sm:$0xff] %v528
                %v530 = vld [vmem:[%s406 + $0x5a8] sm:$0xff]
                %531 = vst [vmem:[%s407 + $0x1e8] sm:$0xff] %v530
                %v532 = vld [vmem:[%s406 + $0x5d0] sm:$0xff]
                %533 = vst [vmem:[%s407 + $0x1f0] sm:$0xff] %v532
                %v534 = vld [vmem:[%s406 + $0x5d8] sm:$0xff]
                %535 = vst [vmem:[%s407 + $0x1f8] sm:$0xff] %v534
                %v536 = vld [vmem:[%s406 + $0x600] sm:$0xff]
                %537 = vst [vmem:[%s407 + $0x200] sm:$0xff] %v536
                %v538 = vld [vmem:[%s406 + $0x608] sm:$0xff]
                %539 = vst [vmem:[%s407 + $0x208] sm:$0xff] %v538
                %v540 = vld [vmem:[%s406 + $0x630] sm:$0xff]
                %541 = vst [vmem:[%s407 + $0x210] sm:$0xff] %v540
                %v542 = vld [vmem:[%s406 + $0x638] sm:$0xff]
                %543 = vst [vmem:[%s407 + $0x218] sm:$0xff] %v542
                %v544 = vld [vmem:[%s406 + $0x660] sm:$0xff]
                %545 = vst [vmem:[%s407 + $0x220] sm:$0xff] %v544
                %v546 = vld [vmem:[%s406 + $0x668] sm:$0xff]
                %547 = vst [vmem:[%s407 + $0x228] sm:$0xff] %v546
                %v548 = vld [vmem:[%s406 + $0x690] sm:$0xff]
                %549 = vst [vmem:[%s407 + $0x230] sm:$0xff] %v548
                %v550 = vld [vmem:[%s406 + $0x698] sm:$0xff]
                %551 = vst [vmem:[%s407 + $0x238] sm:$0xff] %v550
                %v552 = vld [vmem:[%s406 + $0x6c0] sm:$0xff]
                %553 = vst [vmem:[%s407 + $0x240] sm:$0xff] %v552
                %v554 = vld [vmem:[%s406 + $0x6c8] sm:$0xff]
                %555 = vst [vmem:[%s407 + $0x248] sm:$0xff] %v554
                %v556 = vld [vmem:[%s406 + $0x6f0] sm:$0xff]
                %557 = vst [vmem:[%s407 + $0x250] sm:$0xff] %v556
                %v558 = vld [vmem:[%s406 + $0x6f8] sm:$0xff]
                %559 = vst [vmem:[%s407 + $0x258] sm:$0xff] %v558
                %v560 = vld [vmem:[%s406 + $0x720] sm:$0xff]
                %561 = vst [vmem:[%s407 + $0x260] sm:$0xff] %v560
                %v562 = vld [vmem:[%s406 + $0x728] sm:$0xff]
                %563 = vst [vmem:[%s407 + $0x268] sm:$0xff] %v562
                %v564 = vld [vmem:[%s406 + $0x750] sm:$0xff]
                %565 = vst [vmem:[%s407 + $0x270] sm:$0xff] %v564
                %v566 = vld [vmem:[%s406 + $0x758] sm:$0xff]
                %567 = vst [vmem:[%s407 + $0x278] sm:$0xff] %v566
                %v568 = vld [vmem:[%s406 + $0x780] sm:$0xff]
                %569 = vst [vmem:[%s407 + $0x280] sm:$0xff] %v568
                %v570 = vld [vmem:[%s406 + $0x788] sm:$0xff]
                %571 = vst [vmem:[%s407 + $0x288] sm:$0xff] %v570
                %v572 = vld [vmem:[%s406 + $0x7b0] sm:$0xff]
                %573 = vst [vmem:[%s407 + $0x290] sm:$0xff] %v572
                %v574 = vld [vmem:[%s406 + $0x7b8] sm:$0xff]
                %575 = vst [vmem:[%s407 + $0x298] sm:$0xff] %v574
                %v576 = vld [vmem:[%s406 + $0x7e0] sm:$0xff]
                %577 = vst [vmem:[%s407 + $0x2a0] sm:$0xff] %v576
                %v578 = vld [vmem:[%s406 + $0x7e8] sm:$0xff]
                %579 = vst [vmem:[%s407 + $0x2a8] sm:$0xff] %v578
                %v580 = vld [vmem:[%s406 + $0x810] sm:$0xff]
                %581 = vst [vmem:[%s407 + $0x2b0] sm:$0xff] %v580
                %v582 = vld [vmem:[%s406 + $0x818] sm:$0xff]
                %583 = vst [vmem:[%s407 + $0x2b8] sm:$0xff] %v582
                %v584 = vld [vmem:[%s406 + $0x840] sm:$0xff]
                %585 = vst [vmem:[%s407 + $0x2c0] sm:$0xff] %v584
                %v586 = vld [vmem:[%s406 + $0x848] sm:$0xff]
                %587 = vst [vmem:[%s407 + $0x2c8] sm:$0xff] %v586
                %v588 = vld [vmem:[%s406 + $0x870] sm:$0xff]
                %589 = vst [vmem:[%s407 + $0x2d0] sm:$0xff] %v588
                %v590 = vld [vmem:[%s406 + $0x878] sm:$0xff]
                %591 = vst [vmem:[%s407 + $0x2d8] sm:$0xff] %v590
                %v592 = vld [vmem:[%s406 + $0x8a0] sm:$0xff]
                %593 = vst [vmem:[%s407 + $0x2e0] sm:$0xff] %v592
                %v594 = vld [vmem:[%s406 + $0x8a8] sm:$0xff]
                %595 = vst [vmem:[%s407 + $0x2e8] sm:$0xff] %v594
                %v596 = vld [vmem:[%s406 + $0x8d0] sm:$0xff]
                %597 = vst [vmem:[%s407 + $0x2f0] sm:$0xff] %v596
                %v598 = vld [vmem:[%s406 + $0x8d8] sm:$0xff]
                %599 = vst [vmem:[%s407 + $0x2f8] sm:$0xff] %v598
                %v600 = vld [vmem:[%s406 + $0x900] sm:$0xff]
                %601 = vst [vmem:[%s407 + $0x300] sm:$0xff] %v600
                %v602 = vld [vmem:[%s406 + $0x908] sm:$0xff]
                %603 = vst [vmem:[%s407 + $0x308] sm:$0xff] %v602
                %v604 = vld [vmem:[%s406 + $0x930] sm:$0xff]
                %605 = vst [vmem:[%s407 + $0x310] sm:$0xff] %v604
                %v606 = vld [vmem:[%s406 + $0x938] sm:$0xff]
                %607 = vst [vmem:[%s407 + $0x318] sm:$0xff] %v606
                %v608 = vld [vmem:[%s406 + $0x960] sm:$0xff]
                %609 = vst [vmem:[%s407 + $0x320] sm:$0xff] %v608
                %v610 = vld [vmem:[%s406 + $0x968] sm:$0xff]
                %611 = vst [vmem:[%s407 + $0x328] sm:$0xff] %v610
                %v612 = vld [vmem:[%s406 + $0x990] sm:$0xff]
                %613 = vst [vmem:[%s407 + $0x330] sm:$0xff] %v612
                %v614 = vld [vmem:[%s406 + $0x998] sm:$0xff]
                %615 = vst [vmem:[%s407 + $0x338] sm:$0xff] %v614
                %v616 = vld [vmem:[%s406 + $0x9c0] sm:$0xff]
                %617 = vst [vmem:[%s407 + $0x340] sm:$0xff] %v616
                %v618 = vld [vmem:[%s406 + $0x9c8] sm:$0xff]
                %619 = vst [vmem:[%s407 + $0x348] sm:$0xff] %v618
                %v620 = vld [vmem:[%s406 + $0x9f0] sm:$0xff]
                %621 = vst [vmem:[%s407 + $0x350] sm:$0xff] %v620
                %v622 = vld [vmem:[%s406 + $0x9f8] sm:$0xff]
                %623 = vst [vmem:[%s407 + $0x358] sm:$0xff] %v622
                %v624 = vld [vmem:[%s406 + $0xa20] sm:$0xff]
                %625 = vst [vmem:[%s407 + $0x360] sm:$0xff] %v624
                %v626 = vld [vmem:[%s406 + $0xa28] sm:$0xff]
                %627 = vst [vmem:[%s407 + $0x368] sm:$0xff] %v626
                %v628 = vld [vmem:[%s406 + $0xa50] sm:$0xff]
                %629 = vst [vmem:[%s407 + $0x370] sm:$0xff] %v628
                %v630 = vld [vmem:[%s406 + $0xa58] sm:$0xff]
                %631 = vst [vmem:[%s407 + $0x378] sm:$0xff] %v630
                %v632 = vld [vmem:[%s406 + $0xa80] sm:$0xff]
                %633 = vst [vmem:[%s407 + $0x380] sm:$0xff] %v632
                %v634 = vld [vmem:[%s406 + $0xa88] sm:$0xff]
                %635 = vst [vmem:[%s407 + $0x388] sm:$0xff] %v634
                %v636 = vld [vmem:[%s406 + $0xab0] sm:$0xff]
                %637 = vst [vmem:[%s407 + $0x390] sm:$0xff] %v636
                %v638 = vld [vmem:[%s406 + $0xab8] sm:$0xff]
                %639 = vst [vmem:[%s407 + $0x398] sm:$0xff] %v638
                %v640 = vld [vmem:[%s406 + $0xae0] sm:$0xff]
                %641 = vst [vmem:[%s407 + $0x3a0] sm:$0xff] %v640
                %v642 = vld [vmem:[%s406 + $0xae8] sm:$0xff]
                %643 = vst [vmem:[%s407 + $0x3a8] sm:$0xff] %v642
                %v644 = vld [vmem:[%s406 + $0xb10] sm:$0xff]
                %645 = vst [vmem:[%s407 + $0x3b0] sm:$0xff] %v644
                %v646 = vld [vmem:[%s406 + $0xb18] sm:$0xff]
                %647 = vst [vmem:[%s407 + $0x3b8] sm:$0xff] %v646
                %v648 = vld [vmem:[%s406 + $0xb40] sm:$0xff]
                %649 = vst [vmem:[%s407 + $0x3c0] sm:$0xff] %v648
                %v650 = vld [vmem:[%s406 + $0xb48] sm:$0xff]
                %651 = vst [vmem:[%s407 + $0x3c8] sm:$0xff] %v650
                %v652 = vld [vmem:[%s406 + $0xb70] sm:$0xff]
                %653 = vst [vmem:[%s407 + $0x3d0] sm:$0xff] %v652
                %v654 = vld [vmem:[%s406 + $0xb78] sm:$0xff]
                %655 = vst [vmem:[%s407 + $0x3d8] sm:$0xff] %v654
                %v656 = vld [vmem:[%s406 + $0xba0] sm:$0xff]
                %657 = vst [vmem:[%s407 + $0x3e0] sm:$0xff] %v656
                %v658 = vld [vmem:[%s406 + $0xba8] sm:$0xff]
                %659 = vst [vmem:[%s407 + $0x3e8] sm:$0xff] %v658
                %v660 = vld [vmem:[%s406 + $0xbd0] sm:$0xff]
                %661 = vst [vmem:[%s407 + $0x3f0] sm:$0xff] %v660
                %v662 = vld [vmem:[%s406 + $0xbd8] sm:$0xff]
                %663 = vst [vmem:[%s407 + $0x3f8] sm:$0xff] %v662
              $region81: #{tpu_custom_call.1} parent=75 // loop_footer
                %s405 = sadd.s32 1, %s401
              $region82: #{tpu_custom_call.1} parent=75 // loop_footer_branch
                %400 = sbr.rel target = $region78
              $region83: #{tpu_custom_call.1} parent=75 // loop_exit
                _
            $region76: #{tpu_custom_call.1} parent=67 // pred_fallthru
              _
          $region68: #{tpu_custom_call.1} parent=63 // pred_fallthru
            _
          %932 = vnop
        $region64: #{tpu_custom_call.1} parent=59 // pred_fallthru
          _
        // Predicated region
        $region99: #{tpu_custom_call.1} parent=59 // pred_check
          %p933 = pneg %p68
        $region100: #{tpu_custom_call.1} parent=59 // pred_check_branch
          %935 = sbr.rel (%p933) target = $region102
        $region101: #{tpu_custom_call.1} parent=59 // pred_region
          %s936 = smul.u32 2, %s22
          %p937 = scmp.lt.s32.totalorder %s936, 5
          %s938 = scalar_select %p937, %s936, 5
          %s939 = smul.addr %s938, 8
          %s940 = scalar_lea.vmem %s1, %s939
          %s941 = smul.u32 2, %s22
        $region102: #{tpu_custom_call.1} parent=59 // pred_fallthru
          _
      $region60: #{tpu_custom_call.1} parent=5 // pred_fallthru
        _
      %p942 = scmp.le.s32.totalorder 1, %s22
      %p943 = scmp.lt.s32.totalorder %s22, 4
      %p944 = pnand %p942, %p943
      %p945 = pneg %p944
      // Predicated region
      $region103: #{tpu_custom_call.1} parent=5 // pred_check
        _
      $region104: #{tpu_custom_call.1} parent=5 // pred_check_branch
        %947 = sbr.rel (%p944) target = $region106
      $region105: #{tpu_custom_call.1} parent=5 // pred_region
        %s948 = ssub.s32 %s22, 1
        %s949 = sand.u32 %s35, 1
        %s950 = sand.u32 %s35, 1
        %s951 = smul.addr %s950, 1024
        %s952 = scalar_lea.vmem [#allocation2], %s951
        // Predicated region
        $region107: #{tpu_custom_call.1} parent=105 // pred_check
          %p953 = pneg %p48
        $region108: #{tpu_custom_call.1} parent=105 // pred_check_branch
          %955 = sbr.rel (%p953) target = $region110
        $region109: #{tpu_custom_call.1} parent=105 // pred_region
          _
        $region110: #{tpu_custom_call.1} parent=105 // pred_fallthru
          _
        %s956 = sand.u32 %s35, 1
        %s957 = sand.u32 %s35, 1
        %s958 = smul.addr %s957, 1024
        %s959 = scalar_lea.vmem [#allocation2], %s958
        %p960 = pneg %p48
        %p961 = pneg %p45
        %s962 = smul.u32 2, %s27
        %p963 = scmp.lt.s32.totalorder %s962, 5
        %s964 = scalar_select %p963, %s962, 5
        %s965 = smul.addr %s964, 8
        %s966 = scalar_lea.vmem %s1, %s965
        %p967 = pneg %p74
        %p968 = pneg %p71
        %p969 = pneg %p95
        %p970 = pneg %p92
        %p971 = pneg %p116
        %p972 = pneg %p113
        %p973 = pneg %p137
        %p974 = pneg %p134
        %p975 = pneg %p158
        %p976 = pneg %p155
        %p977 = pneg %p179
        %p978 = pneg %p176
        %p979 = pneg %p200
        %p980 = pneg %p197
        %p981 = pneg %p221
        %p982 = pneg %p218
        %p983 = pneg %p242
        %p984 = pneg %p239
        %p985 = pneg %p263
        %p986 = pneg %p260
        %p987 = pneg %p284
        %p988 = pneg %p281
        %p989 = pneg %p305
        %p990 = pneg %p302
        %p991 = pneg %p331
        %p992 = pneg %p328
        %s993 = sand.u32 %s318, 1
        %s994 = scalar_lea.sflag [#allocation4], %s993
        %s995 = sand.u32 %s318, 1
        %s996 = smul.addr %s995, 16
        %s997 = scalar_lea.vmem [#allocation3], %s996
        %s998 = smul.u32 2, %s27
        %s999 = smul.u32 2, %s27
        %p1000 = scmp.lt.s32.totalorder %s999, 5
        %s1001 = scalar_select %p1000, %s999, 5
        %s1002 = smul.addr %s1001, 8
        %s1003 = scalar_lea.vmem %s1, %s1002
        %s1004 = smul.u32 2, %s27
        %s1005 = smul.u32 2, %s27
        %v1006 = vld [vmem:[%s952] sm:$0xff]
        %v1007 = vld [vmem:[%s952 + $0x8] sm:$0xff]
        %v1008 = vld [vmem:[%s952 + $0x10] sm:$0xff]
        %v1009 = vld [vmem:[%s952 + $0x18] sm:$0xff]
        %v1010 = vld [vmem:[%s952 + $0x20] sm:$0xff]
        %v1011 = vld [vmem:[%s952 + $0x28] sm:$0xff]
        %v1012 = vld [vmem:[%s952 + $0x30] sm:$0xff]
        %v1013 = vld [vmem:[%s952 + $0x38] sm:$0xff]
        %v1014 = vld [vmem:[%s952 + $0x40] sm:$0xff]
        %v1015 = vld [vmem:[%s952 + $0x48] sm:$0xff]
        %v1016 = vld [vmem:[%s952 + $0x50] sm:$0xff]
        %v1017 = vld [vmem:[%s952 + $0x58] sm:$0xff]
        %v1018 = vld [vmem:[%s952 + $0x60] sm:$0xff]
        %v1019 = vld [vmem:[%s952 + $0x68] sm:$0xff]
        %v1020 = vld [vmem:[%s952 + $0x70] sm:$0xff]
        %v1021 = vld [vmem:[%s952 + $0x78] sm:$0xff]
        %v1022 = vld [vmem:[%s952 + $0x80] sm:$0xff]
        %v1023 = vld [vmem:[%s952 + $0x88] sm:$0xff]
        %v1024 = vld [vmem:[%s952 + $0x90] sm:$0xff]
        %v1025 = vld [vmem:[%s952 + $0x98] sm:$0xff]
        %v1026 = vld [vmem:[%s952 + $0xa0] sm:$0xff]
        %v1027 = vld [vmem:[%s952 + $0xa8] sm:$0xff]
        %v1028 = vld [vmem:[%s952 + $0xb0] sm:$0xff]
        %v1029 = vld [vmem:[%s952 + $0xb8] sm:$0xff]
        %v1030 = vld [vmem:[%s952 + $0xc0] sm:$0xff]
        %v1031 = vld [vmem:[%s952 + $0xc8] sm:$0xff]
        %v1032 = vld [vmem:[%s952 + $0xd0] sm:$0xff]
        %v1033 = vld [vmem:[%s952 + $0xd8] sm:$0xff]
        %v1034 = vld [vmem:[%s952 + $0xe0] sm:$0xff]
        %v1035 = vld [vmem:[%s952 + $0xe8] sm:$0xff]
        %v1036 = vld [vmem:[%s952 + $0xf0] sm:$0xff]
        %v1037 = vld [vmem:[%s952 + $0xf8] sm:$0xff]
        %v1038 = vld [vmem:[%s952 + $0x100] sm:$0xff]
        %v1039 = vld [vmem:[%s952 + $0x108] sm:$0xff]
        %v1040 = vld [vmem:[%s952 + $0x110] sm:$0xff]
        %v1041 = vld [vmem:[%s952 + $0x118] sm:$0xff]
        %v1042 = vld [vmem:[%s952 + $0x120] sm:$0xff]
        %v1043 = vld [vmem:[%s952 + $0x128] sm:$0xff]
        %v1044 = vld [vmem:[%s952 + $0x130] sm:$0xff]
        %v1045 = vld [vmem:[%s952 + $0x138] sm:$0xff]
        %v1046 = vld [vmem:[%s952 + $0x140] sm:$0xff]
        %v1047 = vld [vmem:[%s952 + $0x148] sm:$0xff]
        %v1048 = vld [vmem:[%s952 + $0x150] sm:$0xff]
        %v1049 = vld [vmem:[%s952 + $0x158] sm:$0xff]
        %v1050 = vld [vmem:[%s952 + $0x160] sm:$0xff]
        %v1051 = vld [vmem:[%s952 + $0x168] sm:$0xff]
        %v1052 = vld [vmem:[%s952 + $0x170] sm:$0xff]
        %v1053 = vld [vmem:[%s952 + $0x178] sm:$0xff]
        %v1054 = vld [vmem:[%s952 + $0x180] sm:$0xff]
        %v1055 = vld [vmem:[%s952 + $0x188] sm:$0xff]
        %v1056 = vld [vmem:[%s952 + $0x190] sm:$0xff]
        %v1057 = vld [vmem:[%s952 + $0x198] sm:$0xff]
        %v1058 = vld [vmem:[%s952 + $0x1a0] sm:$0xff]
        %v1059 = vld [vmem:[%s952 + $0x1a8] sm:$0xff]
        %v1060 = vld [vmem:[%s952 + $0x1b0] sm:$0xff]
        %v1061 = vld [vmem:[%s952 + $0x1b8] sm:$0xff]
        %v1062 = vld [vmem:[%s952 + $0x1c0] sm:$0xff]
        %v1063 = vld [vmem:[%s952 + $0x1c8] sm:$0xff]
        %v1064 = vld [vmem:[%s952 + $0x1d0] sm:$0xff]
        %v1065 = vld [vmem:[%s952 + $0x1d8] sm:$0xff]
        %v1066 = vld [vmem:[%s952 + $0x1e0] sm:$0xff]
        %v1067 = vld [vmem:[%s952 + $0x1e8] sm:$0xff]
        %v1068 = vld [vmem:[%s952 + $0x1f0] sm:$0xff]
        %v1069 = vld [vmem:[%s952 + $0x1f8] sm:$0xff]
        %v1070 = vld [vmem:[%s952 + $0x200] sm:$0xff]
        %v1071 = vld [vmem:[%s952 + $0x208] sm:$0xff]
        %v1072 = vld [vmem:[%s952 + $0x210] sm:$0xff]
        %v1073 = vld [vmem:[%s952 + $0x218] sm:$0xff]
        %v1074 = vld [vmem:[%s952 + $0x220] sm:$0xff]
        %v1075 = vld [vmem:[%s952 + $0x228] sm:$0xff]
        %v1076 = vld [vmem:[%s952 + $0x230] sm:$0xff]
        %v1077 = vld [vmem:[%s952 + $0x238] sm:$0xff]
        %v1078 = vld [vmem:[%s952 + $0x240] sm:$0xff]
        %v1079 = vld [vmem:[%s952 + $0x248] sm:$0xff]
        %v1080 = vld [vmem:[%s952 + $0x250] sm:$0xff]
        %v1081 = vld [vmem:[%s952 + $0x258] sm:$0xff]
        %v1082 = vld [vmem:[%s952 + $0x260] sm:$0xff]
        %v1083 = vld [vmem:[%s952 + $0x268] sm:$0xff]
        %v1084 = vld [vmem:[%s952 + $0x270] sm:$0xff]
        %v1085 = vld [vmem:[%s952 + $0x278] sm:$0xff]
        %v1086 = vld [vmem:[%s952 + $0x280] sm:$0xff]
        %v1087 = vld [vmem:[%s952 + $0x288] sm:$0xff]
        %v1088 = vld [vmem:[%s952 + $0x290] sm:$0xff]
        %v1089 = vld [vmem:[%s952 + $0x298] sm:$0xff]
        %v1090 = vld [vmem:[%s952 + $0x2a0] sm:$0xff]
        %v1091 = vld [vmem:[%s952 + $0x2a8] sm:$0xff]
        %v1092 = vld [vmem:[%s952 + $0x2b0] sm:$0xff]
        %v1093 = vld [vmem:[%s952 + $0x2b8] sm:$0xff]
        %v1094 = vld [vmem:[%s952 + $0x2c0] sm:$0xff]
        %v1095 = vld [vmem:[%s952 + $0x2c8] sm:$0xff]
        %v1096 = vld [vmem:[%s952 + $0x2d0] sm:$0xff]
        %v1097 = vld [vmem:[%s952 + $0x2d8] sm:$0xff]
        %v1098 = vld [vmem:[%s952 + $0x2e0] sm:$0xff]
        %v1099 = vld [vmem:[%s952 + $0x2e8] sm:$0xff]
        %v1100 = vld [vmem:[%s952 + $0x2f0] sm:$0xff]
        %v1101 = vld [vmem:[%s952 + $0x2f8] sm:$0xff]
        %v1102 = vld [vmem:[%s952 + $0x300] sm:$0xff]
        %v1103 = vld [vmem:[%s952 + $0x308] sm:$0xff]
        %v1104 = vld [vmem:[%s952 + $0x310] sm:$0xff]
        %v1105 = vld [vmem:[%s952 + $0x318] sm:$0xff]
        %v1106 = vld [vmem:[%s952 + $0x320] sm:$0xff]
        %v1107 = vld [vmem:[%s952 + $0x328] sm:$0xff]
        %v1108 = vld [vmem:[%s952 + $0x330] sm:$0xff]
        %v1109 = vld [vmem:[%s952 + $0x338] sm:$0xff]
        %v1110 = vld [vmem:[%s952 + $0x340] sm:$0xff]
        %v1111 = vld [vmem:[%s952 + $0x348] sm:$0xff]
        %v1112 = vld [vmem:[%s952 + $0x350] sm:$0xff]
        %v1113 = vld [vmem:[%s952 + $0x358] sm:$0xff]
        %v1114 = vld [vmem:[%s952 + $0x360] sm:$0xff]
        %v1115 = vld [vmem:[%s952 + $0x368] sm:$0xff]
        %v1116 = vld [vmem:[%s952 + $0x370] sm:$0xff]
        %v1117 = vld [vmem:[%s952 + $0x378] sm:$0xff]
        %v1118 = vld [vmem:[%s952 + $0x380] sm:$0xff]
        %v1119 = vld [vmem:[%s952 + $0x388] sm:$0xff]
        %v1120 = vld [vmem:[%s952 + $0x390] sm:$0xff]
        %v1121 = vld [vmem:[%s952 + $0x398] sm:$0xff]
        %v1122 = vld [vmem:[%s952 + $0x3a0] sm:$0xff]
        %v1123 = vld [vmem:[%s952 + $0x3a8] sm:$0xff]
        %v1124 = vld [vmem:[%s952 + $0x3b0] sm:$0xff]
        %v1125 = vld [vmem:[%s952 + $0x3b8] sm:$0xff]
        %v1126 = vld [vmem:[%s952 + $0x3c0] sm:$0xff]
        %v1127 = vld [vmem:[%s952 + $0x3c8] sm:$0xff]
        %v1128 = vld [vmem:[%s952 + $0x3d0] sm:$0xff]
        %v1129 = vld [vmem:[%s952 + $0x3d8] sm:$0xff]
        %v1130 = vld [vmem:[%s952 + $0x3e0] sm:$0xff]
        %v1131 = vld [vmem:[%s952 + $0x3e8] sm:$0xff]
        %v1132 = vld [vmem:[%s952 + $0x3f0] sm:$0xff]
        %v1133 = vld [vmem:[%s952 + $0x3f8] sm:$0xff]
        %v1134 = vld [vmem:[%s2] sm:$0x7f]
        %s1135 = scalar_lea.vmem %s2, 8
        %v1136 = vld [vmem:[%s1135] sm:$0x7f]
        %vm1137 = vcmask 56320
        %v1139 = vsel %vm1137, %v1008, 0
        %v1142 = vsel %vm1137, %v1009, 0
        %v1145 = vsel %vm1137, %v1010, 0
        %v1148 = vsel %vm1137, %v1011, 0
        %v1151 = vsel %vm1137, %v1012, 0
        %v1154 = vsel %vm1137, %v1013, 0
        %v1157 = vsel %vm1137, %v1014, 0
        %v1160 = vsel %vm1137, %v1015, 0
        %v1163 = vsel %vm1137, %v1016, 0
        %v1166 = vsel %vm1137, %v1017, 0
        %v1169 = vsel %vm1137, %v1018, 0
        %v1172 = vsel %vm1137, %v1019, 0
        %v1175 = vsel %vm1137, %v1020, 0
        %v1178 = vsel %vm1137, %v1021, 0
        %v1181 = vsel %vm1137, %v1024, 0
        %v1184 = vsel %vm1137, %v1025, 0
        %v1187 = vsel %vm1137, %v1026, 0
        %v1190 = vsel %vm1137, %v1027, 0
        %v1193 = vsel %vm1137, %v1028, 0
        %v1196 = vsel %vm1137, %v1029, 0
        %v1199 = vsel %vm1137, %v1030, 0
        %v1202 = vsel %vm1137, %v1031, 0
        %v1205 = vsel %vm1137, %v1032, 0
        %v1208 = vsel %vm1137, %v1033, 0
        %v1211 = vsel %vm1137, %v1034, 0
        %v1214 = vsel %vm1137, %v1035, 0
        %v1217 = vsel %vm1137, %v1036, 0
        %v1220 = vsel %vm1137, %v1037, 0
        %v1223 = vsel %vm1137, %v1040, 0
        %v1226 = vsel %vm1137, %v1041, 0
        %v1229 = vsel %vm1137, %v1042, 0
        %v1232 = vsel %vm1137, %v1043, 0
        %v1235 = vsel %vm1137, %v1044, 0
        %v1238 = vsel %vm1137, %v1045, 0
        %v1241 = vsel %vm1137, %v1046, 0
        %v1244 = vsel %vm1137, %v1047, 0
        %v1247 = vsel %vm1137, %v1048, 0
        %v1250 = vsel %vm1137, %v1049, 0
        %v1253 = vsel %vm1137, %v1050, 0
        %v1256 = vsel %vm1137, %v1051, 0
        %v1259 = vsel %vm1137, %v1052, 0
        %v1262 = vsel %vm1137, %v1053, 0
        %v1265 = vsel %vm1137, %v1056, 0
        %v1268 = vsel %vm1137, %v1057, 0
        %v1271 = vsel %vm1137, %v1058, 0
        %v1274 = vsel %vm1137, %v1059, 0
        %v1277 = vsel %vm1137, %v1060, 0
        %v1280 = vsel %vm1137, %v1061, 0
        %v1283 = vsel %vm1137, %v1062, 0
        %v1286 = vsel %vm1137, %v1063, 0
        %v1289 = vsel %vm1137, %v1064, 0
        %v1292 = vsel %vm1137, %v1065, 0
        %v1295 = vsel %vm1137, %v1066, 0
        %v1298 = vsel %vm1137, %v1067, 0
        %v1301 = vsel %vm1137, %v1068, 0
        %v1304 = vsel %vm1137, %v1069, 0
        %v1307 = vsel %vm1137, %v1072, 0
        %v1310 = vsel %vm1137, %v1073, 0
        %v1313 = vsel %vm1137, %v1074, 0
        %v1316 = vsel %vm1137, %v1075, 0
        %v1319 = vsel %vm1137, %v1076, 0
        %v1322 = vsel %vm1137, %v1077, 0
        %v1325 = vsel %vm1137, %v1078, 0
        %v1328 = vsel %vm1137, %v1079, 0
        %v1331 = vsel %vm1137, %v1080, 0
        %v1334 = vsel %vm1137, %v1081, 0
        %v1337 = vsel %vm1137, %v1082, 0
        %v1340 = vsel %vm1137, %v1083, 0
        %v1343 = vsel %vm1137, %v1084, 0
        %v1346 = vsel %vm1137, %v1085, 0
        %v1349 = vsel %vm1137, %v1088, 0
        %v1352 = vsel %vm1137, %v1089, 0
        %v1355 = vsel %vm1137, %v1090, 0
        %v1358 = vsel %vm1137, %v1091, 0
        %v1361 = vsel %vm1137, %v1092, 0
        %v1364 = vsel %vm1137, %v1093, 0
        %v1367 = vsel %vm1137, %v1094, 0
        %v1370 = vsel %vm1137, %v1095, 0
        %v1373 = vsel %vm1137, %v1096, 0
        %v1376 = vsel %vm1137, %v1097, 0
        %v1379 = vsel %vm1137, %v1098, 0
        %v1382 = vsel %vm1137, %v1099, 0
        %v1385 = vsel %vm1137, %v1100, 0
        %v1388 = vsel %vm1137, %v1101, 0
        %v1391 = vsel %vm1137, %v1104, 0
        %v1394 = vsel %vm1137, %v1105, 0
        %v1397 = vsel %vm1137, %v1106, 0
        %v1400 = vsel %vm1137, %v1107, 0
        %v1403 = vsel %vm1137, %v1108, 0
        %v1406 = vsel %vm1137, %v1109, 0
        %v1409 = vsel %vm1137, %v1110, 0
        %v1412 = vsel %vm1137, %v1111, 0
        %v1415 = vsel %vm1137, %v1112, 0
        %v1418 = vsel %vm1137, %v1113, 0
        %v1421 = vsel %vm1137, %v1114, 0
        %v1424 = vsel %vm1137, %v1115, 0
        %v1427 = vsel %vm1137, %v1116, 0
        %v1430 = vsel %vm1137, %v1117, 0
        %vm1432 = vcmask 1046528
        %v1434 = vsel %vm1432, %v1136, 0
        %1436 = vmatprep.subr.mxu0 0.0
        %1437 = vmatpush1.msra.mxu0 %v1434
        %1438 = vmatprep.subr.mxu0 0.0
        %1439 = vmatpush1.msra.mxu0 0.0
        %1440 = vmatprep.subr.mxu0 0.0
        %1441 = vmatpush1.msra.mxu0 0.0
        %1442 = vmatprep.subr.mxu0 0.0
        %1443 = vmatpush1.msra.mxu0 0.0
        %1444 = vmatprep.subr.mxu0 0.0
        %1445 = vmatpush1.msra.mxu0 0.0
        %1446 = vmatprep.subr.mxu0 0.0
        %1447 = vmatpush1.msra.mxu0 0.0
        %1448 = vmatprep.subr.mxu0 0.0
        %1449 = vmatpush1.msra.mxu0 0.0
        %1450 = vmatprep.subr.mxu0 0.0
        %1451 = vmatpush1.msra.mxu0 0.0
        %1452 = vmatprep.subr.mxu0 0.0
        %1453 = vmatpush1.msra.mxu0 0.0
        %1454 = vmatprep.subr.mxu0 0.0
        %1455 = vmatpush1.msra.mxu0 0.0
        %1456 = vmatprep.subr.mxu0 0.0
        %1457 = vmatpush1.msra.mxu0 0.0
        %1458 = vmatprep.subr.mxu0 0.0
        %1459 = vmatpush1.msra.mxu0 0.0
        %1460 = vmatprep.subr.mxu0 0.0
        %1461 = vmatpush1.msra.mxu0 0.0
        %1462 = vmatprep.subr.mxu0 0.0
        %1463 = vmatpush1.msra.mxu0 0.0
        %1464 = vmatprep.subr.mxu0 0.0
        %1465 = vmatpush1.msra.mxu0 0.0
        %1466 = vmatprep.subr.mxu0 0.0
        %1467 = vmatpush1.msra.mxu0 0.0
        %1468 = vmatprep.subr.mxu0 0.0
        %1469 = vmatpush1.msra.mxu0 0.0
        %1470 = vmatprep.subr.mxu0 0.0
        %1471 = vmatpush1.msra.mxu0 0.0
        %1472 = vmatprep.subr.mxu0 0.0
        %1473 = vmatpush1.msra.mxu0 0.0
        %1474 = vmatprep.subr.mxu0 0.0
        %1475 = vmatpush1.msra.mxu0 0.0
        %1476 = vmatprep.subr.mxu0 0.0
        %1477 = vmatpush1.msra.mxu0 0.0
        %1478 = vmatprep.subr.mxu0 0.0
        %1479 = vmatpush1.msra.mxu0 0.0
        %1480 = vmatprep.subr.mxu0 0.0
        %1481 = vmatpush1.msra.mxu0 0.0
        %1482 = vmatprep.subr.mxu0 0.0
        %1483 = vmatpush1.msra.mxu0 0.0
        %1484 = vmatprep.subr.mxu0 0.0
        %1485 = vmatpush1.msra.mxu0 0.0
        %1486 = vmatprep.subr.mxu0 0.0
        %1487 = vmatpush1.msra.mxu0 0.0
        %1488 = vmatprep.subr.mxu0 0.0
        %1489 = vmatpush1.msra.mxu0 0.0
        %1490 = vmatprep.subr.mxu0 0.0
        %1491 = vmatpush1.msra.mxu0 0.0
        %1492 = vmatprep.subr.mxu0 0.0
        %1493 = vmatpush1.msra.mxu0 0.0
        %1494 = vmatprep.subr.mxu0 0.0
        %1495 = vmatpush1.msra.mxu0 0.0
        %1496 = vmatprep.subr.mxu0 0.0
        %1497 = vmatpush1.msra.mxu0 0.0
        %1498 = vmatprep.subr.mxu0 0.0
        %1499 = vmatpush1.msra.mxu0 0.0
        %1500 = vmatprep.mubr.f32.mxu0 0.0
        %1501 = vmatmul.mubr.f32.gmra.mrb[0].mxu0 %v1139
        %v1502 = vpop.f32.mrb[0].mxu0
        %v1503 = vadd.f32 0.0, %v1502
        %v1504 = vpop.f32.mrb[0].mxu0
        %1505 = vmatprep.mubr.f32.mxu0 0.0
        %1506 = vmatmul.mubr.f32.gmra.mrb[0].mxu0 %v1142
        %v1507 = vpop.f32.mrb[0].mxu0
        %v1508 = vadd.f32 0.0, %v1507
        %v1509 = vpop.f32.mrb[0].mxu0
        %1510 = vmatprep.mubr.f32.mxu0 0.0
        %1511 = vmatmul.mubr.f32.gmra.mrb[0].mxu0 %v1145
        %v1512 = vpop.f32.mrb[0].mxu0
        %v1513 = vadd.f32 0.0, %v1512
        %v1514 = vpop.f32.mrb[0].mxu0
        %1515 = vmatprep.mubr.f32.mxu0 0.0
        %1516 = vmatmul.mubr.f32.gmra.mrb[0].mxu0 %v1148
        %v1517 = vpop.f32.mrb[0].mxu0
        %v1518 = vadd.f32 0.0, %v1517
        %v1519 = vpop.f32.mrb[0].mxu0
        %1520 = vmatprep.mubr.f32.mxu0 0.0
        %1521 = vmatmul.mubr.f32.gmra.mrb[0].mxu0 %v1151
        %v1522 = vpop.f32.mrb[0].mxu0
        %v1523 = vadd.f32 0.0, %v1522
        %v1524 = vpop.f32.mrb[0].mxu0
        %1525 = vmatprep.mubr.f32.mxu0 0.0
        %1526 = vmatmul.mubr.f32.gmra.mrb[0].mxu0 %v1154
        %v1527 = vpop.f32.mrb[0].mxu0
        %v1528 = vadd.f32 0.0, %v1527
        %v1529 = vpop.f32.mrb[0].mxu0
        %1530 = vmatprep.mubr.f32.mxu0 0.0
        %1531 = vmatmul.mubr.f32.gmra.mrb[0].mxu0 %v1157
        %v1532 = vpop.f32.mrb[0].mxu0
        %v1533 = vadd.f32 0.0, %v1532
        %v1534 = vpop.f32.mrb[0].mxu0
        %1535 = vmatprep.mubr.f32.mxu0 0.0
        %1536 = vmatmul.mubr.f32.gmra.mrb[0].mxu0 %v1160
        %v1537 = vpop.f32.mrb[0].mxu0
        %v1538 = vadd.f32 0.0, %v1537
        %v1539 = vpop.f32.mrb[0].mxu0
        %1540 = vmatprep.mubr.f32.mxu0 0.0
        %1541 = vmatmul.mubr.f32.gmra.mrb[0].mxu0 %v1163
        %v1542 = vpop.f32.mrb[0].mxu0
        %v1543 = vadd.f32 0.0, %v1542
        %v1544 = vpop.f32.mrb[0].mxu0
        %1545 = vmatprep.mubr.f32.mxu0 0.0
        %1546 = vmatmul.mubr.f32.gmra.mrb[0].mxu0 %v1166
        %v1547 = vpop.f32.mrb[0].mxu0
        %v1548 = vadd.f32 0.0, %v1547
        %v1549 = vpop.f32.mrb[0].mxu0
        %1550 = vmatprep.mubr.f32.mxu0 0.0
        %1551 = vmatmul.mubr.f32.gmra.mrb[0].mxu0 %v1169
        %v1552 = vpop.f32.mrb[0].mxu0
        %v1553 = vadd.f32 0.0, %v1552
        %v1554 = vpop.f32.mrb[0].mxu0
        %1555 = vmatprep.mubr.f32.mxu0 0.0
        %1556 = vmatmul.mubr.f32.gmra.mrb[0].mxu0 %v1172
        %v1557 = vpop.f32.mrb[0].mxu0
        %v1558 = vadd.f32 0.0, %v1557
        %v1559 = vpop.f32.mrb[0].mxu0
        %1560 = vmatprep.mubr.f32.mxu0 0.0
        %1561 = vmatmul.mubr.f32.gmra.mrb[0].mxu0 %v1175
        %v1562 = vpop.f32.mrb[0].mxu0
        %v1563 = vpop.f32.mrb[0].mxu0
        %1564 = vmatprep.mubr.f32.mxu0 0.0
        %1565 = vmatmul.mubr.f32.gmra.mrb[0].mxu0 %v1178
        %v1566 = vpop.f32.mrb[0].mxu0
        %v1567 = vpop.f32.mrb[0].mxu0
        %1568 = vmatprep.mubr.f32.mxu0 0.0
        %1569 = vmatmul.mubr.f32.gmra.mrb[0].mxu0 %v1181
        %v1570 = vpop.f32.mrb[0].mxu0
        %v1571 = vadd.f32 0.0, %v1570
        %v1572 = vpop.f32.mrb[0].mxu0
        %1573 = vmatprep.mubr.f32.mxu0 0.0
        %1574 = vmatmul.mubr.f32.gmra.mrb[0].mxu0 %v1184
        %v1575 = vpop.f32.mrb[0].mxu0
        %v1576 = vadd.f32 0.0, %v1575
        %v1577 = vpop.f32.mrb[0].mxu0
        %1578 = vmatprep.mubr.f32.mxu0 0.0
        %1579 = vmatmul.mubr.f32.gmra.mrb[0].mxu0 %v1187
        %v1580 = vpop.f32.mrb[0].mxu0
        %v1581 = vadd.f32 0.0, %v1580
        %v1582 = vpop.f32.mrb[0].mxu0
        %1583 = vmatprep.mubr.f32.mxu0 0.0
        %1584 = vmatmul.mubr.f32.gmra.mrb[0].mxu0 %v1190
        %v1585 = vpop.f32.mrb[0].mxu0
        %v1586 = vadd.f32 0.0, %v1585
        %v1587 = vpop.f32.mrb[0].mxu0
        %1588 = vmatprep.mubr.f32.mxu0 0.0
        %1589 = vmatmul.mubr.f32.gmra.mrb[0].mxu0 %v1193
        %v1590 = vpop.f32.mrb[0].mxu0
        %v1591 = vadd.f32 0.0, %v1590
        %v1592 = vpop.f32.mrb[0].mxu0
        %1593 = vmatprep.mubr.f32.mxu0 0.0
        %1594 = vmatmul.mubr.f32.gmra.mrb[0].mxu0 %v1196
        %v1595 = vpop.f32.mrb[0].mxu0
        %v1596 = vadd.f32 0.0, %v1595
        %v1597 = vpop.f32.mrb[0].mxu0
        %1598 = vmatprep.mubr.f32.mxu0 0.0
        %1599 = vmatmul.mubr.f32.gmra.mrb[0].mxu0 %v1199
        %v1600 = vpop.f32.mrb[0].mxu0
        %v1601 = vadd.f32 0.0, %v1600
        %v1602 = vpop.f32.mrb[0].mxu0
        %1603 = vmatprep.mubr.f32.mxu0 0.0
        %1604 = vmatmul.mubr.f32.gmra.mrb[0].mxu0 %v1202
        %v1605 = vpop.f32.mrb[0].mxu0
        %v1606 = vadd.f32 0.0, %v1605
        %v1607 = vpop.f32.mrb[0].mxu0
        %1608 = vmatprep.mubr.f32.mxu0 0.0
        %1609 = vmatmul.mubr.f32.gmra.mrb[0].mxu0 %v1205
        %v1610 = vpop.f32.mrb[0].mxu0
        %v1611 = vadd.f32 0.0, %v1610
        %v1612 = vpop.f32.mrb[0].mxu0
        %1613 = vmatprep.mubr.f32.mxu0 0.0
        %1614 = vmatmul.mubr.f32.gmra.mrb[0].mxu0 %v1208
        %v1615 = vpop.f32.mrb[0].mxu0
        %v1616 = vadd.f32 0.0, %v1615
        %v1617 = vpop.f32.mrb[0].mxu0
        %1618 = vmatprep.mubr.f32.mxu0 0.0
        %1619 = vmatmul.mubr.f32.gmra.mrb[0].mxu0 %v1211
        %v1620 = vpop.f32.mrb[0].mxu0
        %v1621 = vadd.f32 0.0, %v1620
        %v1622 = vpop.f32.mrb[0].mxu0
        %1623 = vmatprep.mubr.f32.mxu0 0.0
        %1624 = vmatmul.mubr.f32.gmra.mrb[0].mxu0 %v1214
        %v1625 = vpop.f32.mrb[0].mxu0
        %v1626 = vadd.f32 0.0, %v1625
        %v1627 = vpop.f32.mrb[0].mxu0
        %1628 = vmatprep.mubr.f32.mxu0 0.0
        %1629 = vmatmul.mubr.f32.gmra.mrb[0].mxu0 %v1217
        %v1630 = vpop.f32.mrb[0].mxu0
        %v1631 = vpop.f32.mrb[0].mxu0
        %1632 = vmatprep.mubr.f32.mxu0 0.0
        %1633 = vmatmul.mubr.f32.gmra.mrb[0].mxu0 %v1220
        %v1634 = vpop.f32.mrb[0].mxu0
        %v1635 = vpop.f32.mrb[0].mxu0
        %1636 = vmatprep.mubr.f32.mxu0 0.0
        %1637 = vmatmul.mubr.f32.gmra.mrb[0].mxu0 %v1223
        %v1638 = vpop.f32.mrb[0].mxu0
        %v1639 = vadd.f32 0.0, %v1638
        %v1640 = vpop.f32.mrb[0].mxu0
        %1641 = vmatprep.mubr.f32.mxu0 0.0
        %1642 = vmatmul.mubr.f32.gmra.mrb[0].mxu0 %v1226
        %v1643 = vpop.f32.mrb[0].mxu0
        %v1644 = vadd.f32 0.0, %v1643
        %v1645 = vpop.f32.mrb[0].mxu0
        %1646 = vmatprep.mubr.f32.mxu0 0.0
        %1647 = vmatmul.mubr.f32.gmra.mrb[0].mxu0 %v1229
        %v1648 = vpop.f32.mrb[0].mxu0
        %v1649 = vadd.f32 0.0, %v1648
        %v1650 = vpop.f32.mrb[0].mxu0
        %1651 = vmatprep.mubr.f32.mxu0 0.0
        %1652 = vmatmul.mubr.f32.gmra.mrb[0].mxu0 %v1232
        %v1653 = vpop.f32.mrb[0].mxu0
        %v1654 = vadd.f32 0.0, %v1653
        %v1655 = vpop.f32.mrb[0].mxu0
        %1656 = vmatprep.mubr.f32.mxu0 0.0
        %1657 = vmatmul.mubr.f32.gmra.mrb[0].mxu0 %v1235
        %v1658 = vpop.f32.mrb[0].mxu0
        %v1659 = vadd.f32 0.0, %v1658
        %v1660 = vpop.f32.mrb[0].mxu0
        %1661 = vmatprep.mubr.f32.mxu0 0.0
        %1662 = vmatmul.mubr.f32.gmra.mrb[0].mxu0 %v1238
        %v1663 = vpop.f32.mrb[0].mxu0
        %v1664 = vadd.f32 0.0, %v1663
        %v1665 = vpop.f32.mrb[0].mxu0
        %1666 = vmatprep.mubr.f32.mxu0 0.0
        %1667 = vmatmul.mubr.f32.gmra.mrb[0].mxu0 %v1241
        %v1668 = vpop.f32.mrb[0].mxu0
        %v1669 = vadd.f32 0.0, %v1668
        %v1670 = vpop.f32.mrb[0].mxu0
        %1671 = vmatprep.mubr.f32.mxu0 0.0
        %1672 = vmatmul.mubr.f32.gmra.mrb[0].mxu0 %v1244
        %v1673 = vpop.f32.mrb[0].mxu0
        %v1674 = vadd.f32 0.0, %v1673
        %v1675 = vpop.f32.mrb[0].mxu0
        %1676 = vmatprep.mubr.f32.mxu0 0.0
        %1677 = vmatmul.mubr.f32.gmra.mrb[0].mxu0 %v1247
        %v1678 = vpop.f32.mrb[0].mxu0
        %v1679 = vadd.f32 0.0, %v1678
        %v1680 = vpop.f32.mrb[0].mxu0
        %1681 = vmatprep.mubr.f32.mxu0 0.0
        %1682 = vmatmul.mubr.f32.gmra.mrb[0].mxu0 %v1250
        %v1683 = vpop.f32.mrb[0].mxu0
        %v1684 = vadd.f32 0.0, %v1683
        %v1685 = vpop.f32.mrb[0].mxu0
        %1686 = vmatprep.mubr.f32.mxu0 0.0
        %1687 = vmatmul.mubr.f32.gmra.mrb[0].mxu0 %v1253
        %v1688 = vpop.f32.mrb[0].mxu0
        %v1689 = vadd.f32 0.0, %v1688
        %v1690 = vpop.f32.mrb[0].mxu0
        %1691 = vmatprep.mubr.f32.mxu0 0.0
        %1692 = vmatmul.mubr.f32.gmra.mrb[0].mxu0 %v1256
        %v1693 = vpop.f32.mrb[0].mxu0
        %v1694 = vadd.f32 0.0, %v1693
        %v1695 = vpop.f32.mrb[0].mxu0
        %1696 = vmatprep.mubr.f32.mxu0 0.0
        %1697 = vmatmul.mubr.f32.gmra.mrb[0].mxu0 %v1259
        %v1698 = vpop.f32.mrb[0].mxu0
        %v1699 = vpop.f32.mrb[0].mxu0
        %1700 = vmatprep.mubr.f32.mxu0 0.0
        %1701 = vmatmul.mubr.f32.gmra.mrb[0].mxu0 %v1262
        %v1702 = vpop.f32.mrb[0].mxu0
        %v1703 = vpop.f32.mrb[0].mxu0
        %1704 = vmatprep.mubr.f32.mxu0 0.0
        %1705 = vmatmul.mubr.f32.gmra.mrb[0].mxu0 %v1265
        %v1706 = vpop.f32.mrb[0].mxu0
        %v1707 = vadd.f32 0.0, %v1706
        %v1708 = vpop.f32.mrb[0].mxu0
        %1709 = vmatprep.mubr.f32.mxu0 0.0
        %1710 = vmatmul.mubr.f32.gmra.mrb[0].mxu0 %v1268
        %v1711 = vpop.f32.mrb[0].mxu0
        %v1712 = vadd.f32 0.0, %v1711
        %v1713 = vpop.f32.mrb[0].mxu0
        %1714 = vmatprep.mubr.f32.mxu0 0.0
        %1715 = vmatmul.mubr.f32.gmra.mrb[0].mxu0 %v1271
        %v1716 = vpop.f32.mrb[0].mxu0
        %v1717 = vadd.f32 0.0, %v1716
        %v1718 = vpop.f32.mrb[0].mxu0
        %1719 = vmatprep.mubr.f32.mxu0 0.0
        %1720 = vmatmul.mubr.f32.gmra.mrb[0].mxu0 %v1274
        %v1721 = vpop.f32.mrb[0].mxu0
        %v1722 = vadd.f32 0.0, %v1721
        %v1723 = vpop.f32.mrb[0].mxu0
        %1724 = vmatprep.mubr.f32.mxu0 0.0
        %1725 = vmatmul.mubr.f32.gmra.mrb[0].mxu0 %v1277
        %v1726 = vpop.f32.mrb[0].mxu0
        %v1727 = vadd.f32 0.0, %v1726
        %v1728 = vpop.f32.mrb[0].mxu0
        %1729 = vmatprep.mubr.f32.mxu0 0.0
        %1730 = vmatmul.mubr.f32.gmra.mrb[0].mxu0 %v1280
        %v1731 = vpop.f32.mrb[0].mxu0
        %v1732 = vadd.f32 0.0, %v1731
        %v1733 = vpop.f32.mrb[0].mxu0
        %1734 = vmatprep.mubr.f32.mxu0 0.0
        %1735 = vmatmul.mubr.f32.gmra.mrb[0].mxu0 %v1283
        %v1736 = vpop.f32.mrb[0].mxu0
        %v1737 = vadd.f32 0.0, %v1736
        %v1738 = vpop.f32.mrb[0].mxu0
        %1739 = vmatprep.mubr.f32.mxu0 0.0
        %1740 = vmatmul.mubr.f32.gmra.mrb[0].mxu0 %v1286
        %v1741 = vpop.f32.mrb[0].mxu0
        %v1742 = vadd.f32 0.0, %v1741
        %v1743 = vpop.f32.mrb[0].mxu0
        %1744 = vmatprep.mubr.f32.mxu0 0.0
        %1745 = vmatmul.mubr.f32.gmra.mrb[0].mxu0 %v1289
        %v1746 = vpop.f32.mrb[0].mxu0
        %v1747 = vadd.f32 0.0, %v1746
        %v1748 = vpop.f32.mrb[0].mxu0
        %1749 = vmatprep.mubr.f32.mxu0 0.0
        %1750 = vmatmul.mubr.f32.gmra.mrb[0].mxu0 %v1292
        %v1751 = vpop.f32.mrb[0].mxu0
        %v1752 = vadd.f32 0.0, %v1751
        %v1753 = vpop.f32.mrb[0].mxu0
        %1754 = vmatprep.mubr.f32.mxu0 0.0
        %1755 = vmatmul.mubr.f32.gmra.mrb[0].mxu0 %v1295
        %v1756 = vpop.f32.mrb[0].mxu0
        %v1757 = vadd.f32 0.0, %v1756
        %v1758 = vpop.f32.mrb[0].mxu0
        %1759 = vmatprep.mubr.f32.mxu0 0.0
        %1760 = vmatmul.mubr.f32.gmra.mrb[0].mxu0 %v1298
        %v1761 = vpop.f32.mrb[0].mxu0
        %v1762 = vadd.f32 0.0, %v1761
        %v1763 = vpop.f32.mrb[0].mxu0
        %1764 = vmatprep.mubr.f32.mxu0 0.0
        %1765 = vmatmul.mubr.f32.gmra.mrb[0].mxu0 %v1301
        %v1766 = vpop.f32.mrb[0].mxu0
        %v1767 = vpop.f32.mrb[0].mxu0
        %1768 = vmatprep.mubr.f32.mxu0 0.0
        %1769 = vmatmul.mubr.f32.gmra.mrb[0].mxu0 %v1304
        %v1770 = vpop.f32.mrb[0].mxu0
        %v1771 = vpop.f32.mrb[0].mxu0
        %1772 = vmatprep.mubr.f32.mxu0 0.0
        %1773 = vmatmul.mubr.f32.gmra.mrb[0].mxu0 %v1307
        %v1774 = vpop.f32.mrb[0].mxu0
        %v1775 = vadd.f32 0.0, %v1774
        %v1776 = vpop.f32.mrb[0].mxu0
        %1777 = vmatprep.mubr.f32.mxu0 0.0
        %1778 = vmatmul.mubr.f32.gmra.mrb[0].mxu0 %v1310
        %v1779 = vpop.f32.mrb[0].mxu0
        %v1780 = vadd.f32 0.0, %v1779
        %v1781 = vpop.f32.mrb[0].mxu0
        %1782 = vmatprep.mubr.f32.mxu0 0.0
        %1783 = vmatmul.mubr.f32.gmra.mrb[0].mxu0 %v1313
        %v1784 = vpop.f32.mrb[0].mxu0
        %v1785 = vadd.f32 0.0, %v1784
        %v1786 = vpop.f32.mrb[0].mxu0
        %1787 = vmatprep.mubr.f32.mxu0 0.0
        %1788 = vmatmul.mubr.f32.gmra.mrb[0].mxu0 %v1316
        %v1789 = vpop.f32.mrb[0].mxu0
        %v1790 = vadd.f32 0.0, %v1789
        %v1791 = vpop.f32.mrb[0].mxu0
        %1792 = vmatprep.mubr.f32.mxu0 0.0
        %1793 = vmatmul.mubr.f32.gmra.mrb[0].mxu0 %v1319
        %v1794 = vpop.f32.mrb[0].mxu0
        %v1795 = vadd.f32 0.0, %v1794
        %v1796 = vpop.f32.mrb[0].mxu0
        %1797 = vmatprep.mubr.f32.mxu0 0.0
        %1798 = vmatmul.mubr.f32.gmra.mrb[0].mxu0 %v1322
        %v1799 = vpop.f32.mrb[0].mxu0
        %v1800 = vadd.f32 0.0, %v1799
        %v1801 = vpop.f32.mrb[0].mxu0
        %1802 = vmatprep.mubr.f32.mxu0 0.0
        %1803 = vmatmul.mubr.f32.gmra.mrb[0].mxu0 %v1325
        %v1804 = vpop.f32.mrb[0].mxu0
        %v1805 = vadd.f32 0.0, %v1804
        %v1806 = vpop.f32.mrb[0].mxu0
        %1807 = vmatprep.mubr.f32.mxu0 0.0
        %1808 = vmatmul.mubr.f32.gmra.mrb[0].mxu0 %v1328
        %v1809 = vpop.f32.mrb[0].mxu0
        %v1810 = vadd.f32 0.0, %v1809
        %v1811 = vpop.f32.mrb[0].mxu0
        %1812 = vmatprep.mubr.f32.mxu0 0.0
        %1813 = vmatmul.mubr.f32.gmra.mrb[0].mxu0 %v1331
        %v1814 = vpop.f32.mrb[0].mxu0
        %v1815 = vadd.f32 0.0, %v1814
        %v1816 = vpop.f32.mrb[0].mxu0
        %1817 = vmatprep.mubr.f32.mxu0 0.0
        %1818 = vmatmul.mubr.f32.gmra.mrb[0].mxu0 %v1334
        %v1819 = vpop.f32.mrb[0].mxu0
        %v1820 = vadd.f32 0.0, %v1819
        %v1821 = vpop.f32.mrb[0].mxu0
        %1822 = vmatprep.mubr.f32.mxu0 0.0
        %1823 = vmatmul.mubr.f32.gmra.mrb[0].mxu0 %v1337
        %v1824 = vpop.f32.mrb[0].mxu0
        %v1825 = vadd.f32 0.0, %v1824
        %v1826 = vpop.f32.mrb[0].mxu0
        %1827 = vmatprep.mubr.f32.mxu0 0.0
        %1828 = vmatmul.mubr.f32.gmra.mrb[0].mxu0 %v1340
        %v1829 = vpop.f32.mrb[0].mxu0
        %v1830 = vadd.f32 0.0, %v1829
        %v1831 = vpop.f32.mrb[0].mxu0
        %1832 = vmatprep.mubr.f32.mxu0 0.0
        %1833 = vmatmul.mubr.f32.gmra.mrb[0].mxu0 %v1343
        %v1834 = vpop.f32.mrb[0].mxu0
        %v1835 = vpop.f32.mrb[0].mxu0
        %1836 = vmatprep.mubr.f32.mxu0 0.0
        %1837 = vmatmul.mubr.f32.gmra.mrb[0].mxu0 %v1346
        %v1838 = vpop.f32.mrb[0].mxu0
        %v1839 = vpop.f32.mrb[0].mxu0
        %1840 = vmatprep.mubr.f32.mxu0 0.0
        %1841 = vmatmul.mubr.f32.gmra.mrb[0].mxu0 %v1349
        %v1842 = vpop.f32.mrb[0].mxu0
        %v1843 = vadd.f32 0.0, %v1842
        %v1844 = vpop.f32.mrb[0].mxu0
        %1845 = vmatprep.mubr.f32.mxu0 0.0
        %1846 = vmatmul.mubr.f32.gmra.mrb[0].mxu0 %v1352
        %v1847 = vpop.f32.mrb[0].mxu0
        %v1848 = vadd.f32 0.0, %v1847
        %v1849 = vpop.f32.mrb[0].mxu0
        %1850 = vmatprep.mubr.f32.mxu0 0.0
        %1851 = vmatmul.mubr.f32.gmra.mrb[0].mxu0 %v1355
        %v1852 = vpop.f32.mrb[0].mxu0
        %v1853 = vadd.f32 0.0, %v1852
        %v1854 = vpop.f32.mrb[0].mxu0
        %1855 = vmatprep.mubr.f32.mxu0 0.0
        %1856 = vmatmul.mubr.f32.gmra.mrb[0].mxu0 %v1358
        %v1857 = vpop.f32.mrb[0].mxu0
        %v1858 = vadd.f32 0.0, %v1857
        %v1859 = vpop.f32.mrb[0].mxu0
        %1860 = vmatprep.mubr.f32.mxu0 0.0
        %1861 = vmatmul.mubr.f32.gmra.mrb[0].mxu0 %v1361
        %v1862 = vpop.f32.mrb[0].mxu0
        %v1863 = vadd.f32 0.0, %v1862
        %v1864 = vpop.f32.mrb[0].mxu0
        %1865 = vmatprep.mubr.f32.mxu0 0.0
        %1866 = vmatmul.mubr.f32.gmra.mrb[0].mxu0 %v1364
        %v1867 = vpop.f32.mrb[0].mxu0
        %v1868 = vadd.f32 0.0, %v1867
        %v1869 = vpop.f32.mrb[0].mxu0
        %1870 = vmatprep.mubr.f32.mxu0 0.0
        %1871 = vmatmul.mubr.f32.gmra.mrb[0].mxu0 %v1367
        %v1872 = vpop.f32.mrb[0].mxu0
        %v1873 = vadd.f32 0.0, %v1872
        %v1874 = vpop.f32.mrb[0].mxu0
        %1875 = vmatprep.mubr.f32.mxu0 0.0
        %1876 = vmatmul.mubr.f32.gmra.mrb[0].mxu0 %v1370
        %v1877 = vpop.f32.mrb[0].mxu0
        %v1878 = vadd.f32 0.0, %v1877
        %v1879 = vpop.f32.mrb[0].mxu0
        %1880 = vmatprep.mubr.f32.mxu0 0.0
        %1881 = vmatmul.mubr.f32.gmra.mrb[0].mxu0 %v1373
        %v1882 = vpop.f32.mrb[0].mxu0
        %v1883 = vadd.f32 0.0, %v1882
        %v1884 = vpop.f32.mrb[0].mxu0
        %1885 = vmatprep.mubr.f32.mxu0 0.0
        %1886 = vmatmul.mubr.f32.gmra.mrb[0].mxu0 %v1376
        %v1887 = vpop.f32.mrb[0].mxu0
        %v1888 = vadd.f32 0.0, %v1887
        %v1889 = vpop.f32.mrb[0].mxu0
        %1890 = vmatprep.mubr.f32.mxu0 0.0
        %1891 = vmatmul.mubr.f32.gmra.mrb[0].mxu0 %v1379
        %v1892 = vpop.f32.mrb[0].mxu0
        %v1893 = vadd.f32 0.0, %v1892
        %v1894 = vpop.f32.mrb[0].mxu0
        %1895 = vmatprep.mubr.f32.mxu0 0.0
        %1896 = vmatmul.mubr.f32.gmra.mrb[0].mxu0 %v1382
        %v1897 = vpop.f32.mrb[0].mxu0
        %v1898 = vadd.f32 0.0, %v1897
        %v1899 = vpop.f32.mrb[0].mxu0
        %1900 = vmatprep.mubr.f32.mxu0 0.0
        %1901 = vmatmul.mubr.f32.gmra.mrb[0].mxu0 %v1385
        %v1902 = vpop.f32.mrb[0].mxu0
        %v1903 = vpop.f32.mrb[0].mxu0
        %1904 = vmatprep.mubr.f32.mxu0 0.0
        %1905 = vmatmul.mubr.f32.gmra.mrb[0].mxu0 %v1388
        %v1906 = vpop.f32.mrb[0].mxu0
        %v1907 = vpop.f32.mrb[0].mxu0
        %1908 = vmatprep.mubr.f32.mxu0 0.0
        %1909 = vmatmul.mubr.f32.gmra.mrb[0].mxu0 %v1391
        %v1910 = vpop.f32.mrb[0].mxu0
        %v1911 = vpop.f32.mrb[0].mxu0
        %1912 = vmatprep.mubr.f32.mxu0 0.0
        %1913 = vmatmul.mubr.f32.gmra.mrb[0].mxu0 %v1394
        %v1914 = vpop.f32.mrb[0].mxu0
        %v1915 = vpop.f32.mrb[0].mxu0
        %1916 = vmatprep.mubr.f32.mxu0 0.0
        %1917 = vmatmul.mubr.f32.gmra.mrb[0].mxu0 %v1397
        %v1918 = vpop.f32.mrb[0].mxu0
        %v1919 = vpop.f32.mrb[0].mxu0
        %1920 = vmatprep.mubr.f32.mxu0 0.0
        %1921 = vmatmul.mubr.f32.gmra.mrb[0].mxu0 %v1400
        %v1922 = vpop.f32.mrb[0].mxu0
        %v1923 = vpop.f32.mrb[0].mxu0
        %1924 = vmatprep.mubr.f32.mxu0 0.0
        %1925 = vmatmul.mubr.f32.gmra.mrb[0].mxu0 %v1403
        %v1926 = vpop.f32.mrb[0].mxu0
        %v1927 = vpop.f32.mrb[0].mxu0
        %1928 = vmatprep.mubr.f32.mxu0 0.0
        %1929 = vmatmul.mubr.f32.gmra.mrb[0].mxu0 %v1406
        %v1930 = vpop.f32.mrb[0].mxu0
        %v1931 = vpop.f32.mrb[0].mxu0
        %1932 = vmatprep.mubr.f32.mxu0 0.0
        %1933 = vmatmul.mubr.f32.gmra.mrb[0].mxu0 %v1409
        %v1934 = vpop.f32.mrb[0].mxu0
        %v1935 = vpop.f32.mrb[0].mxu0
        %1936 = vmatprep.mubr.f32.mxu0 0.0
        %1937 = vmatmul.mubr.f32.gmra.mrb[0].mxu0 %v1412
        %v1938 = vpop.f32.mrb[0].mxu0
        %v1939 = vpop.f32.mrb[0].mxu0
        %1940 = vmatprep.mubr.f32.mxu0 0.0
        %1941 = vmatmul.mubr.f32.gmra.mrb[0].mxu0 %v1415
        %v1942 = vpop.f32.mrb[0].mxu0
        %v1943 = vpop.f32.mrb[0].mxu0
        %1944 = vmatprep.mubr.f32.mxu0 0.0
        %1945 = vmatmul.mubr.f32.gmra.mrb[0].mxu0 %v1418
        %v1946 = vpop.f32.mrb[0].mxu0
        %v1947 = vpop.f32.mrb[0].mxu0
        %1948 = vmatprep.mubr.f32.mxu0 0.0
        %1949 = vmatmul.mubr.f32.gmra.mrb[0].mxu0 %v1421
        %v1950 = vpop.f32.mrb[0].mxu0
        %v1951 = vpop.f32.mrb[0].mxu0
        %1952 = vmatprep.mubr.f32.mxu0 0.0
        %1953 = vmatmul.mubr.f32.gmra.mrb[0].mxu0 %v1424
        %v1954 = vpop.f32.mrb[0].mxu0
        %v1955 = vpop.f32.mrb[0].mxu0
        %1956 = vmatprep.mubr.f32.mxu0 0.0
        %1957 = vmatmul.mubr.f32.gmra.mrb[0].mxu0 %v1427
        %v1958 = vpop.f32.mrb[0].mxu0
        %v1959 = vpop.f32.mrb[0].mxu0
        %1960 = vmatprep.mubr.f32.mxu0 0.0
        %1961 = vmatmul.mubr.f32.gmra.mrb[0].mxu0 %v1430
        %v1962 = vpop.f32.mrb[0].mxu0
        %v1963 = vpop.f32.mrb[0].mxu0
        %1964 = vdwg.mxu0
        %v1966 = vsel %vm1137, %v1006, 0
        %v1969 = vsel %vm1137, %v1007, 0
        %v1972 = vsel %vm1137, %v1022, 0
        %v1975 = vsel %vm1137, %v1023, 0
        %v1978 = vsel %vm1137, %v1038, 0
        %v1981 = vsel %vm1137, %v1039, 0
        %v1984 = vsel %vm1137, %v1054, 0
        %v1987 = vsel %vm1137, %v1055, 0
        %v1990 = vsel %vm1137, %v1070, 0
        %v1993 = vsel %vm1137, %v1071, 0
        %v1996 = vsel %vm1137, %v1086, 0
        %v1999 = vsel %vm1137, %v1087, 0
        %v2002 = vsel %vm1137, %v1102, 0
        %v2005 = vsel %vm1137, %v1103, 0
        %v2008 = vsel %vm1432, %v1134, 0
        %2010 = vmatprep.subr.mxu0 0.0
        %2011 = vmatpush1.msra.mxu0 %v2008
        %2012 = vmatprep.subr.mxu0 0.0
        %2013 = vmatpush1.msra.mxu0 0.0
        %2014 = vmatprep.subr.mxu0 0.0
        %2015 = vmatpush1.msra.mxu0 0.0
        %2016 = vmatprep.subr.mxu0 0.0
        %2017 = vmatpush1.msra.mxu0 0.0
        %2018 = vmatprep.subr.mxu0 0.0
        %2019 = vmatpush1.msra.mxu0 0.0
        %2020 = vmatprep.subr.mxu0 0.0
        %2021 = vmatpush1.msra.mxu0 0.0
        %2022 = vmatprep.subr.mxu0 0.0
        %2023 = vmatpush1.msra.mxu0 0.0
        %2024 = vmatprep.subr.mxu0 0.0
        %2025 = vmatpush1.msra.mxu0 0.0
        %2026 = vmatprep.subr.mxu0 0.0
        %2027 = vmatpush1.msra.mxu0 0.0
        %2028 = vmatprep.subr.mxu0 0.0
        %2029 = vmatpush1.msra.mxu0 0.0
        %2030 = vmatprep.subr.mxu0 0.0
        %2031 = vmatpush1.msra.mxu0 0.0
        %2032 = vmatprep.subr.mxu0 0.0
        %2033 = vmatpush1.msra.mxu0 0.0
        %2034 = vmatprep.subr.mxu0 0.0
        %2035 = vmatpush1.msra.mxu0 0.0
        %2036 = vmatprep.subr.mxu0 0.0
        %2037 = vmatpush1.msra.mxu0 0.0
        %2038 = vmatprep.subr.mxu0 0.0
        %2039 = vmatpush1.msra.mxu0 0.0
        %2040 = vmatprep.subr.mxu0 0.0
        %2041 = vmatpush1.msra.mxu0 0.0
        %2042 = vmatprep.subr.mxu0 0.0
        %2043 = vmatpush1.msra.mxu0 0.0
        %2044 = vmatprep.subr.mxu0 0.0
        %2045 = vmatpush1.msra.mxu0 0.0
        %2046 = vmatprep.subr.mxu0 0.0
        %2047 = vmatpush1.msra.mxu0 0.0
        %2048 = vmatprep.subr.mxu0 0.0
        %2049 = vmatpush1.msra.mxu0 0.0
        %2050 = vmatprep.subr.mxu0 0.0
        %2051 = vmatpush1.msra.mxu0 0.0
        %2052 = vmatprep.subr.mxu0 0.0
        %2053 = vmatpush1.msra.mxu0 0.0
        %2054 = vmatprep.subr.mxu0 0.0
        %2055 = vmatpush1.msra.mxu0 0.0
        %2056 = vmatprep.subr.mxu0 0.0
        %2057 = vmatpush1.msra.mxu0 0.0
        %2058 = vmatprep.subr.mxu0 0.0
        %2059 = vmatpush1.msra.mxu0 0.0
        %2060 = vmatprep.subr.mxu0 0.0
        %2061 = vmatpush1.msra.mxu0 0.0
        %2062 = vmatprep.subr.mxu0 0.0
        %2063 = vmatpush1.msra.mxu0 0.0
        %2064 = vmatprep.subr.mxu0 0.0
        %2065 = vmatpush1.msra.mxu0 0.0
        %2066 = vmatprep.subr.mxu0 0.0
        %2067 = vmatpush1.msra.mxu0 0.0
        %2068 = vmatprep.subr.mxu0 0.0
        %2069 = vmatpush1.msra.mxu0 0.0
        %2070 = vmatprep.subr.mxu0 0.0
        %2071 = vmatpush1.msra.mxu0 0.0
        %2072 = vmatprep.subr.mxu0 0.0
        %2073 = vmatpush1.msra.mxu0 0.0
        %2074 = vmatprep.mubr.f32.mxu0 0.0
        %2075 = vmatmul.mubr.f32.gmra.mrb[0].mxu0 %v1966
        %v2076 = vpop.f32.mrb[0].mxu0
        %v2077 = vadd.f32 %v1503, %v2076
        %v2078 = vpop.f32.mrb[0].mxu0
        %2079 = vmatprep.mubr.f32.mxu0 0.0
        %2080 = vmatmul.mubr.f32.gmra.mrb[0].mxu0 %v1969
        %v2081 = vpop.f32.mrb[0].mxu0
        %v2082 = vadd.f32 %v1508, %v2081
        %v2083 = vpop.f32.mrb[0].mxu0
        %2084 = vmatprep.mubr.f32.mxu0 0.0
        %2085 = vmatmul.mubr.f32.gmra.mrb[0].mxu0 %v1139
        %v2086 = vpop.f32.mrb[0].mxu0
        %v2087 = vadd.f32 %v1513, %v2086
        %v2088 = vpop.f32.mrb[0].mxu0
        %2089 = vmatprep.mubr.f32.mxu0 0.0
        %2090 = vmatmul.mubr.f32.gmra.mrb[0].mxu0 %v1142
        %v2091 = vpop.f32.mrb[0].mxu0
        %v2092 = vadd.f32 %v1518, %v2091
        %v2093 = vpop.f32.mrb[0].mxu0
        %2094 = vmatprep.mubr.f32.mxu0 0.0
        %2095 = vmatmul.mubr.f32.gmra.mrb[0].mxu0 %v1145
        %v2096 = vpop.f32.mrb[0].mxu0
        %v2097 = vadd.f32 %v1523, %v2096
        %v2098 = vpop.f32.mrb[0].mxu0
        %2099 = vmatprep.mubr.f32.mxu0 0.0
        %2100 = vmatmul.mubr.f32.gmra.mrb[0].mxu0 %v1148
        %v2101 = vpop.f32.mrb[0].mxu0
        %v2102 = vadd.f32 %v1528, %v2101
        %v2103 = vpop.f32.mrb[0].mxu0
        %2104 = vmatprep.mubr.f32.mxu0 0.0
        %2105 = vmatmul.mubr.f32.gmra.mrb[0].mxu0 %v1151
        %v2106 = vpop.f32.mrb[0].mxu0
        %v2107 = vadd.f32 %v1533, %v2106
        %v2108 = vpop.f32.mrb[0].mxu0
        %2109 = vmatprep.mubr.f32.mxu0 0.0
        %2110 = vmatmul.mubr.f32.gmra.mrb[0].mxu0 %v1154
        %v2111 = vpop.f32.mrb[0].mxu0
        %v2112 = vadd.f32 %v1538, %v2111
        %v2113 = vpop.f32.mrb[0].mxu0
        %2114 = vmatprep.mubr.f32.mxu0 0.0
        %2115 = vmatmul.mubr.f32.gmra.mrb[0].mxu0 %v1157
        %v2116 = vpop.f32.mrb[0].mxu0
        %v2117 = vadd.f32 %v1543, %v2116
        %v2118 = vpop.f32.mrb[0].mxu0
        %2119 = vmatprep.mubr.f32.mxu0 0.0
        %2120 = vmatmul.mubr.f32.gmra.mrb[0].mxu0 %v1160
        %v2121 = vpop.f32.mrb[0].mxu0
        %v2122 = vadd.f32 %v1548, %v2121
        %v2123 = vpop.f32.mrb[0].mxu0
        %2124 = vmatprep.mubr.f32.mxu0 0.0
        %2125 = vmatmul.mubr.f32.gmra.mrb[0].mxu0 %v1163
        %v2126 = vpop.f32.mrb[0].mxu0
        %v2127 = vadd.f32 %v1553, %v2126
        %v2128 = vpop.f32.mrb[0].mxu0
        %2129 = vmatprep.mubr.f32.mxu0 0.0
        %2130 = vmatmul.mubr.f32.gmra.mrb[0].mxu0 %v1166
        %v2131 = vpop.f32.mrb[0].mxu0
        %v2132 = vadd.f32 %v1558, %v2131
        %v2133 = vpop.f32.mrb[0].mxu0
        %2134 = vmatprep.mubr.f32.mxu0 0.0
        %2135 = vmatmul.mubr.f32.gmra.mrb[0].mxu0 %v1169
        %v2136 = vpop.f32.mrb[0].mxu0
        %v2137 = vpop.f32.mrb[0].mxu0
        %2138 = vmatprep.mubr.f32.mxu0 0.0
        %2139 = vmatmul.mubr.f32.gmra.mrb[0].mxu0 %v1172
        %v2140 = vpop.f32.mrb[0].mxu0
        %v2141 = vpop.f32.mrb[0].mxu0
        %2142 = vmatprep.mubr.f32.mxu0 0.0
        %2143 = vmatmul.mubr.f32.gmra.mrb[0].mxu0 %v1972
        %v2144 = vpop.f32.mrb[0].mxu0
        %v2145 = vadd.f32 %v1571, %v2144
        %v2146 = vpop.f32.mrb[0].mxu0
        %2147 = vmatprep.mubr.f32.mxu0 0.0
        %2148 = vmatmul.mubr.f32.gmra.mrb[0].mxu0 %v1975
        %v2149 = vpop.f32.mrb[0].mxu0
        %v2150 = vadd.f32 %v1576, %v2149
        %v2151 = vpop.f32.mrb[0].mxu0
        %2152 = vmatprep.mubr.f32.mxu0 0.0
        %2153 = vmatmul.mubr.f32.gmra.mrb[0].mxu0 %v1181
        %v2154 = vpop.f32.mrb[0].mxu0
        %v2155 = vadd.f32 %v1581, %v2154
        %v2156 = vpop.f32.mrb[0].mxu0
        %2157 = vmatprep.mubr.f32.mxu0 0.0
        %2158 = vmatmul.mubr.f32.gmra.mrb[0].mxu0 %v1184
        %v2159 = vpop.f32.mrb[0].mxu0
        %v2160 = vadd.f32 %v1586, %v2159
        %v2161 = vpop.f32.mrb[0].mxu0
        %2162 = vmatprep.mubr.f32.mxu0 0.0
        %2163 = vmatmul.mubr.f32.gmra.mrb[0].mxu0 %v1187
        %v2164 = vpop.f32.mrb[0].mxu0
        %v2165 = vadd.f32 %v1591, %v2164
        %v2166 = vpop.f32.mrb[0].mxu0
        %2167 = vmatprep.mubr.f32.mxu0 0.0
        %2168 = vmatmul.mubr.f32.gmra.mrb[0].mxu0 %v1190
        %v2169 = vpop.f32.mrb[0].mxu0
        %v2170 = vadd.f32 %v1596, %v2169
        %v2171 = vpop.f32.mrb[0].mxu0
        %2172 = vmatprep.mubr.f32.mxu0 0.0
        %2173 = vmatmul.mubr.f32.gmra.mrb[0].mxu0 %v1193
        %v2174 = vpop.f32.mrb[0].mxu0
        %v2175 = vadd.f32 %v1601, %v2174
        %v2176 = vpop.f32.mrb[0].mxu0
        %2177 = vmatprep.mubr.f32.mxu0 0.0
        %2178 = vmatmul.mubr.f32.gmra.mrb[0].mxu0 %v1196
        %v2179 = vpop.f32.mrb[0].mxu0
        %v2180 = vadd.f32 %v1606, %v2179
        %v2181 = vpop.f32.mrb[0].mxu0
        %2182 = vmatprep.mubr.f32.mxu0 0.0
        %2183 = vmatmul.mubr.f32.gmra.mrb[0].mxu0 %v1199
        %v2184 = vpop.f32.mrb[0].mxu0
        %v2185 = vadd.f32 %v1611, %v2184
        %v2186 = vpop.f32.mrb[0].mxu0
        %2187 = vmatprep.mubr.f32.mxu0 0.0
        %2188 = vmatmul.mubr.f32.gmra.mrb[0].mxu0 %v1202
        %v2189 = vpop.f32.mrb[0].mxu0
        %v2190 = vadd.f32 %v1616, %v2189
        %v2191 = vpop.f32.mrb[0].mxu0
        %2192 = vmatprep.mubr.f32.mxu0 0.0
        %2193 = vmatmul.mubr.f32.gmra.mrb[0].mxu0 %v1205
        %v2194 = vpop.f32.mrb[0].mxu0
        %v2195 = vadd.f32 %v1621, %v2194
        %v2196 = vpop.f32.mrb[0].mxu0
        %2197 = vmatprep.mubr.f32.mxu0 0.0
        %2198 = vmatmul.mubr.f32.gmra.mrb[0].mxu0 %v1208
        %v2199 = vpop.f32.mrb[0].mxu0
        %v2200 = vadd.f32 %v1626, %v2199
        %v2201 = vpop.f32.mrb[0].mxu0
        %2202 = vmatprep.mubr.f32.mxu0 0.0
        %2203 = vmatmul.mubr.f32.gmra.mrb[0].mxu0 %v1211
        %v2204 = vpop.f32.mrb[0].mxu0
        %v2205 = vpop.f32.mrb[0].mxu0
        %2206 = vmatprep.mubr.f32.mxu0 0.0
        %2207 = vmatmul.mubr.f32.gmra.mrb[0].mxu0 %v1214
        %v2208 = vpop.f32.mrb[0].mxu0
        %v2209 = vpop.f32.mrb[0].mxu0
        %2210 = vmatprep.mubr.f32.mxu0 0.0
        %2211 = vmatmul.mubr.f32.gmra.mrb[0].mxu0 %v1978
        %v2212 = vpop.f32.mrb[0].mxu0
        %v2213 = vadd.f32 %v1639, %v2212
        %v2214 = vpop.f32.mrb[0].mxu0
        %2215 = vmatprep.mubr.f32.mxu0 0.0
        %2216 = vmatmul.mubr.f32.gmra.mrb[0].mxu0 %v1981
        %v2217 = vpop.f32.mrb[0].mxu0
        %v2218 = vadd.f32 %v1644, %v2217
        %v2219 = vpop.f32.mrb[0].mxu0
        %2220 = vmatprep.mubr.f32.mxu0 0.0
        %2221 = vmatmul.mubr.f32.gmra.mrb[0].mxu0 %v1223
        %v2222 = vpop.f32.mrb[0].mxu0
        %v2223 = vadd.f32 %v1649, %v2222
        %v2224 = vpop.f32.mrb[0].mxu0
        %2225 = vmatprep.mubr.f32.mxu0 0.0
        %2226 = vmatmul.mubr.f32.gmra.mrb[0].mxu0 %v1226
        %v2227 = vpop.f32.mrb[0].mxu0
        %v2228 = vadd.f32 %v1654, %v2227
        %v2229 = vpop.f32.mrb[0].mxu0
        %2230 = vmatprep.mubr.f32.mxu0 0.0
        %2231 = vmatmul.mubr.f32.gmra.mrb[0].mxu0 %v1229
        %v2232 = vpop.f32.mrb[0].mxu0
        %v2233 = vadd.f32 %v1659, %v2232
        %v2234 = vpop.f32.mrb[0].mxu0
        %2235 = vmatprep.mubr.f32.mxu0 0.0
        %2236 = vmatmul.mubr.f32.gmra.mrb[0].mxu0 %v1232
        %v2237 = vpop.f32.mrb[0].mxu0
        %v2238 = vadd.f32 %v1664, %v2237
        %v2239 = vpop.f32.mrb[0].mxu0
        %2240 = vmatprep.mubr.f32.mxu0 0.0
        %2241 = vmatmul.mubr.f32.gmra.mrb[0].mxu0 %v1235
        %v2242 = vpop.f32.mrb[0].mxu0
        %v2243 = vadd.f32 %v1669, %v2242
        %v2244 = vpop.f32.mrb[0].mxu0
        %2245 = vmatprep.mubr.f32.mxu0 0.0
        %2246 = vmatmul.mubr.f32.gmra.mrb[0].mxu0 %v1238
        %v2247 = vpop.f32.mrb[0].mxu0
        %v2248 = vadd.f32 %v1674, %v2247
        %v2249 = vpop.f32.mrb[0].mxu0
        %2250 = vmatprep.mubr.f32.mxu0 0.0
        %2251 = vmatmul.mubr.f32.gmra.mrb[0].mxu0 %v1241
        %v2252 = vpop.f32.mrb[0].mxu0
        %v2253 = vadd.f32 %v1679, %v2252
        %v2254 = vpop.f32.mrb[0].mxu0
        %2255 = vmatprep.mubr.f32.mxu0 0.0
        %2256 = vmatmul.mubr.f32.gmra.mrb[0].mxu0 %v1244
        %v2257 = vpop.f32.mrb[0].mxu0
        %v2258 = vadd.f32 %v1684, %v2257
        %v2259 = vpop.f32.mrb[0].mxu0
        %2260 = vmatprep.mubr.f32.mxu0 0.0
        %2261 = vmatmul.mubr.f32.gmra.mrb[0].mxu0 %v1247
        %v2262 = vpop.f32.mrb[0].mxu0
        %v2263 = vadd.f32 %v1689, %v2262
        %v2264 = vpop.f32.mrb[0].mxu0
        %2265 = vmatprep.mubr.f32.mxu0 0.0
        %2266 = vmatmul.mubr.f32.gmra.mrb[0].mxu0 %v1250
        %v2267 = vpop.f32.mrb[0].mxu0
        %v2268 = vadd.f32 %v1694, %v2267
        %v2269 = vpop.f32.mrb[0].mxu0
        %2270 = vmatprep.mubr.f32.mxu0 0.0
        %2271 = vmatmul.mubr.f32.gmra.mrb[0].mxu0 %v1253
        %v2272 = vpop.f32.mrb[0].mxu0
        %v2273 = vpop.f32.mrb[0].mxu0
        %2274 = vmatprep.mubr.f32.mxu0 0.0
        %2275 = vmatmul.mubr.f32.gmra.mrb[0].mxu0 %v1256
        %v2276 = vpop.f32.mrb[0].mxu0
        %v2277 = vpop.f32.mrb[0].mxu0
        %2278 = vmatprep.mubr.f32.mxu0 0.0
        %2279 = vmatmul.mubr.f32.gmra.mrb[0].mxu0 %v1984
        %v2280 = vpop.f32.mrb[0].mxu0
        %v2281 = vadd.f32 %v1707, %v2280
        %v2282 = vpop.f32.mrb[0].mxu0
        %2283 = vmatprep.mubr.f32.mxu0 0.0
        %2284 = vmatmul.mubr.f32.gmra.mrb[0].mxu0 %v1987
        %v2285 = vpop.f32.mrb[0].mxu0
        %v2286 = vadd.f32 %v1712, %v2285
        %v2287 = vpop.f32.mrb[0].mxu0
        %2288 = vmatprep.mubr.f32.mxu0 0.0
        %2289 = vmatmul.mubr.f32.gmra.mrb[0].mxu0 %v1265
        %v2290 = vpop.f32.mrb[0].mxu0
        %v2291 = vadd.f32 %v1717, %v2290
        %v2292 = vpop.f32.mrb[0].mxu0
        %2293 = vmatprep.mubr.f32.mxu0 0.0
        %2294 = vmatmul.mubr.f32.gmra.mrb[0].mxu0 %v1268
        %v2295 = vpop.f32.mrb[0].mxu0
        %v2296 = vadd.f32 %v1722, %v2295
        %v2297 = vpop.f32.mrb[0].mxu0
        %2298 = vmatprep.mubr.f32.mxu0 0.0
        %2299 = vmatmul.mubr.f32.gmra.mrb[0].mxu0 %v1271
        %v2300 = vpop.f32.mrb[0].mxu0
        %v2301 = vadd.f32 %v1727, %v2300
        %v2302 = vpop.f32.mrb[0].mxu0
        %2303 = vmatprep.mubr.f32.mxu0 0.0
        %2304 = vmatmul.mubr.f32.gmra.mrb[0].mxu0 %v1274
        %v2305 = vpop.f32.mrb[0].mxu0
        %v2306 = vadd.f32 %v1732, %v2305
        %v2307 = vpop.f32.mrb[0].mxu0
        %2308 = vmatprep.mubr.f32.mxu0 0.0
        %2309 = vmatmul.mubr.f32.gmra.mrb[0].mxu0 %v1277
        %v2310 = vpop.f32.mrb[0].mxu0
        %v2311 = vadd.f32 %v1737, %v2310
        %v2312 = vpop.f32.mrb[0].mxu0
        %2313 = vmatprep.mubr.f32.mxu0 0.0
        %2314 = vmatmul.mubr.f32.gmra.mrb[0].mxu0 %v1280
        %v2315 = vpop.f32.mrb[0].mxu0
        %v2316 = vadd.f32 %v1742, %v2315
        %v2317 = vpop.f32.mrb[0].mxu0
        %2318 = vmatprep.mubr.f32.mxu0 0.0
        %2319 = vmatmul.mubr.f32.gmra.mrb[0].mxu0 %v1283
        %v2320 = vpop.f32.mrb[0].mxu0
        %v2321 = vadd.f32 %v1747, %v2320
        %v2322 = vpop.f32.mrb[0].mxu0
        %2323 = vmatprep.mubr.f32.mxu0 0.0
        %2324 = vmatmul.mubr.f32.gmra.mrb[0].mxu0 %v1286
        %v2325 = vpop.f32.mrb[0].mxu0
        %v2326 = vadd.f32 %v1752, %v2325
        %v2327 = vpop.f32.mrb[0].mxu0
        %2328 = vmatprep.mubr.f32.mxu0 0.0
        %2329 = vmatmul.mubr.f32.gmra.mrb[0].mxu0 %v1289
        %v2330 = vpop.f32.mrb[0].mxu0
        %v2331 = vadd.f32 %v1757, %v2330
        %v2332 = vpop.f32.mrb[0].mxu0
        %2333 = vmatprep.mubr.f32.mxu0 0.0
        %2334 = vmatmul.mubr.f32.gmra.mrb[0].mxu0 %v1292
        %v2335 = vpop.f32.mrb[0].mxu0
        %v2336 = vadd.f32 %v1762, %v2335
        %v2337 = vpop.f32.mrb[0].mxu0
        %2338 = vmatprep.mubr.f32.mxu0 0.0
        %2339 = vmatmul.mubr.f32.gmra.mrb[0].mxu0 %v1295
        %v2340 = vpop.f32.mrb[0].mxu0
        %v2341 = vpop.f32.mrb[0].mxu0
        %2342 = vmatprep.mubr.f32.mxu0 0.0
        %2343 = vmatmul.mubr.f32.gmra.mrb[0].mxu0 %v1298
        %v2344 = vpop.f32.mrb[0].mxu0
        %v2345 = vpop.f32.mrb[0].mxu0
        %2346 = vmatprep.mubr.f32.mxu0 0.0
        %2347 = vmatmul.mubr.f32.gmra.mrb[0].mxu0 %v1990
        %v2348 = vpop.f32.mrb[0].mxu0
        %v2349 = vadd.f32 %v1775, %v2348
        %v2350 = vpop.f32.mrb[0].mxu0
        %2351 = vmatprep.mubr.f32.mxu0 0.0
        %2352 = vmatmul.mubr.f32.gmra.mrb[0].mxu0 %v1993
        %v2353 = vpop.f32.mrb[0].mxu0
        %v2354 = vadd.f32 %v1780, %v2353
        %v2355 = vpop.f32.mrb[0].mxu0
        %2356 = vmatprep.mubr.f32.mxu0 0.0
        %2357 = vmatmul.mubr.f32.gmra.mrb[0].mxu0 %v1307
        %v2358 = vpop.f32.mrb[0].mxu0
        %v2359 = vadd.f32 %v1785, %v2358
        %v2360 = vpop.f32.mrb[0].mxu0
        %2361 = vmatprep.mubr.f32.mxu0 0.0
        %2362 = vmatmul.mubr.f32.gmra.mrb[0].mxu0 %v1310
        %v2363 = vpop.f32.mrb[0].mxu0
        %v2364 = vadd.f32 %v1790, %v2363
        %v2365 = vpop.f32.mrb[0].mxu0
        %2366 = vmatprep.mubr.f32.mxu0 0.0
        %2367 = vmatmul.mubr.f32.gmra.mrb[0].mxu0 %v1313
        %v2368 = vpop.f32.mrb[0].mxu0
        %v2369 = vadd.f32 %v1795, %v2368
        %v2370 = vpop.f32.mrb[0].mxu0
        %2371 = vmatprep.mubr.f32.mxu0 0.0
        %2372 = vmatmul.mubr.f32.gmra.mrb[0].mxu0 %v1316
        %v2373 = vpop.f32.mrb[0].mxu0
        %v2374 = vadd.f32 %v1800, %v2373
        %v2375 = vpop.f32.mrb[0].mxu0
        %2376 = vmatprep.mubr.f32.mxu0 0.0
        %2377 = vmatmul.mubr.f32.gmra.mrb[0].mxu0 %v1319
        %v2378 = vpop.f32.mrb[0].mxu0
        %v2379 = vadd.f32 %v1805, %v2378
        %v2380 = vpop.f32.mrb[0].mxu0
        %2381 = vmatprep.mubr.f32.mxu0 0.0
        %2382 = vmatmul.mubr.f32.gmra.mrb[0].mxu0 %v1322
        %v2383 = vpop.f32.mrb[0].mxu0
        %v2384 = vadd.f32 %v1810, %v2383
        %v2385 = vpop.f32.mrb[0].mxu0
        %2386 = vmatprep.mubr.f32.mxu0 0.0
        %2387 = vmatmul.mubr.f32.gmra.mrb[0].mxu0 %v1325
        %v2388 = vpop.f32.mrb[0].mxu0
        %v2389 = vadd.f32 %v1815, %v2388
        %v2390 = vpop.f32.mrb[0].mxu0
        %2391 = vmatprep.mubr.f32.mxu0 0.0
        %2392 = vmatmul.mubr.f32.gmra.mrb[0].mxu0 %v1328
        %v2393 = vpop.f32.mrb[0].mxu0
        %v2394 = vadd.f32 %v1820, %v2393
        %v2395 = vpop.f32.mrb[0].mxu0
        %2396 = vmatprep.mubr.f32.mxu0 0.0
        %2397 = vmatmul.mubr.f32.gmra.mrb[0].mxu0 %v1331
        %v2398 = vpop.f32.mrb[0].mxu0
        %v2399 = vadd.f32 %v1825, %v2398
        %v2400 = vpop.f32.mrb[0].mxu0
        %2401 = vmatprep.mubr.f32.mxu0 0.0
        %2402 = vmatmul.mubr.f32.gmra.mrb[0].mxu0 %v1334
        %v2403 = vpop.f32.mrb[0].mxu0
        %v2404 = vadd.f32 %v1830, %v2403
        %v2405 = vpop.f32.mrb[0].mxu0
        %2406 = vmatprep.mubr.f32.mxu0 0.0
        %2407 = vmatmul.mubr.f32.gmra.mrb[0].mxu0 %v1337
        %v2408 = vpop.f32.mrb[0].mxu0
        %v2409 = vpop.f32.mrb[0].mxu0
        %2410 = vmatprep.mubr.f32.mxu0 0.0
        %2411 = vmatmul.mubr.f32.gmra.mrb[0].mxu0 %v1340
        %v2412 = vpop.f32.mrb[0].mxu0
        %v2413 = vpop.f32.mrb[0].mxu0
        %2414 = vmatprep.mubr.f32.mxu0 0.0
        %2415 = vmatmul.mubr.f32.gmra.mrb[0].mxu0 %v1996
        %v2416 = vpop.f32.mrb[0].mxu0
        %v2417 = vadd.f32 %v1843, %v2416
        %v2418 = vpop.f32.mrb[0].mxu0
        %2419 = vmatprep.mubr.f32.mxu0 0.0
        %2420 = vmatmul.mubr.f32.gmra.mrb[0].mxu0 %v1999
        %v2421 = vpop.f32.mrb[0].mxu0
        %v2422 = vadd.f32 %v1848, %v2421
        %v2423 = vpop.f32.mrb[0].mxu0
        %2424 = vmatprep.mubr.f32.mxu0 0.0
        %2425 = vmatmul.mubr.f32.gmra.mrb[0].mxu0 %v1349
        %v2426 = vpop.f32.mrb[0].mxu0
        %v2427 = vadd.f32 %v1853, %v2426
        %v2428 = vpop.f32.mrb[0].mxu0
        %2429 = vmatprep.mubr.f32.mxu0 0.0
        %2430 = vmatmul.mubr.f32.gmra.mrb[0].mxu0 %v1352
        %v2431 = vpop.f32.mrb[0].mxu0
        %v2432 = vadd.f32 %v1858, %v2431
        %v2433 = vpop.f32.mrb[0].mxu0
        %2434 = vmatprep.mubr.f32.mxu0 0.0
        %2435 = vmatmul.mubr.f32.gmra.mrb[0].mxu0 %v1355
        %v2436 = vpop.f32.mrb[0].mxu0
        %v2437 = vadd.f32 %v1863, %v2436
        %v2438 = vpop.f32.mrb[0].mxu0
        %2439 = vmatprep.mubr.f32.mxu0 0.0
        %2440 = vmatmul.mubr.f32.gmra.mrb[0].mxu0 %v1358
        %v2441 = vpop.f32.mrb[0].mxu0
        %v2442 = vadd.f32 %v1868, %v2441
        %v2443 = vpop.f32.mrb[0].mxu0
        %2444 = vmatprep.mubr.f32.mxu0 0.0
        %2445 = vmatmul.mubr.f32.gmra.mrb[0].mxu0 %v1361
        %v2446 = vpop.f32.mrb[0].mxu0
        %v2447 = vadd.f32 %v1873, %v2446
        %v2448 = vpop.f32.mrb[0].mxu0
        %2449 = vmatprep.mubr.f32.mxu0 0.0
        %2450 = vmatmul.mubr.f32.gmra.mrb[0].mxu0 %v1364
        %v2451 = vpop.f32.mrb[0].mxu0
        %v2452 = vadd.f32 %v1878, %v2451
        %v2453 = vpop.f32.mrb[0].mxu0
        %2454 = vmatprep.mubr.f32.mxu0 0.0
        %2455 = vmatmul.mubr.f32.gmra.mrb[0].mxu0 %v1367
        %v2456 = vpop.f32.mrb[0].mxu0
        %v2457 = vadd.f32 %v1883, %v2456
        %v2458 = vpop.f32.mrb[0].mxu0
        %2459 = vmatprep.mubr.f32.mxu0 0.0
        %2460 = vmatmul.mubr.f32.gmra.mrb[0].mxu0 %v1370
        %v2461 = vpop.f32.mrb[0].mxu0
        %v2462 = vadd.f32 %v1888, %v2461
        %v2463 = vpop.f32.mrb[0].mxu0
        %2464 = vmatprep.mubr.f32.mxu0 0.0
        %2465 = vmatmul.mubr.f32.gmra.mrb[0].mxu0 %v1373
        %v2466 = vpop.f32.mrb[0].mxu0
        %v2467 = vadd.f32 %v1893, %v2466
        %v2468 = vpop.f32.mrb[0].mxu0
        %2469 = vmatprep.mubr.f32.mxu0 0.0
        %2470 = vmatmul.mubr.f32.gmra.mrb[0].mxu0 %v1376
        %v2471 = vpop.f32.mrb[0].mxu0
        %v2472 = vadd.f32 %v1898, %v2471
        %v2473 = vpop.f32.mrb[0].mxu0
        %2474 = vmatprep.mubr.f32.mxu0 0.0
        %2475 = vmatmul.mubr.f32.gmra.mrb[0].mxu0 %v1379
        %v2476 = vpop.f32.mrb[0].mxu0
        %v2477 = vpop.f32.mrb[0].mxu0
        %2478 = vmatprep.mubr.f32.mxu0 0.0
        %2479 = vmatmul.mubr.f32.gmra.mrb[0].mxu0 %v1382
        %v2480 = vpop.f32.mrb[0].mxu0
        %v2481 = vpop.f32.mrb[0].mxu0
        %2482 = vmatprep.mubr.f32.mxu0 0.0
        %2483 = vmatmul.mubr.f32.gmra.mrb[0].mxu0 %v2002
        %v2484 = vpop.f32.mrb[0].mxu0
        %v2485 = vpop.f32.mrb[0].mxu0
        %2486 = vmatprep.mubr.f32.mxu0 0.0
        %2487 = vmatmul.mubr.f32.gmra.mrb[0].mxu0 %v2005
        %v2488 = vpop.f32.mrb[0].mxu0
        %v2489 = vpop.f32.mrb[0].mxu0
        %2490 = vmatprep.mubr.f32.mxu0 0.0
        %2491 = vmatmul.mubr.f32.gmra.mrb[0].mxu0 %v1391
        %v2492 = vpop.f32.mrb[0].mxu0
        %v2493 = vpop.f32.mrb[0].mxu0
        %2494 = vmatprep.mubr.f32.mxu0 0.0
        %2495 = vmatmul.mubr.f32.gmra.mrb[0].mxu0 %v1394
        %v2496 = vpop.f32.mrb[0].mxu0
        %v2497 = vpop.f32.mrb[0].mxu0
        %2498 = vmatprep.mubr.f32.mxu0 0.0
        %2499 = vmatmul.mubr.f32.gmra.mrb[0].mxu0 %v1397
        %v2500 = vpop.f32.mrb[0].mxu0
        %v2501 = vpop.f32.mrb[0].mxu0
        %2502 = vmatprep.mubr.f32.mxu0 0.0
        %2503 = vmatmul.mubr.f32.gmra.mrb[0].mxu0 %v1400
        %v2504 = vpop.f32.mrb[0].mxu0
        %v2505 = vpop.f32.mrb[0].mxu0
        %2506 = vmatprep.mubr.f32.mxu0 0.0
        %2507 = vmatmul.mubr.f32.gmra.mrb[0].mxu0 %v1403
        %v2508 = vpop.f32.mrb[0].mxu0
        %v2509 = vpop.f32.mrb[0].mxu0
        %2510 = vmatprep.mubr.f32.mxu0 0.0
        %2511 = vmatmul.mubr.f32.gmra.mrb[0].mxu0 %v1406
        %v2512 = vpop.f32.mrb[0].mxu0
        %v2513 = vpop.f32.mrb[0].mxu0
        %2514 = vmatprep.mubr.f32.mxu0 0.0
        %2515 = vmatmul.mubr.f32.gmra.mrb[0].mxu0 %v1409
        %v2516 = vpop.f32.mrb[0].mxu0
        %v2517 = vpop.f32.mrb[0].mxu0
        %2518 = vmatprep.mubr.f32.mxu0 0.0
        %2519 = vmatmul.mubr.f32.gmra.mrb[0].mxu0 %v1412
        %v2520 = vpop.f32.mrb[0].mxu0
        %v2521 = vpop.f32.mrb[0].mxu0
        %2522 = vmatprep.mubr.f32.mxu0 0.0
        %2523 = vmatmul.mubr.f32.gmra.mrb[0].mxu0 %v1415
        %v2524 = vpop.f32.mrb[0].mxu0
        %v2525 = vpop.f32.mrb[0].mxu0
        %2526 = vmatprep.mubr.f32.mxu0 0.0
        %2527 = vmatmul.mubr.f32.gmra.mrb[0].mxu0 %v1418
        %v2528 = vpop.f32.mrb[0].mxu0
        %v2529 = vpop.f32.mrb[0].mxu0
        %2530 = vmatprep.mubr.f32.mxu0 0.0
        %2531 = vmatmul.mubr.f32.gmra.mrb[0].mxu0 %v1421
        %v2532 = vpop.f32.mrb[0].mxu0
        %v2533 = vpop.f32.mrb[0].mxu0
        %2534 = vmatprep.mubr.f32.mxu0 0.0
        %2535 = vmatmul.mubr.f32.gmra.mrb[0].mxu0 %v1424
        %v2536 = vpop.f32.mrb[0].mxu0
        %v2537 = vpop.f32.mrb[0].mxu0
        %2538 = vdwg.mxu0
        %s2539 = scalar_lea.vmem %s2, 16
        %v2540 = vld [vmem:[%s2539] sm:$0x7f]
        %v2542 = vsel %vm1137, %v1118, 0
        %v2545 = vsel %vm1137, %v1119, 0
        %v2548 = vsel %vm1137, %v1120, 0
        %v2551 = vsel %vm1137, %v1121, 0
        %v2554 = vsel %vm1137, %v1122, 0
        %v2557 = vsel %vm1137, %v1123, 0
        %v2560 = vsel %vm1137, %v1124, 0
        %v2563 = vsel %vm1137, %v1125, 0
        %v2566 = vsel %vm1137, %v1126, 0
        %v2569 = vsel %vm1137, %v1127, 0
        %v2572 = vsel %vm1137, %v1128, 0
        %v2575 = vsel %vm1137, %v1129, 0
        %v2578 = vsel %vm1137, %v1130, 0
        %v2581 = vsel %vm1137, %v1131, 0
        %v2584 = vsel %vm1432, %v2540, 0
        %2586 = vmatprep.subr.mxu0 0.0
        %2587 = vmatpush1.msra.mxu0 %v2584
        %2588 = vmatprep.subr.mxu0 0.0
        %2589 = vmatpush1.msra.mxu0 0.0
        %2590 = vmatprep.subr.mxu0 0.0
        %2591 = vmatpush1.msra.mxu0 0.0
        %2592 = vmatprep.subr.mxu0 0.0
        %2593 = vmatpush1.msra.mxu0 0.0
        %2594 = vmatprep.subr.mxu0 0.0
        %2595 = vmatpush1.msra.mxu0 0.0
        %2596 = vmatprep.subr.mxu0 0.0
        %2597 = vmatpush1.msra.mxu0 0.0
        %2598 = vmatprep.subr.mxu0 0.0
        %2599 = vmatpush1.msra.mxu0 0.0
        %2600 = vmatprep.subr.mxu0 0.0
        %2601 = vmatpush1.msra.mxu0 0.0
        %2602 = vmatprep.subr.mxu0 0.0
        %2603 = vmatpush1.msra.mxu0 0.0
        %2604 = vmatprep.subr.mxu0 0.0
        %2605 = vmatpush1.msra.mxu0 0.0
        %2606 = vmatprep.subr.mxu0 0.0
        %2607 = vmatpush1.msra.mxu0 0.0
        %2608 = vmatprep.subr.mxu0 0.0
        %2609 = vmatpush1.msra.mxu0 0.0
        %2610 = vmatprep.subr.mxu0 0.0
        %2611 = vmatpush1.msra.mxu0 0.0
        %2612 = vmatprep.subr.mxu0 0.0
        %2613 = vmatpush1.msra.mxu0 0.0
        %2614 = vmatprep.subr.mxu0 0.0
        %2615 = vmatpush1.msra.mxu0 0.0
        %2616 = vmatprep.subr.mxu0 0.0
        %2617 = vmatpush1.msra.mxu0 0.0
        %2618 = vmatprep.subr.mxu0 0.0
        %2619 = vmatpush1.msra.mxu0 0.0
        %2620 = vmatprep.subr.mxu0 0.0
        %2621 = vmatpush1.msra.mxu0 0.0
        %2622 = vmatprep.subr.mxu0 0.0
        %2623 = vmatpush1.msra.mxu0 0.0
        %2624 = vmatprep.subr.mxu0 0.0
        %2625 = vmatpush1.msra.mxu0 0.0
        %2626 = vmatprep.subr.mxu0 0.0
        %2627 = vmatpush1.msra.mxu0 0.0
        %2628 = vmatprep.subr.mxu0 0.0
        %2629 = vmatpush1.msra.mxu0 0.0
        %2630 = vmatprep.subr.mxu0 0.0
        %2631 = vmatpush1.msra.mxu0 0.0
        %2632 = vmatprep.subr.mxu0 0.0
        %2633 = vmatpush1.msra.mxu0 0.0
        %2634 = vmatprep.subr.mxu0 0.0
        %2635 = vmatpush1.msra.mxu0 0.0
        %2636 = vmatprep.subr.mxu0 0.0
        %2637 = vmatpush1.msra.mxu0 0.0
        %2638 = vmatprep.subr.mxu0 0.0
        %2639 = vmatpush1.msra.mxu0 0.0
        %2640 = vmatprep.subr.mxu0 0.0
        %2641 = vmatpush1.msra.mxu0 0.0
        %2642 = vmatprep.subr.mxu0 0.0
        %2643 = vmatpush1.msra.mxu0 0.0
        %2644 = vmatprep.subr.mxu0 0.0
        %2645 = vmatpush1.msra.mxu0 0.0
        %2646 = vmatprep.subr.mxu0 0.0
        %2647 = vmatpush1.msra.mxu0 0.0
        %2648 = vmatprep.subr.mxu0 0.0
        %2649 = vmatpush1.msra.mxu0 0.0
        %2650 = vmatprep.mubr.f32.mxu0 0.0
        %2651 = vmatmul.mubr.f32.gmra.mrb[0].mxu0 %v1972
        %v2652 = vpop.f32.mrb[0].mxu0
        %v2653 = vadd.f32 0.0, %v2652
        %v2654 = vpop.f32.mrb[0].mxu0
        %2655 = vmatprep.mubr.f32.mxu0 0.0
        %2656 = vmatmul.mubr.f32.gmra.mrb[0].mxu0 %v1975
        %v2657 = vpop.f32.mrb[0].mxu0
        %v2658 = vadd.f32 0.0, %v2657
        %v2659 = vpop.f32.mrb[0].mxu0
        %2660 = vmatprep.mubr.f32.mxu0 0.0
        %2661 = vmatmul.mubr.f32.gmra.mrb[0].mxu0 %v1181
        %v2662 = vpop.f32.mrb[0].mxu0
        %v2663 = vadd.f32 0.0, %v2662
        %v2664 = vpop.f32.mrb[0].mxu0
        %2665 = vmatprep.mubr.f32.mxu0 0.0
        %2666 = vmatmul.mubr.f32.gmra.mrb[0].mxu0 %v1184
        %v2667 = vpop.f32.mrb[0].mxu0
        %v2668 = vadd.f32 0.0, %v2667
        %v2669 = vpop.f32.mrb[0].mxu0
        %2670 = vmatprep.mubr.f32.mxu0 0.0
        %2671 = vmatmul.mubr.f32.gmra.mrb[0].mxu0 %v1187
        %v2672 = vpop.f32.mrb[0].mxu0
        %v2673 = vadd.f32 0.0, %v2672
        %v2674 = vpop.f32.mrb[0].mxu0
        %2675 = vmatprep.mubr.f32.mxu0 0.0
        %2676 = vmatmul.mubr.f32.gmra.mrb[0].mxu0 %v1190
        %v2677 = vpop.f32.mrb[0].mxu0
        %v2678 = vadd.f32 0.0, %v2677
        %v2679 = vpop.f32.mrb[0].mxu0
        %2680 = vmatprep.mubr.f32.mxu0 0.0
        %2681 = vmatmul.mubr.f32.gmra.mrb[0].mxu0 %v1193
        %v2682 = vpop.f32.mrb[0].mxu0
        %v2683 = vadd.f32 0.0, %v2682
        %v2684 = vpop.f32.mrb[0].mxu0
        %2685 = vmatprep.mubr.f32.mxu0 0.0
        %2686 = vmatmul.mubr.f32.gmra.mrb[0].mxu0 %v1196
        %v2687 = vpop.f32.mrb[0].mxu0
        %v2688 = vadd.f32 0.0, %v2687
        %v2689 = vpop.f32.mrb[0].mxu0
        %2690 = vmatprep.mubr.f32.mxu0 0.0
        %2691 = vmatmul.mubr.f32.gmra.mrb[0].mxu0 %v1199
        %v2692 = vpop.f32.mrb[0].mxu0
        %v2693 = vadd.f32 0.0, %v2692
        %v2694 = vpop.f32.mrb[0].mxu0
        %2695 = vmatprep.mubr.f32.mxu0 0.0
        %2696 = vmatmul.mubr.f32.gmra.mrb[0].mxu0 %v1202
        %v2697 = vpop.f32.mrb[0].mxu0
        %v2698 = vadd.f32 0.0, %v2697
        %v2699 = vpop.f32.mrb[0].mxu0
        %2700 = vmatprep.mubr.f32.mxu0 0.0
        %2701 = vmatmul.mubr.f32.gmra.mrb[0].mxu0 %v1205
        %v2702 = vpop.f32.mrb[0].mxu0
        %v2703 = vadd.f32 0.0, %v2702
        %v2704 = vpop.f32.mrb[0].mxu0
        %2705 = vmatprep.mubr.f32.mxu0 0.0
        %2706 = vmatmul.mubr.f32.gmra.mrb[0].mxu0 %v1208
        %v2707 = vpop.f32.mrb[0].mxu0
        %v2708 = vadd.f32 0.0, %v2707
        %v2709 = vpop.f32.mrb[0].mxu0
        %2710 = vmatprep.mubr.f32.mxu0 0.0
        %2711 = vmatmul.mubr.f32.gmra.mrb[0].mxu0 %v1211
        %v2712 = vpop.f32.mrb[0].mxu0
        %v2713 = vpop.f32.mrb[0].mxu0
        %2714 = vmatprep.mubr.f32.mxu0 0.0
        %2715 = vmatmul.mubr.f32.gmra.mrb[0].mxu0 %v1214
        %v2716 = vpop.f32.mrb[0].mxu0
        %v2717 = vpop.f32.mrb[0].mxu0
        %2718 = vmatprep.mubr.f32.mxu0 0.0
        %2719 = vmatmul.mubr.f32.gmra.mrb[0].mxu0 %v1978
        %v2720 = vpop.f32.mrb[0].mxu0
        %v2721 = vadd.f32 0.0, %v2720
        %v2722 = vpop.f32.mrb[0].mxu0
        %2723 = vmatprep.mubr.f32.mxu0 0.0
        %2724 = vmatmul.mubr.f32.gmra.mrb[0].mxu0 %v1981
        %v2725 = vpop.f32.mrb[0].mxu0
        %v2726 = vadd.f32 0.0, %v2725
        %v2727 = vpop.f32.mrb[0].mxu0
        %2728 = vmatprep.mubr.f32.mxu0 0.0
        %2729 = vmatmul.mubr.f32.gmra.mrb[0].mxu0 %v1223
        %v2730 = vpop.f32.mrb[0].mxu0
        %v2731 = vadd.f32 0.0, %v2730
        %v2732 = vpop.f32.mrb[0].mxu0
        %2733 = vmatprep.mubr.f32.mxu0 0.0
        %2734 = vmatmul.mubr.f32.gmra.mrb[0].mxu0 %v1226
        %v2735 = vpop.f32.mrb[0].mxu0
        %v2736 = vadd.f32 0.0, %v2735
        %v2737 = vpop.f32.mrb[0].mxu0
        %2738 = vmatprep.mubr.f32.mxu0 0.0
        %2739 = vmatmul.mubr.f32.gmra.mrb[0].mxu0 %v1229
        %v2740 = vpop.f32.mrb[0].mxu0
        %v2741 = vadd.f32 0.0, %v2740
        %v2742 = vpop.f32.mrb[0].mxu0
        %2743 = vmatprep.mubr.f32.mxu0 0.0
        %2744 = vmatmul.mubr.f32.gmra.mrb[0].mxu0 %v1232
        %v2745 = vpop.f32.mrb[0].mxu0
        %v2746 = vadd.f32 0.0, %v2745
        %v2747 = vpop.f32.mrb[0].mxu0
        %2748 = vmatprep.mubr.f32.mxu0 0.0
        %2749 = vmatmul.mubr.f32.gmra.mrb[0].mxu0 %v1235
        %v2750 = vpop.f32.mrb[0].mxu0
        %v2751 = vadd.f32 0.0, %v2750
        %v2752 = vpop.f32.mrb[0].mxu0
        %2753 = vmatprep.mubr.f32.mxu0 0.0
        %2754 = vmatmul.mubr.f32.gmra.mrb[0].mxu0 %v1238
        %v2755 = vpop.f32.mrb[0].mxu0
        %v2756 = vadd.f32 0.0, %v2755
        %v2757 = vpop.f32.mrb[0].mxu0
        %2758 = vmatprep.mubr.f32.mxu0 0.0
        %2759 = vmatmul.mubr.f32.gmra.mrb[0].mxu0 %v1241
        %v2760 = vpop.f32.mrb[0].mxu0
        %v2761 = vadd.f32 0.0, %v2760
        %v2762 = vpop.f32.mrb[0].mxu0
        %2763 = vmatprep.mubr.f32.mxu0 0.0
        %2764 = vmatmul.mubr.f32.gmra.mrb[0].mxu0 %v1244
        %v2765 = vpop.f32.mrb[0].mxu0
        %v2766 = vadd.f32 0.0, %v2765
        %v2767 = vpop.f32.mrb[0].mxu0
        %2768 = vmatprep.mubr.f32.mxu0 0.0
        %2769 = vmatmul.mubr.f32.gmra.mrb[0].mxu0 %v1247
        %v2770 = vpop.f32.mrb[0].mxu0
        %v2771 = vadd.f32 0.0, %v2770
        %v2772 = vpop.f32.mrb[0].mxu0
        %2773 = vmatprep.mubr.f32.mxu0 0.0
        %2774 = vmatmul.mubr.f32.gmra.mrb[0].mxu0 %v1250
        %v2775 = vpop.f32.mrb[0].mxu0
        %v2776 = vadd.f32 0.0, %v2775
        %v2777 = vpop.f32.mrb[0].mxu0
        %2778 = vmatprep.mubr.f32.mxu0 0.0
        %2779 = vmatmul.mubr.f32.gmra.mrb[0].mxu0 %v1253
        %v2780 = vpop.f32.mrb[0].mxu0
        %v2781 = vpop.f32.mrb[0].mxu0
        %2782 = vmatprep.mubr.f32.mxu0 0.0
        %2783 = vmatmul.mubr.f32.gmra.mrb[0].mxu0 %v1256
        %v2784 = vpop.f32.mrb[0].mxu0
        %v2785 = vpop.f32.mrb[0].mxu0
        %2786 = vmatprep.mubr.f32.mxu0 0.0
        %2787 = vmatmul.mubr.f32.gmra.mrb[0].mxu0 %v1984
        %v2788 = vpop.f32.mrb[0].mxu0
        %v2789 = vadd.f32 0.0, %v2788
        %v2790 = vpop.f32.mrb[0].mxu0
        %2791 = vmatprep.mubr.f32.mxu0 0.0
        %2792 = vmatmul.mubr.f32.gmra.mrb[0].mxu0 %v1987
        %v2793 = vpop.f32.mrb[0].mxu0
        %v2794 = vadd.f32 0.0, %v2793
        %v2795 = vpop.f32.mrb[0].mxu0
        %2796 = vmatprep.mubr.f32.mxu0 0.0
        %2797 = vmatmul.mubr.f32.gmra.mrb[0].mxu0 %v1265
        %v2798 = vpop.f32.mrb[0].mxu0
        %v2799 = vadd.f32 0.0, %v2798
        %v2800 = vpop.f32.mrb[0].mxu0
        %2801 = vmatprep.mubr.f32.mxu0 0.0
        %2802 = vmatmul.mubr.f32.gmra.mrb[0].mxu0 %v1268
        %v2803 = vpop.f32.mrb[0].mxu0
        %v2804 = vadd.f32 0.0, %v2803
        %v2805 = vpop.f32.mrb[0].mxu0
        %2806 = vmatprep.mubr.f32.mxu0 0.0
        %2807 = vmatmul.mubr.f32.gmra.mrb[0].mxu0 %v1271
        %v2808 = vpop.f32.mrb[0].mxu0
        %v2809 = vadd.f32 0.0, %v2808
        %v2810 = vpop.f32.mrb[0].mxu0
        %2811 = vmatprep.mubr.f32.mxu0 0.0
        %2812 = vmatmul.mubr.f32.gmra.mrb[0].mxu0 %v1274
        %v2813 = vpop.f32.mrb[0].mxu0
        %v2814 = vadd.f32 0.0, %v2813
        %v2815 = vpop.f32.mrb[0].mxu0
        %2816 = vmatprep.mubr.f32.mxu0 0.0
        %2817 = vmatmul.mubr.f32.gmra.mrb[0].mxu0 %v1277
        %v2818 = vpop.f32.mrb[0].mxu0
        %v2819 = vadd.f32 0.0, %v2818
        %v2820 = vpop.f32.mrb[0].mxu0
        %2821 = vmatprep.mubr.f32.mxu0 0.0
        %2822 = vmatmul.mubr.f32.gmra.mrb[0].mxu0 %v1280
        %v2823 = vpop.f32.mrb[0].mxu0
        %v2824 = vadd.f32 0.0, %v2823
        %v2825 = vpop.f32.mrb[0].mxu0
        %2826 = vmatprep.mubr.f32.mxu0 0.0
        %2827 = vmatmul.mubr.f32.gmra.mrb[0].mxu0 %v1283
        %v2828 = vpop.f32.mrb[0].mxu0
        %v2829 = vadd.f32 0.0, %v2828
        %v2830 = vpop.f32.mrb[0].mxu0
        %2831 = vmatprep.mubr.f32.mxu0 0.0
        %2832 = vmatmul.mubr.f32.gmra.mrb[0].mxu0 %v1286
        %v2833 = vpop.f32.mrb[0].mxu0
        %v2834 = vadd.f32 0.0, %v2833
        %v2835 = vpop.f32.mrb[0].mxu0
        %2836 = vmatprep.mubr.f32.mxu0 0.0
        %2837 = vmatmul.mubr.f32.gmra.mrb[0].mxu0 %v1289
        %v2838 = vpop.f32.mrb[0].mxu0
        %v2839 = vadd.f32 0.0, %v2838
        %v2840 = vpop.f32.mrb[0].mxu0
        %2841 = vmatprep.mubr.f32.mxu0 0.0
        %2842 = vmatmul.mubr.f32.gmra.mrb[0].mxu0 %v1292
        %v2843 = vpop.f32.mrb[0].mxu0
        %v2844 = vadd.f32 0.0, %v2843
        %v2845 = vpop.f32.mrb[0].mxu0
        %2846 = vmatprep.mubr.f32.mxu0 0.0
        %2847 = vmatmul.mubr.f32.gmra.mrb[0].mxu0 %v1295
        %v2848 = vpop.f32.mrb[0].mxu0
        %v2849 = vpop.f32.mrb[0].mxu0
        %2850 = vmatprep.mubr.f32.mxu0 0.0
        %2851 = vmatmul.mubr.f32.gmra.mrb[0].mxu0 %v1298
        %v2852 = vpop.f32.mrb[0].mxu0
        %v2853 = vpop.f32.mrb[0].mxu0
        %2854 = vmatprep.mubr.f32.mxu0 0.0
        %2855 = vmatmul.mubr.f32.gmra.mrb[0].mxu0 %v1990
        %v2856 = vpop.f32.mrb[0].mxu0
        %v2857 = vadd.f32 0.0, %v2856
        %v2858 = vpop.f32.mrb[0].mxu0
        %2859 = vmatprep.mubr.f32.mxu0 0.0
        %2860 = vmatmul.mubr.f32.gmra.mrb[0].mxu0 %v1993
        %v2861 = vpop.f32.mrb[0].mxu0
        %v2862 = vadd.f32 0.0, %v2861
        %v2863 = vpop.f32.mrb[0].mxu0
        %2864 = vmatprep.mubr.f32.mxu0 0.0
        %2865 = vmatmul.mubr.f32.gmra.mrb[0].mxu0 %v1307
        %v2866 = vpop.f32.mrb[0].mxu0
        %v2867 = vadd.f32 0.0, %v2866
        %v2868 = vpop.f32.mrb[0].mxu0
        %2869 = vmatprep.mubr.f32.mxu0 0.0
        %2870 = vmatmul.mubr.f32.gmra.mrb[0].mxu0 %v1310
        %v2871 = vpop.f32.mrb[0].mxu0
        %v2872 = vadd.f32 0.0, %v2871
        %v2873 = vpop.f32.mrb[0].mxu0
        %2874 = vmatprep.mubr.f32.mxu0 0.0
        %2875 = vmatmul.mubr.f32.gmra.mrb[0].mxu0 %v1313
        %v2876 = vpop.f32.mrb[0].mxu0
        %v2877 = vadd.f32 0.0, %v2876
        %v2878 = vpop.f32.mrb[0].mxu0
        %2879 = vmatprep.mubr.f32.mxu0 0.0
        %2880 = vmatmul.mubr.f32.gmra.mrb[0].mxu0 %v1316
        %v2881 = vpop.f32.mrb[0].mxu0
        %v2882 = vadd.f32 0.0, %v2881
        %v2883 = vpop.f32.mrb[0].mxu0
        %2884 = vmatprep.mubr.f32.mxu0 0.0
        %2885 = vmatmul.mubr.f32.gmra.mrb[0].mxu0 %v1319
        %v2886 = vpop.f32.mrb[0].mxu0
        %v2887 = vadd.f32 0.0, %v2886
        %v2888 = vpop.f32.mrb[0].mxu0
        %2889 = vmatprep.mubr.f32.mxu0 0.0
        %2890 = vmatmul.mubr.f32.gmra.mrb[0].mxu0 %v1322
        %v2891 = vpop.f32.mrb[0].mxu0
        %v2892 = vadd.f32 0.0, %v2891
        %v2893 = vpop.f32.mrb[0].mxu0
        %2894 = vmatprep.mubr.f32.mxu0 0.0
        %2895 = vmatmul.mubr.f32.gmra.mrb[0].mxu0 %v1325
        %v2896 = vpop.f32.mrb[0].mxu0
        %v2897 = vadd.f32 0.0, %v2896
        %v2898 = vpop.f32.mrb[0].mxu0
        %2899 = vmatprep.mubr.f32.mxu0 0.0
        %2900 = vmatmul.mubr.f32.gmra.mrb[0].mxu0 %v1328
        %v2901 = vpop.f32.mrb[0].mxu0
        %v2902 = vadd.f32 0.0, %v2901
        %v2903 = vpop.f32.mrb[0].mxu0
        %2904 = vmatprep.mubr.f32.mxu0 0.0
        %2905 = vmatmul.mubr.f32.gmra.mrb[0].mxu0 %v1331
        %v2906 = vpop.f32.mrb[0].mxu0
        %v2907 = vadd.f32 0.0, %v2906
        %v2908 = vpop.f32.mrb[0].mxu0
        %2909 = vmatprep.mubr.f32.mxu0 0.0
        %2910 = vmatmul.mubr.f32.gmra.mrb[0].mxu0 %v1334
        %v2911 = vpop.f32.mrb[0].mxu0
        %v2912 = vadd.f32 0.0, %v2911
        %v2913 = vpop.f32.mrb[0].mxu0
        %2914 = vmatprep.mubr.f32.mxu0 0.0
        %2915 = vmatmul.mubr.f32.gmra.mrb[0].mxu0 %v1337
        %v2916 = vpop.f32.mrb[0].mxu0
        %v2917 = vpop.f32.mrb[0].mxu0
        %2918 = vmatprep.mubr.f32.mxu0 0.0
        %2919 = vmatmul.mubr.f32.gmra.mrb[0].mxu0 %v1340
        %v2920 = vpop.f32.mrb[0].mxu0
        %v2921 = vpop.f32.mrb[0].mxu0
        %2922 = vmatprep.mubr.f32.mxu0 0.0
        %2923 = vmatmul.mubr.f32.gmra.mrb[0].mxu0 %v1996
        %v2924 = vpop.f32.mrb[0].mxu0
        %v2925 = vadd.f32 0.0, %v2924
        %v2926 = vpop.f32.mrb[0].mxu0
        %2927 = vmatprep.mubr.f32.mxu0 0.0
        %2928 = vmatmul.mubr.f32.gmra.mrb[0].mxu0 %v1999
        %v2929 = vpop.f32.mrb[0].mxu0
        %v2930 = vadd.f32 0.0, %v2929
        %v2931 = vpop.f32.mrb[0].mxu0
        %2932 = vmatprep.mubr.f32.mxu0 0.0
        %2933 = vmatmul.mubr.f32.gmra.mrb[0].mxu0 %v1349
        %v2934 = vpop.f32.mrb[0].mxu0
        %v2935 = vadd.f32 0.0, %v2934
        %v2936 = vpop.f32.mrb[0].mxu0
        %2937 = vmatprep.mubr.f32.mxu0 0.0
        %2938 = vmatmul.mubr.f32.gmra.mrb[0].mxu0 %v1352
        %v2939 = vpop.f32.mrb[0].mxu0
        %v2940 = vadd.f32 0.0, %v2939
        %v2941 = vpop.f32.mrb[0].mxu0
        %2942 = vmatprep.mubr.f32.mxu0 0.0
        %2943 = vmatmul.mubr.f32.gmra.mrb[0].mxu0 %v1355
        %v2944 = vpop.f32.mrb[0].mxu0
        %v2945 = vadd.f32 0.0, %v2944
        %v2946 = vpop.f32.mrb[0].mxu0
        %2947 = vmatprep.mubr.f32.mxu0 0.0
        %2948 = vmatmul.mubr.f32.gmra.mrb[0].mxu0 %v1358
        %v2949 = vpop.f32.mrb[0].mxu0
        %v2950 = vadd.f32 0.0, %v2949
        %v2951 = vpop.f32.mrb[0].mxu0
        %2952 = vmatprep.mubr.f32.mxu0 0.0
        %2953 = vmatmul.mubr.f32.gmra.mrb[0].mxu0 %v1361
        %v2954 = vpop.f32.mrb[0].mxu0
        %v2955 = vadd.f32 0.0, %v2954
        %v2956 = vpop.f32.mrb[0].mxu0
        %2957 = vmatprep.mubr.f32.mxu0 0.0
        %2958 = vmatmul.mubr.f32.gmra.mrb[0].mxu0 %v1364
        %v2959 = vpop.f32.mrb[0].mxu0
        %v2960 = vadd.f32 0.0, %v2959
        %v2961 = vpop.f32.mrb[0].mxu0
        %2962 = vmatprep.mubr.f32.mxu0 0.0
        %2963 = vmatmul.mubr.f32.gmra.mrb[0].mxu0 %v1367
        %v2964 = vpop.f32.mrb[0].mxu0
        %v2965 = vadd.f32 0.0, %v2964
        %v2966 = vpop.f32.mrb[0].mxu0
        %2967 = vmatprep.mubr.f32.mxu0 0.0
        %2968 = vmatmul.mubr.f32.gmra.mrb[0].mxu0 %v1370
        %v2969 = vpop.f32.mrb[0].mxu0
        %v2970 = vadd.f32 0.0, %v2969
        %v2971 = vpop.f32.mrb[0].mxu0
        %2972 = vmatprep.mubr.f32.mxu0 0.0
        %2973 = vmatmul.mubr.f32.gmra.mrb[0].mxu0 %v1373
        %v2974 = vpop.f32.mrb[0].mxu0
        %v2975 = vadd.f32 0.0, %v2974
        %v2976 = vpop.f32.mrb[0].mxu0
        %2977 = vmatprep.mubr.f32.mxu0 0.0
        %2978 = vmatmul.mubr.f32.gmra.mrb[0].mxu0 %v1376
        %v2979 = vpop.f32.mrb[0].mxu0
        %v2980 = vadd.f32 0.0, %v2979
        %v2981 = vpop.f32.mrb[0].mxu0
        %2982 = vmatprep.mubr.f32.mxu0 0.0
        %2983 = vmatmul.mubr.f32.gmra.mrb[0].mxu0 %v1379
        %v2984 = vpop.f32.mrb[0].mxu0
        %v2985 = vpop.f32.mrb[0].mxu0
        %2986 = vmatprep.mubr.f32.mxu0 0.0
        %2987 = vmatmul.mubr.f32.gmra.mrb[0].mxu0 %v1382
        %v2988 = vpop.f32.mrb[0].mxu0
        %v2989 = vpop.f32.mrb[0].mxu0
        %2990 = vmatprep.mubr.f32.mxu0 0.0
        %2991 = vmatmul.mubr.f32.gmra.mrb[0].mxu0 %v2002
        %v2992 = vpop.f32.mrb[0].mxu0
        %v2993 = vadd.f32 0.0, %v2992
        %v2994 = vpop.f32.mrb[0].mxu0
        %2995 = vmatprep.mubr.f32.mxu0 0.0
        %2996 = vmatmul.mubr.f32.gmra.mrb[0].mxu0 %v2005
        %v2997 = vpop.f32.mrb[0].mxu0
        %v2998 = vadd.f32 0.0, %v2997
        %v2999 = vpop.f32.mrb[0].mxu0
        %3000 = vmatprep.mubr.f32.mxu0 0.0
        %3001 = vmatmul.mubr.f32.gmra.mrb[0].mxu0 %v1391
        %v3002 = vpop.f32.mrb[0].mxu0
        %v3003 = vadd.f32 0.0, %v3002
        %v3004 = vpop.f32.mrb[0].mxu0
        %3005 = vmatprep.mubr.f32.mxu0 0.0
        %3006 = vmatmul.mubr.f32.gmra.mrb[0].mxu0 %v1394
        %v3007 = vpop.f32.mrb[0].mxu0
        %v3008 = vadd.f32 0.0, %v3007
        %v3009 = vpop.f32.mrb[0].mxu0
        %3010 = vmatprep.mubr.f32.mxu0 0.0
        %3011 = vmatmul.mubr.f32.gmra.mrb[0].mxu0 %v1397
        %v3012 = vpop.f32.mrb[0].mxu0
        %v3013 = vadd.f32 0.0, %v3012
        %v3014 = vpop.f32.mrb[0].mxu0
        %3015 = vmatprep.mubr.f32.mxu0 0.0
        %3016 = vmatmul.mubr.f32.gmra.mrb[0].mxu0 %v1400
        %v3017 = vpop.f32.mrb[0].mxu0
        %v3018 = vadd.f32 0.0, %v3017
        %v3019 = vpop.f32.mrb[0].mxu0
        %3020 = vmatprep.mubr.f32.mxu0 0.0
        %3021 = vmatmul.mubr.f32.gmra.mrb[0].mxu0 %v1403
        %v3022 = vpop.f32.mrb[0].mxu0
        %v3023 = vadd.f32 0.0, %v3022
        %v3024 = vpop.f32.mrb[0].mxu0
        %3025 = vmatprep.mubr.f32.mxu0 0.0
        %3026 = vmatmul.mubr.f32.gmra.mrb[0].mxu0 %v1406
        %v3027 = vpop.f32.mrb[0].mxu0
        %v3028 = vadd.f32 0.0, %v3027
        %v3029 = vpop.f32.mrb[0].mxu0
        %3030 = vmatprep.mubr.f32.mxu0 0.0
        %3031 = vmatmul.mubr.f32.gmra.mrb[0].mxu0 %v1409
        %v3032 = vpop.f32.mrb[0].mxu0
        %v3033 = vadd.f32 0.0, %v3032
        %v3034 = vpop.f32.mrb[0].mxu0
        %3035 = vmatprep.mubr.f32.mxu0 0.0
        %3036 = vmatmul.mubr.f32.gmra.mrb[0].mxu0 %v1412
        %v3037 = vpop.f32.mrb[0].mxu0
        %v3038 = vadd.f32 0.0, %v3037
        %v3039 = vpop.f32.mrb[0].mxu0
        %3040 = vmatprep.mubr.f32.mxu0 0.0
        %3041 = vmatmul.mubr.f32.gmra.mrb[0].mxu0 %v1415
        %v3042 = vpop.f32.mrb[0].mxu0
        %v3043 = vadd.f32 0.0, %v3042
        %v3044 = vpop.f32.mrb[0].mxu0
        %3045 = vmatprep.mubr.f32.mxu0 0.0
        %3046 = vmatmul.mubr.f32.gmra.mrb[0].mxu0 %v1418
        %v3047 = vpop.f32.mrb[0].mxu0
        %v3048 = vadd.f32 0.0, %v3047
        %v3049 = vpop.f32.mrb[0].mxu0
        %3050 = vmatprep.mubr.f32.mxu0 0.0
        %3051 = vmatmul.mubr.f32.gmra.mrb[0].mxu0 %v1421
        %v3052 = vpop.f32.mrb[0].mxu0
        %v3053 = vpop.f32.mrb[0].mxu0
        %3054 = vmatprep.mubr.f32.mxu0 0.0
        %3055 = vmatmul.mubr.f32.gmra.mrb[0].mxu0 %v1424
        %v3056 = vpop.f32.mrb[0].mxu0
        %v3057 = vpop.f32.mrb[0].mxu0
        %3058 = vmatprep.mubr.f32.mxu0 0.0
        %3059 = vmatmul.mubr.f32.gmra.mrb[0].mxu0 %v2542
        %v3060 = vpop.f32.mrb[0].mxu0
        %v3061 = vpop.f32.mrb[0].mxu0
        %3062 = vmatprep.mubr.f32.mxu0 0.0
        %3063 = vmatmul.mubr.f32.gmra.mrb[0].mxu0 %v2545
        %v3064 = vpop.f32.mrb[0].mxu0
        %v3065 = vpop.f32.mrb[0].mxu0
        %3066 = vmatprep.mubr.f32.mxu0 0.0
        %3067 = vmatmul.mubr.f32.gmra.mrb[0].mxu0 %v2548
        %v3068 = vpop.f32.mrb[0].mxu0
        %v3069 = vpop.f32.mrb[0].mxu0
        %3070 = vmatprep.mubr.f32.mxu0 0.0
        %3071 = vmatmul.mubr.f32.gmra.mrb[0].mxu0 %v2551
        %v3072 = vpop.f32.mrb[0].mxu0
        %v3073 = vpop.f32.mrb[0].mxu0
        %3074 = vmatprep.mubr.f32.mxu0 0.0
        %3075 = vmatmul.mubr.f32.gmra.mrb[0].mxu0 %v2554
        %v3076 = vpop.f32.mrb[0].mxu0
        %v3077 = vpop.f32.mrb[0].mxu0
        %3078 = vmatprep.mubr.f32.mxu0 0.0
        %3079 = vmatmul.mubr.f32.gmra.mrb[0].mxu0 %v2557
        %v3080 = vpop.f32.mrb[0].mxu0
        %v3081 = vpop.f32.mrb[0].mxu0
        %3082 = vmatprep.mubr.f32.mxu0 0.0
        %3083 = vmatmul.mubr.f32.gmra.mrb[0].mxu0 %v2560
        %v3084 = vpop.f32.mrb[0].mxu0
        %v3085 = vpop.f32.mrb[0].mxu0
        %3086 = vmatprep.mubr.f32.mxu0 0.0
        %3087 = vmatmul.mubr.f32.gmra.mrb[0].mxu0 %v2563
        %v3088 = vpop.f32.mrb[0].mxu0
        %v3089 = vpop.f32.mrb[0].mxu0
        %3090 = vmatprep.mubr.f32.mxu0 0.0
        %3091 = vmatmul.mubr.f32.gmra.mrb[0].mxu0 %v2566
        %v3092 = vpop.f32.mrb[0].mxu0
        %v3093 = vpop.f32.mrb[0].mxu0
        %3094 = vmatprep.mubr.f32.mxu0 0.0
        %3095 = vmatmul.mubr.f32.gmra.mrb[0].mxu0 %v2569
        %v3096 = vpop.f32.mrb[0].mxu0
        %v3097 = vpop.f32.mrb[0].mxu0
        %3098 = vmatprep.mubr.f32.mxu0 0.0
        %3099 = vmatmul.mubr.f32.gmra.mrb[0].mxu0 %v2572
        %v3100 = vpop.f32.mrb[0].mxu0
        %v3101 = vpop.f32.mrb[0].mxu0
        %3102 = vmatprep.mubr.f32.mxu0 0.0
        %3103 = vmatmul.mubr.f32.gmra.mrb[0].mxu0 %v2575
        %v3104 = vpop.f32.mrb[0].mxu0
        %v3105 = vpop.f32.mrb[0].mxu0
        %3106 = vmatprep.mubr.f32.mxu0 0.0
        %3107 = vmatmul.mubr.f32.gmra.mrb[0].mxu0 %v2578
        %v3108 = vpop.f32.mrb[0].mxu0
        %v3109 = vpop.f32.mrb[0].mxu0
        %3110 = vmatprep.mubr.f32.mxu0 0.0
        %3111 = vmatmul.mubr.f32.gmra.mrb[0].mxu0 %v2581
        %v3112 = vpop.f32.mrb[0].mxu0
        %v3113 = vpop.f32.mrb[0].mxu0
        %3114 = vdwg.mxu0
        %v3115 = vadd.f32 %v2077, %v2653
        %v3116 = vadd.f32 %v2082, %v2658
        %v3117 = vadd.f32 %v2087, %v2663
        %v3118 = vadd.f32 %v2092, %v2668
        %v3119 = vadd.f32 %v2097, %v2673
        %v3120 = vadd.f32 %v2102, %v2678
        %v3121 = vadd.f32 %v2107, %v2683
        %v3122 = vadd.f32 %v2112, %v2688
        %v3123 = vadd.f32 %v2117, %v2693
        %v3124 = vadd.f32 %v2122, %v2698
        %v3125 = vadd.f32 %v2127, %v2703
        %v3126 = vadd.f32 %v2132, %v2708
        %v3127 = vadd.f32 %v2145, %v2721
        %v3128 = vadd.f32 %v2150, %v2726
        %v3129 = vadd.f32 %v2155, %v2731
        %v3130 = vadd.f32 %v2160, %v2736
        %v3131 = vadd.f32 %v2165, %v2741
        %v3132 = vadd.f32 %v2170, %v2746
        %v3133 = vadd.f32 %v2175, %v2751
        %v3134 = vadd.f32 %v2180, %v2756
        %v3135 = vadd.f32 %v2185, %v2761
        %v3136 = vadd.f32 %v2190, %v2766
        %v3137 = vadd.f32 %v2195, %v2771
        %v3138 = vadd.f32 %v2200, %v2776
        %v3139 = vadd.f32 %v2213, %v2789
        %v3140 = vadd.f32 %v2218, %v2794
        %v3141 = vadd.f32 %v2223, %v2799
        %v3142 = vadd.f32 %v2228, %v2804
        %v3143 = vadd.f32 %v2233, %v2809
        %v3144 = vadd.f32 %v2238, %v2814
        %v3145 = vadd.f32 %v2243, %v2819
        %v3146 = vadd.f32 %v2248, %v2824
        %v3147 = vadd.f32 %v2253, %v2829
        %v3148 = vadd.f32 %v2258, %v2834
        %v3149 = vadd.f32 %v2263, %v2839
        %v3150 = vadd.f32 %v2268, %v2844
        %v3151 = vadd.f32 %v2281, %v2857
        %v3152 = vadd.f32 %v2286, %v2862
        %v3153 = vadd.f32 %v2291, %v2867
        %v3154 = vadd.f32 %v2296, %v2872
        %v3155 = vadd.f32 %v2301, %v2877
        %v3156 = vadd.f32 %v2306, %v2882
        %v3157 = vadd.f32 %v2311, %v2887
        %v3158 = vadd.f32 %v2316, %v2892
        %v3159 = vadd.f32 %v2321, %v2897
        %v3160 = vadd.f32 %v2326, %v2902
        %v3161 = vadd.f32 %v2331, %v2907
        %v3162 = vadd.f32 %v2336, %v2912
        %v3163 = vadd.f32 %v2349, %v2925
        %v3164 = vadd.f32 %v2354, %v2930
        %v3165 = vadd.f32 %v2359, %v2935
        %v3166 = vadd.f32 %v2364, %v2940
        %v3167 = vadd.f32 %v2369, %v2945
        %v3168 = vadd.f32 %v2374, %v2950
        %v3169 = vadd.f32 %v2379, %v2955
        %v3170 = vadd.f32 %v2384, %v2960
        %v3171 = vadd.f32 %v2389, %v2965
        %v3172 = vadd.f32 %v2394, %v2970
        %v3173 = vadd.f32 %v2399, %v2975
        %v3174 = vadd.f32 %v2404, %v2980
        %v3175 = vadd.f32 %v2417, %v2993
        %v3176 = vadd.f32 %v2422, %v2998
        %v3177 = vadd.f32 %v2427, %v3003
        %v3178 = vadd.f32 %v2432, %v3008
        %v3179 = vadd.f32 %v2437, %v3013
        %v3180 = vadd.f32 %v2442, %v3018
        %v3181 = vadd.f32 %v2447, %v3023
        %v3182 = vadd.f32 %v2452, %v3028
        %v3183 = vadd.f32 %v2457, %v3033
        %v3184 = vadd.f32 %v2462, %v3038
        %v3185 = vadd.f32 %v2467, %v3043
        %v3186 = vadd.f32 %v2472, %v3048
        %s3187 = scalar_lea.vmem %s2, 24
        %v3188 = vld [vmem:[%s3187] sm:$0x7f]
        %v3190 = vsel %vm1137, %v1132, 0
        %v3193 = vsel %vm1137, %v1133, 0
        %v3196 = vsel %vm1432, %v3188, 0
        %3198 = vmatprep.subr.mxu0 0.0
        %3199 = vmatpush1.msra.mxu0 %v3196
        %3200 = vmatprep.subr.mxu0 0.0
        %3201 = vmatpush1.msra.mxu0 0.0
        %3202 = vmatprep.subr.mxu0 0.0
        %3203 = vmatpush1.msra.mxu0 0.0
        %3204 = vmatprep.subr.mxu0 0.0
        %3205 = vmatpush1.msra.mxu0 0.0
        %3206 = vmatprep.subr.mxu0 0.0
        %3207 = vmatpush1.msra.mxu0 0.0
        %3208 = vmatprep.subr.mxu0 0.0
        %3209 = vmatpush1.msra.mxu0 0.0
        %3210 = vmatprep.subr.mxu0 0.0
        %3211 = vmatpush1.msra.mxu0 0.0
        %3212 = vmatprep.subr.mxu0 0.0
        %3213 = vmatpush1.msra.mxu0 0.0
        %3214 = vmatprep.subr.mxu0 0.0
        %3215 = vmatpush1.msra.mxu0 0.0
        %3216 = vmatprep.subr.mxu0 0.0
        %3217 = vmatpush1.msra.mxu0 0.0
        %3218 = vmatprep.subr.mxu0 0.0
        %3219 = vmatpush1.msra.mxu0 0.0
        %3220 = vmatprep.subr.mxu0 0.0
        %3221 = vmatpush1.msra.mxu0 0.0
        %3222 = vmatprep.subr.mxu0 0.0
        %3223 = vmatpush1.msra.mxu0 0.0
        %3224 = vmatprep.subr.mxu0 0.0
        %3225 = vmatpush1.msra.mxu0 0.0
        %3226 = vmatprep.subr.mxu0 0.0
        %3227 = vmatpush1.msra.mxu0 0.0
        %3228 = vmatprep.subr.mxu0 0.0
        %3229 = vmatpush1.msra.mxu0 0.0
        %3230 = vmatprep.subr.mxu0 0.0
        %3231 = vmatpush1.msra.mxu0 0.0
        %3232 = vmatprep.subr.mxu0 0.0
        %3233 = vmatpush1.msra.mxu0 0.0
        %3234 = vmatprep.subr.mxu0 0.0
        %3235 = vmatpush1.msra.mxu0 0.0
        %3236 = vmatprep.subr.mxu0 0.0
        %3237 = vmatpush1.msra.mxu0 0.0
        %3238 = vmatprep.subr.mxu0 0.0
        %3239 = vmatpush1.msra.mxu0 0.0
        %3240 = vmatprep.subr.mxu0 0.0
        %3241 = vmatpush1.msra.mxu0 0.0
        %3242 = vmatprep.subr.mxu0 0.0
        %3243 = vmatpush1.msra.mxu0 0.0
        %3244 = vmatprep.subr.mxu0 0.0
        %3245 = vmatpush1.msra.mxu0 0.0
        %3246 = vmatprep.subr.mxu0 0.0
        %3247 = vmatpush1.msra.mxu0 0.0
        %3248 = vmatprep.subr.mxu0 0.0
        %3249 = vmatpush1.msra.mxu0 0.0
        %3250 = vmatprep.subr.mxu0 0.0
        %3251 = vmatpush1.msra.mxu0 0.0
        %3252 = vmatprep.subr.mxu0 0.0
        %3253 = vmatpush1.msra.mxu0 0.0
        %3254 = vmatprep.subr.mxu0 0.0
        %3255 = vmatpush1.msra.mxu0 0.0
        %3256 = vmatprep.subr.mxu0 0.0
        %3257 = vmatpush1.msra.mxu0 0.0
        %3258 = vmatprep.subr.mxu0 0.0
        %3259 = vmatpush1.msra.mxu0 0.0
        %3260 = vmatprep.subr.mxu0 0.0
        %3261 = vmatpush1.msra.mxu0 0.0
        %3262 = vmatprep.mubr.f32.mxu0 0.0
        %3263 = vmatmul.mubr.f32.gmra.mrb[0].mxu0 %v1181
        %v3264 = vpop.f32.mrb[0].mxu0
        %v3265 = vadd.f32 0.0, %v3264
        %v3266 = vpop.f32.mrb[0].mxu0
        %3267 = vmatprep.mubr.f32.mxu0 0.0
        %3268 = vmatmul.mubr.f32.gmra.mrb[0].mxu0 %v1184
        %v3269 = vpop.f32.mrb[0].mxu0
        %v3270 = vadd.f32 0.0, %v3269
        %v3271 = vpop.f32.mrb[0].mxu0
        %3272 = vmatprep.mubr.f32.mxu0 0.0
        %3273 = vmatmul.mubr.f32.gmra.mrb[0].mxu0 %v1187
        %v3274 = vpop.f32.mrb[0].mxu0
        %v3275 = vadd.f32 0.0, %v3274
        %v3276 = vpop.f32.mrb[0].mxu0
        %3277 = vmatprep.mubr.f32.mxu0 0.0
        %3278 = vmatmul.mubr.f32.gmra.mrb[0].mxu0 %v1190
        %v3279 = vpop.f32.mrb[0].mxu0
        %v3280 = vadd.f32 0.0, %v3279
        %v3281 = vpop.f32.mrb[0].mxu0
        %3282 = vmatprep.mubr.f32.mxu0 0.0
        %3283 = vmatmul.mubr.f32.gmra.mrb[0].mxu0 %v1193
        %v3284 = vpop.f32.mrb[0].mxu0
        %v3285 = vadd.f32 0.0, %v3284
        %v3286 = vpop.f32.mrb[0].mxu0
        %3287 = vmatprep.mubr.f32.mxu0 0.0
        %3288 = vmatmul.mubr.f32.gmra.mrb[0].mxu0 %v1196
        %v3289 = vpop.f32.mrb[0].mxu0
        %v3290 = vadd.f32 0.0, %v3289
        %v3291 = vpop.f32.mrb[0].mxu0
        %3292 = vmatprep.mubr.f32.mxu0 0.0
        %3293 = vmatmul.mubr.f32.gmra.mrb[0].mxu0 %v1199
        %v3294 = vpop.f32.mrb[0].mxu0
        %v3295 = vadd.f32 0.0, %v3294
        %v3296 = vpop.f32.mrb[0].mxu0
        %3297 = vmatprep.mubr.f32.mxu0 0.0
        %3298 = vmatmul.mubr.f32.gmra.mrb[0].mxu0 %v1202
        %v3299 = vpop.f32.mrb[0].mxu0
        %v3300 = vadd.f32 0.0, %v3299
        %v3301 = vpop.f32.mrb[0].mxu0
        %3302 = vmatprep.mubr.f32.mxu0 0.0
        %3303 = vmatmul.mubr.f32.gmra.mrb[0].mxu0 %v1205
        %v3304 = vpop.f32.mrb[0].mxu0
        %v3305 = vadd.f32 0.0, %v3304
        %v3306 = vpop.f32.mrb[0].mxu0
        %3307 = vmatprep.mubr.f32.mxu0 0.0
        %3308 = vmatmul.mubr.f32.gmra.mrb[0].mxu0 %v1208
        %v3309 = vpop.f32.mrb[0].mxu0
        %v3310 = vadd.f32 0.0, %v3309
        %v3311 = vpop.f32.mrb[0].mxu0
        %3312 = vmatprep.mubr.f32.mxu0 0.0
        %3313 = vmatmul.mubr.f32.gmra.mrb[0].mxu0 %v1211
        %v3314 = vpop.f32.mrb[0].mxu0
        %v3315 = vadd.f32 0.0, %v3314
        %v3316 = vpop.f32.mrb[0].mxu0
        %3317 = vmatprep.mubr.f32.mxu0 0.0
        %3318 = vmatmul.mubr.f32.gmra.mrb[0].mxu0 %v1214
        %v3319 = vpop.f32.mrb[0].mxu0
        %v3320 = vadd.f32 0.0, %v3319
        %v3321 = vpop.f32.mrb[0].mxu0
        %3322 = vmatprep.mubr.f32.mxu0 0.0
        %3323 = vmatmul.mubr.f32.gmra.mrb[0].mxu0 %v1217
        %v3324 = vpop.f32.mrb[0].mxu0
        %v3325 = vpop.f32.mrb[0].mxu0
        %3326 = vmatprep.mubr.f32.mxu0 0.0
        %3327 = vmatmul.mubr.f32.gmra.mrb[0].mxu0 %v1220
        %v3328 = vpop.f32.mrb[0].mxu0
        %v3329 = vpop.f32.mrb[0].mxu0
        %3330 = vmatprep.mubr.f32.mxu0 0.0
        %3331 = vmatmul.mubr.f32.gmra.mrb[0].mxu0 %v1223
        %v3332 = vpop.f32.mrb[0].mxu0
        %v3333 = vadd.f32 0.0, %v3332
        %v3334 = vpop.f32.mrb[0].mxu0
        %3335 = vmatprep.mubr.f32.mxu0 0.0
        %3336 = vmatmul.mubr.f32.gmra.mrb[0].mxu0 %v1226
        %v3337 = vpop.f32.mrb[0].mxu0
        %v3338 = vadd.f32 0.0, %v3337
        %v3339 = vpop.f32.mrb[0].mxu0
        %3340 = vmatprep.mubr.f32.mxu0 0.0
        %3341 = vmatmul.mubr.f32.gmra.mrb[0].mxu0 %v1229
        %v3342 = vpop.f32.mrb[0].mxu0
        %v3343 = vadd.f32 0.0, %v3342
        %v3344 = vpop.f32.mrb[0].mxu0
        %3345 = vmatprep.mubr.f32.mxu0 0.0
        %3346 = vmatmul.mubr.f32.gmra.mrb[0].mxu0 %v1232
        %v3347 = vpop.f32.mrb[0].mxu0
        %v3348 = vadd.f32 0.0, %v3347
        %v3349 = vpop.f32.mrb[0].mxu0
        %3350 = vmatprep.mubr.f32.mxu0 0.0
        %3351 = vmatmul.mubr.f32.gmra.mrb[0].mxu0 %v1235
        %v3352 = vpop.f32.mrb[0].mxu0
        %v3353 = vadd.f32 0.0, %v3352
        %v3354 = vpop.f32.mrb[0].mxu0
        %3355 = vmatprep.mubr.f32.mxu0 0.0
        %3356 = vmatmul.mubr.f32.gmra.mrb[0].mxu0 %v1238
        %v3357 = vpop.f32.mrb[0].mxu0
        %v3358 = vadd.f32 0.0, %v3357
        %v3359 = vpop.f32.mrb[0].mxu0
        %3360 = vmatprep.mubr.f32.mxu0 0.0
        %3361 = vmatmul.mubr.f32.gmra.mrb[0].mxu0 %v1241
        %v3362 = vpop.f32.mrb[0].mxu0
        %v3363 = vadd.f32 0.0, %v3362
        %v3364 = vpop.f32.mrb[0].mxu0
        %3365 = vmatprep.mubr.f32.mxu0 0.0
        %3366 = vmatmul.mubr.f32.gmra.mrb[0].mxu0 %v1244
        %v3367 = vpop.f32.mrb[0].mxu0
        %v3368 = vadd.f32 0.0, %v3367
        %v3369 = vpop.f32.mrb[0].mxu0
        %3370 = vmatprep.mubr.f32.mxu0 0.0
        %3371 = vmatmul.mubr.f32.gmra.mrb[0].mxu0 %v1247
        %v3372 = vpop.f32.mrb[0].mxu0
        %v3373 = vadd.f32 0.0, %v3372
        %v3374 = vpop.f32.mrb[0].mxu0
        %3375 = vmatprep.mubr.f32.mxu0 0.0
        %3376 = vmatmul.mubr.f32.gmra.mrb[0].mxu0 %v1250
        %v3377 = vpop.f32.mrb[0].mxu0
        %v3378 = vadd.f32 0.0, %v3377
        %v3379 = vpop.f32.mrb[0].mxu0
        %3380 = vmatprep.mubr.f32.mxu0 0.0
        %3381 = vmatmul.mubr.f32.gmra.mrb[0].mxu0 %v1253
        %v3382 = vpop.f32.mrb[0].mxu0
        %v3383 = vadd.f32 0.0, %v3382
        %v3384 = vpop.f32.mrb[0].mxu0
        %3385 = vmatprep.mubr.f32.mxu0 0.0
        %3386 = vmatmul.mubr.f32.gmra.mrb[0].mxu0 %v1256
        %v3387 = vpop.f32.mrb[0].mxu0
        %v3388 = vadd.f32 0.0, %v3387
        %v3389 = vpop.f32.mrb[0].mxu0
        %3390 = vmatprep.mubr.f32.mxu0 0.0
        %3391 = vmatmul.mubr.f32.gmra.mrb[0].mxu0 %v1259
        %v3392 = vpop.f32.mrb[0].mxu0
        %v3393 = vpop.f32.mrb[0].mxu0
        %3394 = vmatprep.mubr.f32.mxu0 0.0
        %3395 = vmatmul.mubr.f32.gmra.mrb[0].mxu0 %v1262
        %v3396 = vpop.f32.mrb[0].mxu0
        %v3397 = vpop.f32.mrb[0].mxu0
        %3398 = vmatprep.mubr.f32.mxu0 0.0
        %3399 = vmatmul.mubr.f32.gmra.mrb[0].mxu0 %v1265
        %v3400 = vpop.f32.mrb[0].mxu0
        %v3401 = vadd.f32 0.0, %v3400
        %v3402 = vpop.f32.mrb[0].mxu0
        %3403 = vmatprep.mubr.f32.mxu0 0.0
        %3404 = vmatmul.mubr.f32.gmra.mrb[0].mxu0 %v1268
        %v3405 = vpop.f32.mrb[0].mxu0
        %v3406 = vadd.f32 0.0, %v3405
        %v3407 = vpop.f32.mrb[0].mxu0
        %3408 = vmatprep.mubr.f32.mxu0 0.0
        %3409 = vmatmul.mubr.f32.gmra.mrb[0].mxu0 %v1271
        %v3410 = vpop.f32.mrb[0].mxu0
        %v3411 = vadd.f32 0.0, %v3410
        %v3412 = vpop.f32.mrb[0].mxu0
        %3413 = vmatprep.mubr.f32.mxu0 0.0
        %3414 = vmatmul.mubr.f32.gmra.mrb[0].mxu0 %v1274
        %v3415 = vpop.f32.mrb[0].mxu0
        %v3416 = vadd.f32 0.0, %v3415
        %v3417 = vpop.f32.mrb[0].mxu0
        %3418 = vmatprep.mubr.f32.mxu0 0.0
        %3419 = vmatmul.mubr.f32.gmra.mrb[0].mxu0 %v1277
        %v3420 = vpop.f32.mrb[0].mxu0
        %v3421 = vadd.f32 0.0, %v3420
        %v3422 = vpop.f32.mrb[0].mxu0
        %3423 = vmatprep.mubr.f32.mxu0 0.0
        %3424 = vmatmul.mubr.f32.gmra.mrb[0].mxu0 %v1280
        %v3425 = vpop.f32.mrb[0].mxu0
        %v3426 = vadd.f32 0.0, %v3425
        %v3427 = vpop.f32.mrb[0].mxu0
        %3428 = vmatprep.mubr.f32.mxu0 0.0
        %3429 = vmatmul.mubr.f32.gmra.mrb[0].mxu0 %v1283
        %v3430 = vpop.f32.mrb[0].mxu0
        %v3431 = vadd.f32 0.0, %v3430
        %v3432 = vpop.f32.mrb[0].mxu0
        %3433 = vmatprep.mubr.f32.mxu0 0.0
        %3434 = vmatmul.mubr.f32.gmra.mrb[0].mxu0 %v1286
        %v3435 = vpop.f32.mrb[0].mxu0
        %v3436 = vadd.f32 0.0, %v3435
        %v3437 = vpop.f32.mrb[0].mxu0
        %3438 = vmatprep.mubr.f32.mxu0 0.0
        %3439 = vmatmul.mubr.f32.gmra.mrb[0].mxu0 %v1289
        %v3440 = vpop.f32.mrb[0].mxu0
        %v3441 = vadd.f32 0.0, %v3440
        %v3442 = vpop.f32.mrb[0].mxu0
        %3443 = vmatprep.mubr.f32.mxu0 0.0
        %3444 = vmatmul.mubr.f32.gmra.mrb[0].mxu0 %v1292
        %v3445 = vpop.f32.mrb[0].mxu0
        %v3446 = vadd.f32 0.0, %v3445
        %v3447 = vpop.f32.mrb[0].mxu0
        %3448 = vmatprep.mubr.f32.mxu0 0.0
        %3449 = vmatmul.mubr.f32.gmra.mrb[0].mxu0 %v1295
        %v3450 = vpop.f32.mrb[0].mxu0
        %v3451 = vadd.f32 0.0, %v3450
        %v3452 = vpop.f32.mrb[0].mxu0
        %3453 = vmatprep.mubr.f32.mxu0 0.0
        %3454 = vmatmul.mubr.f32.gmra.mrb[0].mxu0 %v1298
        %v3455 = vpop.f32.mrb[0].mxu0
        %v3456 = vadd.f32 0.0, %v3455
        %v3457 = vpop.f32.mrb[0].mxu0
        %3458 = vmatprep.mubr.f32.mxu0 0.0
        %3459 = vmatmul.mubr.f32.gmra.mrb[0].mxu0 %v1301
        %v3460 = vpop.f32.mrb[0].mxu0
        %v3461 = vpop.f32.mrb[0].mxu0
        %3462 = vmatprep.mubr.f32.mxu0 0.0
        %3463 = vmatmul.mubr.f32.gmra.mrb[0].mxu0 %v1304
        %v3464 = vpop.f32.mrb[0].mxu0
        %v3465 = vpop.f32.mrb[0].mxu0
        %3466 = vmatprep.mubr.f32.mxu0 0.0
        %3467 = vmatmul.mubr.f32.gmra.mrb[0].mxu0 %v1307
        %v3468 = vpop.f32.mrb[0].mxu0
        %v3469 = vadd.f32 0.0, %v3468
        %v3470 = vpop.f32.mrb[0].mxu0
        %3471 = vmatprep.mubr.f32.mxu0 0.0
        %3472 = vmatmul.mubr.f32.gmra.mrb[0].mxu0 %v1310
        %v3473 = vpop.f32.mrb[0].mxu0
        %v3474 = vadd.f32 0.0, %v3473
        %v3475 = vpop.f32.mrb[0].mxu0
        %3476 = vmatprep.mubr.f32.mxu0 0.0
        %3477 = vmatmul.mubr.f32.gmra.mrb[0].mxu0 %v1313
        %v3478 = vpop.f32.mrb[0].mxu0
        %v3479 = vadd.f32 0.0, %v3478
        %v3480 = vpop.f32.mrb[0].mxu0
        %3481 = vmatprep.mubr.f32.mxu0 0.0
        %3482 = vmatmul.mubr.f32.gmra.mrb[0].mxu0 %v1316
        %v3483 = vpop.f32.mrb[0].mxu0
        %v3484 = vadd.f32 0.0, %v3483
        %v3485 = vpop.f32.mrb[0].mxu0
        %3486 = vmatprep.mubr.f32.mxu0 0.0
        %3487 = vmatmul.mubr.f32.gmra.mrb[0].mxu0 %v1319
        %v3488 = vpop.f32.mrb[0].mxu0
        %v3489 = vadd.f32 0.0, %v3488
        %v3490 = vpop.f32.mrb[0].mxu0
        %3491 = vmatprep.mubr.f32.mxu0 0.0
        %3492 = vmatmul.mubr.f32.gmra.mrb[0].mxu0 %v1322
        %v3493 = vpop.f32.mrb[0].mxu0
        %v3494 = vadd.f32 0.0, %v3493
        %v3495 = vpop.f32.mrb[0].mxu0
        %3496 = vmatprep.mubr.f32.mxu0 0.0
        %3497 = vmatmul.mubr.f32.gmra.mrb[0].mxu0 %v1325
        %v3498 = vpop.f32.mrb[0].mxu0
        %v3499 = vadd.f32 0.0, %v3498
        %v3500 = vpop.f32.mrb[0].mxu0
        %3501 = vmatprep.mubr.f32.mxu0 0.0
        %3502 = vmatmul.mubr.f32.gmra.mrb[0].mxu0 %v1328
        %v3503 = vpop.f32.mrb[0].mxu0
        %v3504 = vadd.f32 0.0, %v3503
        %v3505 = vpop.f32.mrb[0].mxu0
        %3506 = vmatprep.mubr.f32.mxu0 0.0
        %3507 = vmatmul.mubr.f32.gmra.mrb[0].mxu0 %v1331
        %v3508 = vpop.f32.mrb[0].mxu0
        %v3509 = vadd.f32 0.0, %v3508
        %v3510 = vpop.f32.mrb[0].mxu0
        %3511 = vmatprep.mubr.f32.mxu0 0.0
        %3512 = vmatmul.mubr.f32.gmra.mrb[0].mxu0 %v1334
        %v3513 = vpop.f32.mrb[0].mxu0
        %v3514 = vadd.f32 0.0, %v3513
        %v3515 = vpop.f32.mrb[0].mxu0
        %3516 = vmatprep.mubr.f32.mxu0 0.0
        %3517 = vmatmul.mubr.f32.gmra.mrb[0].mxu0 %v1337
        %v3518 = vpop.f32.mrb[0].mxu0
        %v3519 = vadd.f32 0.0, %v3518
        %v3520 = vpop.f32.mrb[0].mxu0
        %3521 = vmatprep.mubr.f32.mxu0 0.0
        %3522 = vmatmul.mubr.f32.gmra.mrb[0].mxu0 %v1340
        %v3523 = vpop.f32.mrb[0].mxu0
        %v3524 = vadd.f32 0.0, %v3523
        %v3525 = vpop.f32.mrb[0].mxu0
        %3526 = vmatprep.mubr.f32.mxu0 0.0
        %3527 = vmatmul.mubr.f32.gmra.mrb[0].mxu0 %v1343
        %v3528 = vpop.f32.mrb[0].mxu0
        %v3529 = vpop.f32.mrb[0].mxu0
        %3530 = vmatprep.mubr.f32.mxu0 0.0
        %3531 = vmatmul.mubr.f32.gmra.mrb[0].mxu0 %v1346
        %v3532 = vpop.f32.mrb[0].mxu0
        %v3533 = vpop.f32.mrb[0].mxu0
        %3534 = vmatprep.mubr.f32.mxu0 0.0
        %3535 = vmatmul.mubr.f32.gmra.mrb[0].mxu0 %v1349
        %v3536 = vpop.f32.mrb[0].mxu0
        %v3537 = vadd.f32 0.0, %v3536
        %v3538 = vpop.f32.mrb[0].mxu0
        %3539 = vmatprep.mubr.f32.mxu0 0.0
        %3540 = vmatmul.mubr.f32.gmra.mrb[0].mxu0 %v1352
        %v3541 = vpop.f32.mrb[0].mxu0
        %v3542 = vadd.f32 0.0, %v3541
        %v3543 = vpop.f32.mrb[0].mxu0
        %3544 = vmatprep.mubr.f32.mxu0 0.0
        %3545 = vmatmul.mubr.f32.gmra.mrb[0].mxu0 %v1355
        %v3546 = vpop.f32.mrb[0].mxu0
        %v3547 = vadd.f32 0.0, %v3546
        %v3548 = vpop.f32.mrb[0].mxu0
        %3549 = vmatprep.mubr.f32.mxu0 0.0
        %3550 = vmatmul.mubr.f32.gmra.mrb[0].mxu0 %v1358
        %v3551 = vpop.f32.mrb[0].mxu0
        %v3552 = vadd.f32 0.0, %v3551
        %v3553 = vpop.f32.mrb[0].mxu0
        %3554 = vmatprep.mubr.f32.mxu0 0.0
        %3555 = vmatmul.mubr.f32.gmra.mrb[0].mxu0 %v1361
        %v3556 = vpop.f32.mrb[0].mxu0
        %v3557 = vadd.f32 0.0, %v3556
        %v3558 = vpop.f32.mrb[0].mxu0
        %3559 = vmatprep.mubr.f32.mxu0 0.0
        %3560 = vmatmul.mubr.f32.gmra.mrb[0].mxu0 %v1364
        %v3561 = vpop.f32.mrb[0].mxu0
        %v3562 = vadd.f32 0.0, %v3561
        %v3563 = vpop.f32.mrb[0].mxu0
        %3564 = vmatprep.mubr.f32.mxu0 0.0
        %3565 = vmatmul.mubr.f32.gmra.mrb[0].mxu0 %v1367
        %v3566 = vpop.f32.mrb[0].mxu0
        %v3567 = vadd.f32 0.0, %v3566
        %v3568 = vpop.f32.mrb[0].mxu0
        %3569 = vmatprep.mubr.f32.mxu0 0.0
        %3570 = vmatmul.mubr.f32.gmra.mrb[0].mxu0 %v1370
        %v3571 = vpop.f32.mrb[0].mxu0
        %v3572 = vadd.f32 0.0, %v3571
        %v3573 = vpop.f32.mrb[0].mxu0
        %3574 = vmatprep.mubr.f32.mxu0 0.0
        %3575 = vmatmul.mubr.f32.gmra.mrb[0].mxu0 %v1373
        %v3576 = vpop.f32.mrb[0].mxu0
        %v3577 = vadd.f32 0.0, %v3576
        %v3578 = vpop.f32.mrb[0].mxu0
        %3579 = vmatprep.mubr.f32.mxu0 0.0
        %3580 = vmatmul.mubr.f32.gmra.mrb[0].mxu0 %v1376
        %v3581 = vpop.f32.mrb[0].mxu0
        %v3582 = vadd.f32 0.0, %v3581
        %v3583 = vpop.f32.mrb[0].mxu0
        %3584 = vmatprep.mubr.f32.mxu0 0.0
        %3585 = vmatmul.mubr.f32.gmra.mrb[0].mxu0 %v1379
        %v3586 = vpop.f32.mrb[0].mxu0
        %v3587 = vadd.f32 0.0, %v3586
        %v3588 = vpop.f32.mrb[0].mxu0
        %3589 = vmatprep.mubr.f32.mxu0 0.0
        %3590 = vmatmul.mubr.f32.gmra.mrb[0].mxu0 %v1382
        %v3591 = vpop.f32.mrb[0].mxu0
        %v3592 = vadd.f32 0.0, %v3591
        %v3593 = vpop.f32.mrb[0].mxu0
        %3594 = vmatprep.mubr.f32.mxu0 0.0
        %3595 = vmatmul.mubr.f32.gmra.mrb[0].mxu0 %v1385
        %v3596 = vpop.f32.mrb[0].mxu0
        %v3597 = vpop.f32.mrb[0].mxu0
        %3598 = vmatprep.mubr.f32.mxu0 0.0
        %3599 = vmatmul.mubr.f32.gmra.mrb[0].mxu0 %v1388
        %v3600 = vpop.f32.mrb[0].mxu0
        %v3601 = vpop.f32.mrb[0].mxu0
        %3602 = vmatprep.mubr.f32.mxu0 0.0
        %3603 = vmatmul.mubr.f32.gmra.mrb[0].mxu0 %v1391
        %v3604 = vpop.f32.mrb[0].mxu0
        %v3605 = vadd.f32 0.0, %v3604
        %v3606 = vpop.f32.mrb[0].mxu0
        %3607 = vmatprep.mubr.f32.mxu0 0.0
        %3608 = vmatmul.mubr.f32.gmra.mrb[0].mxu0 %v1394
        %v3609 = vpop.f32.mrb[0].mxu0
        %v3610 = vadd.f32 0.0, %v3609
        %v3611 = vpop.f32.mrb[0].mxu0
        %3612 = vmatprep.mubr.f32.mxu0 0.0
        %3613 = vmatmul.mubr.f32.gmra.mrb[0].mxu0 %v1397
        %v3614 = vpop.f32.mrb[0].mxu0
        %v3615 = vadd.f32 0.0, %v3614
        %v3616 = vpop.f32.mrb[0].mxu0
        %3617 = vmatprep.mubr.f32.mxu0 0.0
        %3618 = vmatmul.mubr.f32.gmra.mrb[0].mxu0 %v1400
        %v3619 = vpop.f32.mrb[0].mxu0
        %v3620 = vadd.f32 0.0, %v3619
        %v3621 = vpop.f32.mrb[0].mxu0
        %3622 = vmatprep.mubr.f32.mxu0 0.0
        %3623 = vmatmul.mubr.f32.gmra.mrb[0].mxu0 %v1403
        %v3624 = vpop.f32.mrb[0].mxu0
        %v3625 = vadd.f32 0.0, %v3624
        %v3626 = vpop.f32.mrb[0].mxu0
        %3627 = vmatprep.mubr.f32.mxu0 0.0
        %3628 = vmatmul.mubr.f32.gmra.mrb[0].mxu0 %v1406
        %v3629 = vpop.f32.mrb[0].mxu0
        %v3630 = vadd.f32 0.0, %v3629
        %v3631 = vpop.f32.mrb[0].mxu0
        %3632 = vmatprep.mubr.f32.mxu0 0.0
        %3633 = vmatmul.mubr.f32.gmra.mrb[0].mxu0 %v1409
        %v3634 = vpop.f32.mrb[0].mxu0
        %v3635 = vadd.f32 0.0, %v3634
        %v3636 = vpop.f32.mrb[0].mxu0
        %3637 = vmatprep.mubr.f32.mxu0 0.0
        %3638 = vmatmul.mubr.f32.gmra.mrb[0].mxu0 %v1412
        %v3639 = vpop.f32.mrb[0].mxu0
        %v3640 = vadd.f32 0.0, %v3639
        %v3641 = vpop.f32.mrb[0].mxu0
        %3642 = vmatprep.mubr.f32.mxu0 0.0
        %3643 = vmatmul.mubr.f32.gmra.mrb[0].mxu0 %v1415
        %v3644 = vpop.f32.mrb[0].mxu0
        %v3645 = vadd.f32 0.0, %v3644
        %v3646 = vpop.f32.mrb[0].mxu0
        %3647 = vmatprep.mubr.f32.mxu0 0.0
        %3648 = vmatmul.mubr.f32.gmra.mrb[0].mxu0 %v1418
        %v3649 = vpop.f32.mrb[0].mxu0
        %v3650 = vadd.f32 0.0, %v3649
        %v3651 = vpop.f32.mrb[0].mxu0
        %3652 = vmatprep.mubr.f32.mxu0 0.0
        %3653 = vmatmul.mubr.f32.gmra.mrb[0].mxu0 %v1421
        %v3654 = vpop.f32.mrb[0].mxu0
        %v3655 = vadd.f32 0.0, %v3654
        %v3656 = vpop.f32.mrb[0].mxu0
        %3657 = vmatprep.mubr.f32.mxu0 0.0
        %3658 = vmatmul.mubr.f32.gmra.mrb[0].mxu0 %v1424
        %v3659 = vpop.f32.mrb[0].mxu0
        %v3660 = vadd.f32 0.0, %v3659
        %v3661 = vpop.f32.mrb[0].mxu0
        %3662 = vmatprep.mubr.f32.mxu0 0.0
        %3663 = vmatmul.mubr.f32.gmra.mrb[0].mxu0 %v1427
        %v3664 = vpop.f32.mrb[0].mxu0
        %v3665 = vpop.f32.mrb[0].mxu0
        %3666 = vmatprep.mubr.f32.mxu0 0.0
        %3667 = vmatmul.mubr.f32.gmra.mrb[0].mxu0 %v1430
        %v3668 = vpop.f32.mrb[0].mxu0
        %v3669 = vpop.f32.mrb[0].mxu0
        %3670 = vmatprep.mubr.f32.mxu0 0.0
        %3671 = vmatmul.mubr.f32.gmra.mrb[0].mxu0 %v2548
        %v3672 = vpop.f32.mrb[0].mxu0
        %v3673 = vpop.f32.mrb[0].mxu0
        %3674 = vmatprep.mubr.f32.mxu0 0.0
        %3675 = vmatmul.mubr.f32.gmra.mrb[0].mxu0 %v2551
        %v3676 = vpop.f32.mrb[0].mxu0
        %v3677 = vpop.f32.mrb[0].mxu0
        %3678 = vmatprep.mubr.f32.mxu0 0.0
        %3679 = vmatmul.mubr.f32.gmra.mrb[0].mxu0 %v2554
        %v3680 = vpop.f32.mrb[0].mxu0
        %v3681 = vpop.f32.mrb[0].mxu0
        %3682 = vmatprep.mubr.f32.mxu0 0.0
        %3683 = vmatmul.mubr.f32.gmra.mrb[0].mxu0 %v2557
        %v3684 = vpop.f32.mrb[0].mxu0
        %v3685 = vpop.f32.mrb[0].mxu0
        %3686 = vmatprep.mubr.f32.mxu0 0.0
        %3687 = vmatmul.mubr.f32.gmra.mrb[0].mxu0 %v2560
        %v3688 = vpop.f32.mrb[0].mxu0
        %v3689 = vpop.f32.mrb[0].mxu0
        %3690 = vmatprep.mubr.f32.mxu0 0.0
        %3691 = vmatmul.mubr.f32.gmra.mrb[0].mxu0 %v2563
        %v3692 = vpop.f32.mrb[0].mxu0
        %v3693 = vpop.f32.mrb[0].mxu0
        %3694 = vmatprep.mubr.f32.mxu0 0.0
        %3695 = vmatmul.mubr.f32.gmra.mrb[0].mxu0 %v2566
        %v3696 = vpop.f32.mrb[0].mxu0
        %v3697 = vpop.f32.mrb[0].mxu0
        %3698 = vmatprep.mubr.f32.mxu0 0.0
        %3699 = vmatmul.mubr.f32.gmra.mrb[0].mxu0 %v2569
        %v3700 = vpop.f32.mrb[0].mxu0
        %v3701 = vpop.f32.mrb[0].mxu0
        %3702 = vmatprep.mubr.f32.mxu0 0.0
        %3703 = vmatmul.mubr.f32.gmra.mrb[0].mxu0 %v2572
        %v3704 = vpop.f32.mrb[0].mxu0
        %v3705 = vpop.f32.mrb[0].mxu0
        %3706 = vmatprep.mubr.f32.mxu0 0.0
        %3707 = vmatmul.mubr.f32.gmra.mrb[0].mxu0 %v2575
        %v3708 = vpop.f32.mrb[0].mxu0
        %v3709 = vpop.f32.mrb[0].mxu0
        %3710 = vmatprep.mubr.f32.mxu0 0.0
        %3711 = vmatmul.mubr.f32.gmra.mrb[0].mxu0 %v2578
        %v3712 = vpop.f32.mrb[0].mxu0
        %v3713 = vpop.f32.mrb[0].mxu0
        %3714 = vmatprep.mubr.f32.mxu0 0.0
        %3715 = vmatmul.mubr.f32.gmra.mrb[0].mxu0 %v2581
        %v3716 = vpop.f32.mrb[0].mxu0
        %v3717 = vpop.f32.mrb[0].mxu0
        %3718 = vmatprep.mubr.f32.mxu0 0.0
        %3719 = vmatmul.mubr.f32.gmra.mrb[0].mxu0 %v3190
        %v3720 = vpop.f32.mrb[0].mxu0
        %v3721 = vpop.f32.mrb[0].mxu0
        %3722 = vmatprep.mubr.f32.mxu0 0.0
        %3723 = vmatmul.mubr.f32.gmra.mrb[0].mxu0 %v3193
        %v3724 = vpop.f32.mrb[0].mxu0
        %v3725 = vpop.f32.mrb[0].mxu0
        %3726 = vdwg.mxu0
        %v3727 = vadd.f32 %v3115, %v3265
        %v3728 = vadd.f32 %v3116, %v3270
        %v3729 = vadd.f32 %v3117, %v3275
        %v3730 = vadd.f32 %v3118, %v3280
        %v3731 = vadd.f32 %v3119, %v3285
        %v3732 = vadd.f32 %v3120, %v3290
        %v3733 = vadd.f32 %v3121, %v3295
        %v3734 = vadd.f32 %v3122, %v3300
        %v3735 = vadd.f32 %v3123, %v3305
        %v3736 = vadd.f32 %v3124, %v3310
        %v3737 = vadd.f32 %v3125, %v3315
        %v3738 = vadd.f32 %v3126, %v3320
        %v3739 = vadd.f32 %v3127, %v3333
        %v3740 = vadd.f32 %v3128, %v3338
        %v3741 = vadd.f32 %v3129, %v3343
        %v3742 = vadd.f32 %v3130, %v3348
        %v3743 = vadd.f32 %v3131, %v3353
        %v3744 = vadd.f32 %v3132, %v3358
        %v3745 = vadd.f32 %v3133, %v3363
        %v3746 = vadd.f32 %v3134, %v3368
        %v3747 = vadd.f32 %v3135, %v3373
        %v3748 = vadd.f32 %v3136, %v3378
        %v3749 = vadd.f32 %v3137, %v3383
        %v3750 = vadd.f32 %v3138, %v3388
        %v3751 = vadd.f32 %v3139, %v3401
        %v3752 = vadd.f32 %v3140, %v3406
        %v3753 = vadd.f32 %v3141, %v3411
        %v3754 = vadd.f32 %v3142, %v3416
        %v3755 = vadd.f32 %v3143, %v3421
        %v3756 = vadd.f32 %v3144, %v3426
        %v3757 = vadd.f32 %v3145, %v3431
        %v3758 = vadd.f32 %v3146, %v3436
        %v3759 = vadd.f32 %v3147, %v3441
        %v3760 = vadd.f32 %v3148, %v3446
        %v3761 = vadd.f32 %v3149, %v3451
        %v3762 = vadd.f32 %v3150, %v3456
        %v3763 = vadd.f32 %v3151, %v3469
        %v3764 = vadd.f32 %v3152, %v3474
        %v3765 = vadd.f32 %v3153, %v3479
        %v3766 = vadd.f32 %v3154, %v3484
        %v3767 = vadd.f32 %v3155, %v3489
        %v3768 = vadd.f32 %v3156, %v3494
        %v3769 = vadd.f32 %v3157, %v3499
        %v3770 = vadd.f32 %v3158, %v3504
        %v3771 = vadd.f32 %v3159, %v3509
        %v3772 = vadd.f32 %v3160, %v3514
        %v3773 = vadd.f32 %v3161, %v3519
        %v3774 = vadd.f32 %v3162, %v3524
        %v3775 = vadd.f32 %v3163, %v3537
        %v3776 = vadd.f32 %v3164, %v3542
        %v3777 = vadd.f32 %v3165, %v3547
        %v3778 = vadd.f32 %v3166, %v3552
        %v3779 = vadd.f32 %v3167, %v3557
        %v3780 = vadd.f32 %v3168, %v3562
        %v3781 = vadd.f32 %v3169, %v3567
        %v3782 = vadd.f32 %v3170, %v3572
        %v3783 = vadd.f32 %v3171, %v3577
        %v3784 = vadd.f32 %v3172, %v3582
        %v3785 = vadd.f32 %v3173, %v3587
        %v3786 = vadd.f32 %v3174, %v3592
        %v3787 = vadd.f32 %v3175, %v3605
        %v3788 = vadd.f32 %v3176, %v3610
        %v3789 = vadd.f32 %v3177, %v3615
        %v3790 = vadd.f32 %v3178, %v3620
        %v3791 = vadd.f32 %v3179, %v3625
        %v3792 = vadd.f32 %v3180, %v3630
        %v3793 = vadd.f32 %v3181, %v3635
        %v3794 = vadd.f32 %v3182, %v3640
        %v3795 = vadd.f32 %v3183, %v3645
        %v3796 = vadd.f32 %v3184, %v3650
        %v3797 = vadd.f32 %v3185, %v3655
        %v3798 = vadd.f32 %v3186, %v3660
        %v3799 = vld [vmem:[%s3] sm:$0x1]
        %v3801 = vlaneseq
        %v3802 = vshrl.u32 %v3801, 7
        %v3803 = vsub.s32 0, %v3802
        %v3804 = vrot.slane %v3799, %v3803
        %v3806 = vadd.f32 %v3727, %v3804
        %v3807 = vadd.f32 %v3728, %v3804
        %v3808 = vadd.f32 %v3729, %v3804
        %v3809 = vadd.f32 %v3730, %v3804
        %v3810 = vadd.f32 %v3731, %v3804
        %v3811 = vadd.f32 %v3732, %v3804
        %v3812 = vadd.f32 %v3733, %v3804
        %v3813 = vadd.f32 %v3734, %v3804
        %v3814 = vadd.f32 %v3735, %v3804
        %v3815 = vadd.f32 %v3736, %v3804
        %v3816 = vadd.f32 %v3737, %v3804
        %v3817 = vadd.f32 %v3738, %v3804
        %v3818 = vadd.f32 %v3739, %v3804
        %v3819 = vadd.f32 %v3740, %v3804
        %v3820 = vadd.f32 %v3741, %v3804
        %v3821 = vadd.f32 %v3742, %v3804
        %v3822 = vadd.f32 %v3743, %v3804
        %v3823 = vadd.f32 %v3744, %v3804
        %v3824 = vadd.f32 %v3745, %v3804
        %v3825 = vadd.f32 %v3746, %v3804
        %v3826 = vadd.f32 %v3747, %v3804
        %v3827 = vadd.f32 %v3748, %v3804
        %v3828 = vadd.f32 %v3749, %v3804
        %v3829 = vadd.f32 %v3750, %v3804
        %v3830 = vadd.f32 %v3751, %v3804
        %v3831 = vadd.f32 %v3752, %v3804
        %v3832 = vadd.f32 %v3753, %v3804
        %v3833 = vadd.f32 %v3754, %v3804
        %v3834 = vadd.f32 %v3755, %v3804
        %v3835 = vadd.f32 %v3756, %v3804
        %v3836 = vadd.f32 %v3757, %v3804
        %v3837 = vadd.f32 %v3758, %v3804
        %v3838 = vadd.f32 %v3759, %v3804
        %v3839 = vadd.f32 %v3760, %v3804
        %v3840 = vadd.f32 %v3761, %v3804
        %v3841 = vadd.f32 %v3762, %v3804
        %v3842 = vadd.f32 %v3763, %v3804
        %v3843 = vadd.f32 %v3764, %v3804
        %v3844 = vadd.f32 %v3765, %v3804
        %v3845 = vadd.f32 %v3766, %v3804
        %v3846 = vadd.f32 %v3767, %v3804
        %v3847 = vadd.f32 %v3768, %v3804
        %v3848 = vadd.f32 %v3769, %v3804
        %v3849 = vadd.f32 %v3770, %v3804
        %v3850 = vadd.f32 %v3771, %v3804
        %v3851 = vadd.f32 %v3772, %v3804
        %v3852 = vadd.f32 %v3773, %v3804
        %v3853 = vadd.f32 %v3774, %v3804
        %v3854 = vadd.f32 %v3775, %v3804
        %v3855 = vadd.f32 %v3776, %v3804
        %v3856 = vadd.f32 %v3777, %v3804
        %v3857 = vadd.f32 %v3778, %v3804
        %v3858 = vadd.f32 %v3779, %v3804
        %v3859 = vadd.f32 %v3780, %v3804
        %v3860 = vadd.f32 %v3781, %v3804
        %v3861 = vadd.f32 %v3782, %v3804
        %v3862 = vadd.f32 %v3783, %v3804
        %v3863 = vadd.f32 %v3784, %v3804
        %v3864 = vadd.f32 %v3785, %v3804
        %v3865 = vadd.f32 %v3786, %v3804
        %v3866 = vadd.f32 %v3787, %v3804
        %v3867 = vadd.f32 %v3788, %v3804
        %v3868 = vadd.f32 %v3789, %v3804
        %v3869 = vadd.f32 %v3790, %v3804
        %v3870 = vadd.f32 %v3791, %v3804
        %v3871 = vadd.f32 %v3792, %v3804
        %v3872 = vadd.f32 %v3793, %v3804
        %v3873 = vadd.f32 %v3794, %v3804
        %v3874 = vadd.f32 %v3795, %v3804
        %v3875 = vadd.f32 %v3796, %v3804
        %v3876 = vadd.f32 %v3797, %v3804
        %v3877 = vadd.f32 %v3798, %v3804
        %v3878 = vmax.f32 %v3806, 0.0
        %v3879 = vmax.f32 %v3807, 0.0
        %v3880 = vmax.f32 %v3808, 0.0
        %v3881 = vmax.f32 %v3809, 0.0
        %v3882 = vmax.f32 %v3810, 0.0
        %v3883 = vmax.f32 %v3811, 0.0
        %v3884 = vmax.f32 %v3812, 0.0
        %v3885 = vmax.f32 %v3813, 0.0
        %v3886 = vmax.f32 %v3814, 0.0
        %v3887 = vmax.f32 %v3815, 0.0
        %v3888 = vmax.f32 %v3816, 0.0
        %v3889 = vmax.f32 %v3817, 0.0
        %v3890 = vmax.f32 %v3818, 0.0
        %v3891 = vmax.f32 %v3819, 0.0
        %v3892 = vmax.f32 %v3820, 0.0
        %v3893 = vmax.f32 %v3821, 0.0
        %v3894 = vmax.f32 %v3822, 0.0
        %v3895 = vmax.f32 %v3823, 0.0
        %v3896 = vmax.f32 %v3824, 0.0
        %v3897 = vmax.f32 %v3825, 0.0
        %v3898 = vmax.f32 %v3826, 0.0
        %v3899 = vmax.f32 %v3827, 0.0
        %v3900 = vmax.f32 %v3828, 0.0
        %v3901 = vmax.f32 %v3829, 0.0
        %v3902 = vmax.f32 %v3830, 0.0
        %v3903 = vmax.f32 %v3831, 0.0
        %v3904 = vmax.f32 %v3832, 0.0
        %v3905 = vmax.f32 %v3833, 0.0
        %v3906 = vmax.f32 %v3834, 0.0
        %v3907 = vmax.f32 %v3835, 0.0
        %v3908 = vmax.f32 %v3836, 0.0
        %v3909 = vmax.f32 %v3837, 0.0
        %v3910 = vmax.f32 %v3838, 0.0
        %v3911 = vmax.f32 %v3839, 0.0
        %v3912 = vmax.f32 %v3840, 0.0
        %v3913 = vmax.f32 %v3841, 0.0
        %v3914 = vmax.f32 %v3842, 0.0
        %v3915 = vmax.f32 %v3843, 0.0
        %v3916 = vmax.f32 %v3844, 0.0
        %v3917 = vmax.f32 %v3845, 0.0
        %v3918 = vmax.f32 %v3846, 0.0
        %v3919 = vmax.f32 %v3847, 0.0
        %v3920 = vmax.f32 %v3848, 0.0
        %v3921 = vmax.f32 %v3849, 0.0
        %v3922 = vmax.f32 %v3850, 0.0
        %v3923 = vmax.f32 %v3851, 0.0
        %v3924 = vmax.f32 %v3852, 0.0
        %v3925 = vmax.f32 %v3853, 0.0
        %v3926 = vmax.f32 %v3854, 0.0
        %v3927 = vmax.f32 %v3855, 0.0
        %v3928 = vmax.f32 %v3856, 0.0
        %v3929 = vmax.f32 %v3857, 0.0
        %v3930 = vmax.f32 %v3858, 0.0
        %v3931 = vmax.f32 %v3859, 0.0
        %v3932 = vmax.f32 %v3860, 0.0
        %v3933 = vmax.f32 %v3861, 0.0
        %v3934 = vmax.f32 %v3862, 0.0
        %v3935 = vmax.f32 %v3863, 0.0
        %v3936 = vmax.f32 %v3864, 0.0
        %v3937 = vmax.f32 %v3865, 0.0
        %v3938 = vmax.f32 %v3866, 0.0
        %v3939 = vmax.f32 %v3867, 0.0
        %v3940 = vmax.f32 %v3868, 0.0
        %v3941 = vmax.f32 %v3869, 0.0
        %v3942 = vmax.f32 %v3870, 0.0
        %v3943 = vmax.f32 %v3871, 0.0
        %v3944 = vmax.f32 %v3872, 0.0
        %v3945 = vmax.f32 %v3873, 0.0
        %v3946 = vmax.f32 %v3874, 0.0
        %v3947 = vmax.f32 %v3875, 0.0
        %v3948 = vmax.f32 %v3876, 0.0
        %v3949 = vmax.f32 %v3877, 0.0
        %v3950 = vmax.f32 %v3878, %v3890
        %v3951 = vmax.f32 %v3879, %v3891
        %v3952 = vmax.f32 %v3880, %v3892
        %v3953 = vmax.f32 %v3881, %v3893
        %v3954 = vmax.f32 %v3882, %v3894
        %v3955 = vmax.f32 %v3883, %v3895
        %v3956 = vmax.f32 %v3884, %v3896
        %v3957 = vmax.f32 %v3885, %v3897
        %v3958 = vmax.f32 %v3886, %v3898
        %v3959 = vmax.f32 %v3887, %v3899
        %v3960 = vmax.f32 %v3888, %v3900
        %v3961 = vmax.f32 %v3889, %v3901
        %v3962 = vmax.f32 %v3902, %v3914
        %v3963 = vmax.f32 %v3903, %v3915
        %v3964 = vmax.f32 %v3904, %v3916
        %v3965 = vmax.f32 %v3905, %v3917
        %v3966 = vmax.f32 %v3906, %v3918
        %v3967 = vmax.f32 %v3907, %v3919
        %v3968 = vmax.f32 %v3908, %v3920
        %v3969 = vmax.f32 %v3909, %v3921
        %v3970 = vmax.f32 %v3910, %v3922
        %v3971 = vmax.f32 %v3911, %v3923
        %v3972 = vmax.f32 %v3912, %v3924
        %v3973 = vmax.f32 %v3913, %v3925
        %v3974 = vmax.f32 %v3926, %v3938
        %v3975 = vmax.f32 %v3927, %v3939
        %v3976 = vmax.f32 %v3928, %v3940
        %v3977 = vmax.f32 %v3929, %v3941
        %v3978 = vmax.f32 %v3930, %v3942
        %v3979 = vmax.f32 %v3931, %v3943
        %v3980 = vmax.f32 %v3932, %v3944
        %v3981 = vmax.f32 %v3933, %v3945
        %v3982 = vmax.f32 %v3934, %v3946
        %v3983 = vmax.f32 %v3935, %v3947
        %v3984 = vmax.f32 %v3936, %v3948
        %v3985 = vmax.f32 %v3937, %v3949
        %v3986 = vmax.f32 %v3950, %v3952
        %v3987 = vmax.f32 %v3951, %v3953
        %v3988 = vmax.f32 %v3962, %v3964
        %v3989 = vmax.f32 %v3963, %v3965
        %v3990 = vmax.f32 %v3974, %v3976
        %v3991 = vmax.f32 %v3975, %v3977
        %v3992 = vmax.f32 %v3954, %v3956
        %v3993 = vmax.f32 %v3955, %v3957
        %v3994 = vmax.f32 %v3966, %v3968
        %v3995 = vmax.f32 %v3967, %v3969
        %v3996 = vmax.f32 %v3978, %v3980
        %v3997 = vmax.f32 %v3979, %v3981
        %v3998 = vmax.f32 %v3958, %v3960
        %v3999 = vmax.f32 %v3959, %v3961
        %v4000 = vmax.f32 %v3970, %v3972
        %v4001 = vmax.f32 %v3971, %v3973
        %v4002 = vmax.f32 %v3982, %v3984
        %v4003 = vmax.f32 %v3983, %v3985
        %v4004 = vld [vmem:[%s4] sm:$0xff]
        %v4005 = vld [vmem:[%s4 + $0x8] sm:$0xff]
        %v4006 = vld [vmem:[%s4 + $0x10] sm:$0xff]
        %s4007 = scalar_lea.vmem %s4, 24
        %v4008 = vld [vmem:[%s4007] sm:$0xff]
        %v4009 = vld [vmem:[%s4007 + $0x8] sm:$0xff]
        %v4010 = vld [vmem:[%s4007 + $0x10] sm:$0xff]
        %vm4011 = vcmask 195584
        %v4013 = vsel %vm4011, %v3992, 0
        %v4016 = vsel %vm4011, %v3993, 0
        %v4019 = vsel %vm4011, %v3998, 0
        %v4022 = vsel %vm4011, %v3999, 0
        %v4025 = vsel %vm4011, %v3994, 0
        %v4028 = vsel %vm4011, %v3995, 0
        %v4031 = vsel %vm4011, %v4000, 0
        %v4034 = vsel %vm4011, %v4001, 0
        %4036 = vmatprep.subr.mxu0 0.0
        %4037 = vmatpush1.msra.mxu0 %v4008
        %4038 = vmatprep.subr.mxu0 0.0
        %4039 = vmatpush1.msra.mxu0 %v4009
        %4040 = vmatprep.subr.mxu0 0.0
        %4041 = vmatpush1.msra.mxu0 %v4010
        %4042 = vmatprep.subr.mxu0 0.0
        %4043 = vmatpush1.msra.mxu0 0.0
        %4044 = vmatprep.subr.mxu0 0.0
        %4045 = vmatpush1.msra.mxu0 0.0
        %4046 = vmatprep.subr.mxu0 0.0
        %4047 = vmatpush1.msra.mxu0 0.0
        %4048 = vmatprep.subr.mxu0 0.0
        %4049 = vmatpush1.msra.mxu0 0.0
        %4050 = vmatprep.subr.mxu0 0.0
        %4051 = vmatpush1.msra.mxu0 0.0
        %4052 = vmatprep.subr.mxu0 0.0
        %4053 = vmatpush1.msra.mxu0 0.0
        %4054 = vmatprep.subr.mxu0 0.0
        %4055 = vmatpush1.msra.mxu0 0.0
        %4056 = vmatprep.subr.mxu0 0.0
        %4057 = vmatpush1.msra.mxu0 0.0
        %4058 = vmatprep.subr.mxu0 0.0
        %4059 = vmatpush1.msra.mxu0 0.0
        %4060 = vmatprep.subr.mxu0 0.0
        %4061 = vmatpush1.msra.mxu0 0.0
        %4062 = vmatprep.subr.mxu0 0.0
        %4063 = vmatpush1.msra.mxu0 0.0
        %4064 = vmatprep.subr.mxu0 0.0
        %4065 = vmatpush1.msra.mxu0 0.0
        %4066 = vmatprep.subr.mxu0 0.0
        %4067 = vmatpush1.msra.mxu0 0.0
        %4068 = vmatprep.subr.mxu0 0.0
        %4069 = vmatpush1.msra.mxu0 0.0
        %4070 = vmatprep.subr.mxu0 0.0
        %4071 = vmatpush1.msra.mxu0 0.0
        %4072 = vmatprep.subr.mxu0 0.0
        %4073 = vmatpush1.msra.mxu0 0.0
        %4074 = vmatprep.subr.mxu0 0.0
        %4075 = vmatpush1.msra.mxu0 0.0
        %4076 = vmatprep.subr.mxu0 0.0
        %4077 = vmatpush1.msra.mxu0 0.0
        %4078 = vmatprep.subr.mxu0 0.0
        %4079 = vmatpush1.msra.mxu0 0.0
        %4080 = vmatprep.subr.mxu0 0.0
        %4081 = vmatpush1.msra.mxu0 0.0
        %4082 = vmatprep.subr.mxu0 0.0
        %4083 = vmatpush1.msra.mxu0 0.0
        %4084 = vmatprep.subr.mxu0 0.0
        %4085 = vmatpush1.msra.mxu0 0.0
        %4086 = vmatprep.subr.mxu0 0.0
        %4087 = vmatpush1.msra.mxu0 0.0
        %4088 = vmatprep.subr.mxu0 0.0
        %4089 = vmatpush1.msra.mxu0 0.0
        %4090 = vmatprep.subr.mxu0 0.0
        %4091 = vmatpush1.msra.mxu0 0.0
        %4092 = vmatprep.subr.mxu0 0.0
        %4093 = vmatpush1.msra.mxu0 0.0
        %4094 = vmatprep.subr.mxu0 0.0
        %4095 = vmatpush1.msra.mxu0 0.0
        %4096 = vmatprep.subr.mxu0 0.0
        %4097 = vmatpush1.msra.mxu0 0.0
        %4098 = vmatprep.subr.mxu0 0.0
        %4099 = vmatpush1.msra.mxu0 0.0
        %4100 = vmatprep.mubr.f32.mxu0 0.0
        %4101 = vmatmul.mubr.f32.gmra.mrb[0].mxu0 %v4013
        %v4102 = vpop.f32.mrb[0].mxu0
        %v4103 = vadd.f32 0.0, %v4102
        %v4104 = vpop.f32.mrb[0].mxu0
        %4105 = vmatprep.mubr.f32.mxu0 0.0
        %4106 = vmatmul.mubr.f32.gmra.mrb[0].mxu0 %v4016
        %v4107 = vpop.f32.mrb[0].mxu0
        %v4108 = vadd.f32 0.0, %v4107
        %v4109 = vpop.f32.mrb[0].mxu0
        %4110 = vmatprep.mubr.f32.mxu0 0.0
        %4111 = vmatmul.mubr.f32.gmra.mrb[0].mxu0 %v4019
        %v4112 = vpop.f32.mrb[0].mxu0
        %v4113 = vadd.f32 0.0, %v4112
        %v4114 = vpop.f32.mrb[0].mxu0
        %4115 = vmatprep.mubr.f32.mxu0 0.0
        %4116 = vmatmul.mubr.f32.gmra.mrb[0].mxu0 %v4022
        %v4117 = vpop.f32.mrb[0].mxu0
        %v4118 = vadd.f32 0.0, %v4117
        %v4119 = vpop.f32.mrb[0].mxu0
        %4120 = vmatprep.mubr.f32.mxu0 0.0
        %4121 = vmatmul.mubr.f32.gmra.mrb[0].mxu0 %v4025
        %v4122 = vpop.f32.mrb[0].mxu0
        %v4123 = vadd.f32 0.0, %v4122
        %v4124 = vpop.f32.mrb[0].mxu0
        %4125 = vmatprep.mubr.f32.mxu0 0.0
        %4126 = vmatmul.mubr.f32.gmra.mrb[0].mxu0 %v4028
        %v4127 = vpop.f32.mrb[0].mxu0
        %v4128 = vadd.f32 0.0, %v4127
        %v4129 = vpop.f32.mrb[0].mxu0
        %4130 = vmatprep.mubr.f32.mxu0 0.0
        %4131 = vmatmul.mubr.f32.gmra.mrb[0].mxu0 %v4031
        %v4132 = vpop.f32.mrb[0].mxu0
        %v4133 = vadd.f32 0.0, %v4132
        %v4134 = vpop.f32.mrb[0].mxu0
        %4135 = vmatprep.mubr.f32.mxu0 0.0
        %4136 = vmatmul.mubr.f32.gmra.mrb[0].mxu0 %v4034
        %v4137 = vpop.f32.mrb[0].mxu0
        %v4138 = vadd.f32 0.0, %v4137
        %v4139 = vpop.f32.mrb[0].mxu0
        %4140 = vdwg.mxu0
        %v4142 = vsel %vm4011, %v3986, 0
        %v4145 = vsel %vm4011, %v3987, 0
        %v4148 = vsel %vm4011, %v3988, 0
        %v4151 = vsel %vm4011, %v3989, 0
        %4153 = vmatprep.subr.mxu0 0.0
        %4154 = vmatpush1.msra.mxu0 %v4004
        %4155 = vmatprep.subr.mxu0 0.0
        %4156 = vmatpush1.msra.mxu0 %v4005
        %4157 = vmatprep.subr.mxu0 0.0
        %4158 = vmatpush1.msra.mxu0 %v4006
        %4159 = vmatprep.subr.mxu0 0.0
        %4160 = vmatpush1.msra.mxu0 0.0
        %4161 = vmatprep.subr.mxu0 0.0
        %4162 = vmatpush1.msra.mxu0 0.0
        %4163 = vmatprep.subr.mxu0 0.0
        %4164 = vmatpush1.msra.mxu0 0.0
        %4165 = vmatprep.subr.mxu0 0.0
        %4166 = vmatpush1.msra.mxu0 0.0
        %4167 = vmatprep.subr.mxu0 0.0
        %4168 = vmatpush1.msra.mxu0 0.0
        %4169 = vmatprep.subr.mxu0 0.0
        %4170 = vmatpush1.msra.mxu0 0.0
        %4171 = vmatprep.subr.mxu0 0.0
        %4172 = vmatpush1.msra.mxu0 0.0
        %4173 = vmatprep.subr.mxu0 0.0
        %4174 = vmatpush1.msra.mxu0 0.0
        %4175 = vmatprep.subr.mxu0 0.0
        %4176 = vmatpush1.msra.mxu0 0.0
        %4177 = vmatprep.subr.mxu0 0.0
        %4178 = vmatpush1.msra.mxu0 0.0
        %4179 = vmatprep.subr.mxu0 0.0
        %4180 = vmatpush1.msra.mxu0 0.0
        %4181 = vmatprep.subr.mxu0 0.0
        %4182 = vmatpush1.msra.mxu0 0.0
        %4183 = vmatprep.subr.mxu0 0.0
        %4184 = vmatpush1.msra.mxu0 0.0
        %4185 = vmatprep.subr.mxu0 0.0
        %4186 = vmatpush1.msra.mxu0 0.0
        %4187 = vmatprep.subr.mxu0 0.0
        %4188 = vmatpush1.msra.mxu0 0.0
        %4189 = vmatprep.subr.mxu0 0.0
        %4190 = vmatpush1.msra.mxu0 0.0
        %4191 = vmatprep.subr.mxu0 0.0
        %4192 = vmatpush1.msra.mxu0 0.0
        %4193 = vmatprep.subr.mxu0 0.0
        %4194 = vmatpush1.msra.mxu0 0.0
        %4195 = vmatprep.subr.mxu0 0.0
        %4196 = vmatpush1.msra.mxu0 0.0
        %4197 = vmatprep.subr.mxu0 0.0
        %4198 = vmatpush1.msra.mxu0 0.0
        %4199 = vmatprep.subr.mxu0 0.0
        %4200 = vmatpush1.msra.mxu0 0.0
        %4201 = vmatprep.subr.mxu0 0.0
        %4202 = vmatpush1.msra.mxu0 0.0
        %4203 = vmatprep.subr.mxu0 0.0
        %4204 = vmatpush1.msra.mxu0 0.0
        %4205 = vmatprep.subr.mxu0 0.0
        %4206 = vmatpush1.msra.mxu0 0.0
        %4207 = vmatprep.subr.mxu0 0.0
        %4208 = vmatpush1.msra.mxu0 0.0
        %4209 = vmatprep.subr.mxu0 0.0
        %4210 = vmatpush1.msra.mxu0 0.0
        %4211 = vmatprep.subr.mxu0 0.0
        %4212 = vmatpush1.msra.mxu0 0.0
        %4213 = vmatprep.subr.mxu0 0.0
        %4214 = vmatpush1.msra.mxu0 0.0
        %4215 = vmatprep.subr.mxu0 0.0
        %4216 = vmatpush1.msra.mxu0 0.0
        %4217 = vmatprep.mubr.f32.mxu0 0.0
        %4218 = vmatmul.mubr.f32.gmra.mrb[0].mxu0 %v4142
        %v4219 = vpop.f32.mrb[0].mxu0
        %v4220 = vadd.f32 %v4103, %v4219
        %v4221 = vpop.f32.mrb[0].mxu0
        %4222 = vmatprep.mubr.f32.mxu0 0.0
        %4223 = vmatmul.mubr.f32.gmra.mrb[0].mxu0 %v4145
        %v4224 = vpop.f32.mrb[0].mxu0
        %v4225 = vadd.f32 %v4108, %v4224
        %v4226 = vpop.f32.mrb[0].mxu0
        %4227 = vmatprep.mubr.f32.mxu0 0.0
        %4228 = vmatmul.mubr.f32.gmra.mrb[0].mxu0 %v4013
        %v4229 = vpop.f32.mrb[0].mxu0
        %v4230 = vadd.f32 %v4113, %v4229
        %v4231 = vpop.f32.mrb[0].mxu0
        %4232 = vmatprep.mubr.f32.mxu0 0.0
        %4233 = vmatmul.mubr.f32.gmra.mrb[0].mxu0 %v4016
        %v4234 = vpop.f32.mrb[0].mxu0
        %v4235 = vadd.f32 %v4118, %v4234
        %v4236 = vpop.f32.mrb[0].mxu0
        %4237 = vmatprep.mubr.f32.mxu0 0.0
        %4238 = vmatmul.mubr.f32.gmra.mrb[0].mxu0 %v4148
        %v4239 = vpop.f32.mrb[0].mxu0
        %v4240 = vadd.f32 %v4123, %v4239
        %v4241 = vpop.f32.mrb[0].mxu0
        %4242 = vmatprep.mubr.f32.mxu0 0.0
        %4243 = vmatmul.mubr.f32.gmra.mrb[0].mxu0 %v4151
        %v4244 = vpop.f32.mrb[0].mxu0
        %v4245 = vadd.f32 %v4128, %v4244
        %v4246 = vpop.f32.mrb[0].mxu0
        %4247 = vmatprep.mubr.f32.mxu0 0.0
        %4248 = vmatmul.mubr.f32.gmra.mrb[0].mxu0 %v4025
        %v4249 = vpop.f32.mrb[0].mxu0
        %v4250 = vadd.f32 %v4133, %v4249
        %v4251 = vpop.f32.mrb[0].mxu0
        %4252 = vmatprep.mubr.f32.mxu0 0.0
        %4253 = vmatmul.mubr.f32.gmra.mrb[0].mxu0 %v4028
        %v4254 = vpop.f32.mrb[0].mxu0
        %v4255 = vadd.f32 %v4138, %v4254
        %v4256 = vpop.f32.mrb[0].mxu0
        %4257 = vdwg.mxu0
        %s4258 = scalar_lea.vmem %s4, 48
        %v4259 = vld [vmem:[%s4258] sm:$0xff]
        %v4260 = vld [vmem:[%s4258 + $0x8] sm:$0xff]
        %v4261 = vld [vmem:[%s4258 + $0x10] sm:$0xff]
        %v4263 = vsel %vm4011, %v3990, 0
        %v4266 = vsel %vm4011, %v3991, 0
        %v4269 = vsel %vm4011, %v3996, 0
        %v4272 = vsel %vm4011, %v3997, 0
        %4274 = vmatprep.subr.mxu0 0.0
        %4275 = vmatpush1.msra.mxu0 %v4259
        %4276 = vmatprep.subr.mxu0 0.0
        %4277 = vmatpush1.msra.mxu0 %v4260
        %4278 = vmatprep.subr.mxu0 0.0
        %4279 = vmatpush1.msra.mxu0 %v4261
        %4280 = vmatprep.subr.mxu0 0.0
        %4281 = vmatpush1.msra.mxu0 0.0
        %4282 = vmatprep.subr.mxu0 0.0
        %4283 = vmatpush1.msra.mxu0 0.0
        %4284 = vmatprep.subr.mxu0 0.0
        %4285 = vmatpush1.msra.mxu0 0.0
        %4286 = vmatprep.subr.mxu0 0.0
        %4287 = vmatpush1.msra.mxu0 0.0
        %4288 = vmatprep.subr.mxu0 0.0
        %4289 = vmatpush1.msra.mxu0 0.0
        %4290 = vmatprep.subr.mxu0 0.0
        %4291 = vmatpush1.msra.mxu0 0.0
        %4292 = vmatprep.subr.mxu0 0.0
        %4293 = vmatpush1.msra.mxu0 0.0
        %4294 = vmatprep.subr.mxu0 0.0
        %4295 = vmatpush1.msra.mxu0 0.0
        %4296 = vmatprep.subr.mxu0 0.0
        %4297 = vmatpush1.msra.mxu0 0.0
        %4298 = vmatprep.subr.mxu0 0.0
        %4299 = vmatpush1.msra.mxu0 0.0
        %4300 = vmatprep.subr.mxu0 0.0
        %4301 = vmatpush1.msra.mxu0 0.0
        %4302 = vmatprep.subr.mxu0 0.0
        %4303 = vmatpush1.msra.mxu0 0.0
        %4304 = vmatprep.subr.mxu0 0.0
        %4305 = vmatpush1.msra.mxu0 0.0
        %4306 = vmatprep.subr.mxu0 0.0
        %4307 = vmatpush1.msra.mxu0 0.0
        %4308 = vmatprep.subr.mxu0 0.0
        %4309 = vmatpush1.msra.mxu0 0.0
        %4310 = vmatprep.subr.mxu0 0.0
        %4311 = vmatpush1.msra.mxu0 0.0
        %4312 = vmatprep.subr.mxu0 0.0
        %4313 = vmatpush1.msra.mxu0 0.0
        %4314 = vmatprep.subr.mxu0 0.0
        %4315 = vmatpush1.msra.mxu0 0.0
        %4316 = vmatprep.subr.mxu0 0.0
        %4317 = vmatpush1.msra.mxu0 0.0
        %4318 = vmatprep.subr.mxu0 0.0
        %4319 = vmatpush1.msra.mxu0 0.0
        %4320 = vmatprep.subr.mxu0 0.0
        %4321 = vmatpush1.msra.mxu0 0.0
        %4322 = vmatprep.subr.mxu0 0.0
        %4323 = vmatpush1.msra.mxu0 0.0
        %4324 = vmatprep.subr.mxu0 0.0
        %4325 = vmatpush1.msra.mxu0 0.0
        %4326 = vmatprep.subr.mxu0 0.0
        %4327 = vmatpush1.msra.mxu0 0.0
        %4328 = vmatprep.subr.mxu0 0.0
        %4329 = vmatpush1.msra.mxu0 0.0
        %4330 = vmatprep.subr.mxu0 0.0
        %4331 = vmatpush1.msra.mxu0 0.0
        %4332 = vmatprep.subr.mxu0 0.0
        %4333 = vmatpush1.msra.mxu0 0.0
        %4334 = vmatprep.subr.mxu0 0.0
        %4335 = vmatpush1.msra.mxu0 0.0
        %4336 = vmatprep.subr.mxu0 0.0
        %4337 = vmatpush1.msra.mxu0 0.0
        %4338 = vmatprep.mubr.f32.mxu0 0.0
        %4339 = vmatmul.mubr.f32.gmra.mrb[0].mxu0 %v4148
        %v4340 = vpop.f32.mrb[0].mxu0
        %v4341 = vadd.f32 0.0, %v4340
        %v4342 = vpop.f32.mrb[0].mxu0
        %4343 = vmatprep.mubr.f32.mxu0 0.0
        %4344 = vmatmul.mubr.f32.gmra.mrb[0].mxu0 %v4151
        %v4345 = vpop.f32.mrb[0].mxu0
        %v4346 = vadd.f32 0.0, %v4345
        %v4347 = vpop.f32.mrb[0].mxu0
        %4348 = vmatprep.mubr.f32.mxu0 0.0
        %4349 = vmatmul.mubr.f32.gmra.mrb[0].mxu0 %v4025
        %v4350 = vpop.f32.mrb[0].mxu0
        %v4351 = vadd.f32 0.0, %v4350
        %v4352 = vpop.f32.mrb[0].mxu0
        %4353 = vmatprep.mubr.f32.mxu0 0.0
        %4354 = vmatmul.mubr.f32.gmra.mrb[0].mxu0 %v4028
        %v4355 = vpop.f32.mrb[0].mxu0
        %v4356 = vadd.f32 0.0, %v4355
        %v4357 = vpop.f32.mrb[0].mxu0
        %4358 = vmatprep.mubr.f32.mxu0 0.0
        %4359 = vmatmul.mubr.f32.gmra.mrb[0].mxu0 %v4263
        %v4360 = vpop.f32.mrb[0].mxu0
        %v4361 = vadd.f32 0.0, %v4360
        %v4362 = vpop.f32.mrb[0].mxu0
        %4363 = vmatprep.mubr.f32.mxu0 0.0
        %4364 = vmatmul.mubr.f32.gmra.mrb[0].mxu0 %v4266
        %v4365 = vpop.f32.mrb[0].mxu0
        %v4366 = vadd.f32 0.0, %v4365
        %v4367 = vpop.f32.mrb[0].mxu0
        %4368 = vmatprep.mubr.f32.mxu0 0.0
        %4369 = vmatmul.mubr.f32.gmra.mrb[0].mxu0 %v4269
        %v4370 = vpop.f32.mrb[0].mxu0
        %v4371 = vadd.f32 0.0, %v4370
        %v4372 = vpop.f32.mrb[0].mxu0
        %4373 = vmatprep.mubr.f32.mxu0 0.0
        %4374 = vmatmul.mubr.f32.gmra.mrb[0].mxu0 %v4272
        %v4375 = vpop.f32.mrb[0].mxu0
        %v4376 = vadd.f32 0.0, %v4375
        %v4377 = vpop.f32.mrb[0].mxu0
        %4378 = vdwg.mxu0
        %v4379 = vadd.f32 %v4220, %v4341
        %v4380 = vadd.f32 %v4225, %v4346
        %v4381 = vadd.f32 %v4230, %v4351
        %v4382 = vadd.f32 %v4235, %v4356
        %v4383 = vadd.f32 %v4240, %v4361
        %v4384 = vadd.f32 %v4245, %v4366
        %v4385 = vadd.f32 %v4250, %v4371
        %v4386 = vadd.f32 %v4255, %v4376
        %s4387 = scalar_lea.vmem %s4, 72
        %v4388 = vld [vmem:[%s4387] sm:$0xff]
        %v4389 = vld [vmem:[%s4387 + $0x8] sm:$0xff]
        %v4390 = vld [vmem:[%s4387 + $0x10] sm:$0xff]
        %v4392 = vsel %vm4011, %v4002, 0
        %v4395 = vsel %vm4011, %v4003, 0
        %4397 = vmatprep.subr.mxu0 0.0
        %4398 = vmatpush1.msra.mxu0 %v4388
        %4399 = vmatprep.subr.mxu0 0.0
        %4400 = vmatpush1.msra.mxu0 %v4389
        %4401 = vmatprep.subr.mxu0 0.0
        %4402 = vmatpush1.msra.mxu0 %v4390
        %4403 = vmatprep.subr.mxu0 0.0
        %4404 = vmatpush1.msra.mxu0 0.0
        %4405 = vmatprep.subr.mxu0 0.0
        %4406 = vmatpush1.msra.mxu0 0.0
        %4407 = vmatprep.subr.mxu0 0.0
        %4408 = vmatpush1.msra.mxu0 0.0
        %4409 = vmatprep.subr.mxu0 0.0
        %4410 = vmatpush1.msra.mxu0 0.0
        %4411 = vmatprep.subr.mxu0 0.0
        %4412 = vmatpush1.msra.mxu0 0.0
        %4413 = vmatprep.subr.mxu0 0.0
        %4414 = vmatpush1.msra.mxu0 0.0
        %4415 = vmatprep.subr.mxu0 0.0
        %4416 = vmatpush1.msra.mxu0 0.0
        %4417 = vmatprep.subr.mxu0 0.0
        %4418 = vmatpush1.msra.mxu0 0.0
        %4419 = vmatprep.subr.mxu0 0.0
        %4420 = vmatpush1.msra.mxu0 0.0
        %4421 = vmatprep.subr.mxu0 0.0
        %4422 = vmatpush1.msra.mxu0 0.0
        %4423 = vmatprep.subr.mxu0 0.0
        %4424 = vmatpush1.msra.mxu0 0.0
        %4425 = vmatprep.subr.mxu0 0.0
        %4426 = vmatpush1.msra.mxu0 0.0
        %4427 = vmatprep.subr.mxu0 0.0
        %4428 = vmatpush1.msra.mxu0 0.0
        %4429 = vmatprep.subr.mxu0 0.0
        %4430 = vmatpush1.msra.mxu0 0.0
        %4431 = vmatprep.subr.mxu0 0.0
        %4432 = vmatpush1.msra.mxu0 0.0
        %4433 = vmatprep.subr.mxu0 0.0
        %4434 = vmatpush1.msra.mxu0 0.0
        %4435 = vmatprep.subr.mxu0 0.0
        %4436 = vmatpush1.msra.mxu0 0.0
        %4437 = vmatprep.subr.mxu0 0.0
        %4438 = vmatpush1.msra.mxu0 0.0
        %4439 = vmatprep.subr.mxu0 0.0
        %4440 = vmatpush1.msra.mxu0 0.0
        %4441 = vmatprep.subr.mxu0 0.0
        %4442 = vmatpush1.msra.mxu0 0.0
        %4443 = vmatprep.subr.mxu0 0.0
        %4444 = vmatpush1.msra.mxu0 0.0
        %4445 = vmatprep.subr.mxu0 0.0
        %4446 = vmatpush1.msra.mxu0 0.0
        %4447 = vmatprep.subr.mxu0 0.0
        %4448 = vmatpush1.msra.mxu0 0.0
        %4449 = vmatprep.subr.mxu0 0.0
        %4450 = vmatpush1.msra.mxu0 0.0
        %4451 = vmatprep.subr.mxu0 0.0
        %4452 = vmatpush1.msra.mxu0 0.0
        %4453 = vmatprep.subr.mxu0 0.0
        %4454 = vmatpush1.msra.mxu0 0.0
        %4455 = vmatprep.subr.mxu0 0.0
        %4456 = vmatpush1.msra.mxu0 0.0
        %4457 = vmatprep.subr.mxu0 0.0
        %4458 = vmatpush1.msra.mxu0 0.0
        %4459 = vmatprep.subr.mxu0 0.0
        %4460 = vmatpush1.msra.mxu0 0.0
        %4461 = vmatprep.mubr.f32.mxu0 0.0
        %4462 = vmatmul.mubr.f32.gmra.mrb[0].mxu0 %v4025
        %v4463 = vpop.f32.mrb[0].mxu0
        %v4464 = vadd.f32 0.0, %v4463
        %v4465 = vpop.f32.mrb[0].mxu0
        %4466 = vmatprep.mubr.f32.mxu0 0.0
        %4467 = vmatmul.mubr.f32.gmra.mrb[0].mxu0 %v4028
        %v4468 = vpop.f32.mrb[0].mxu0
        %v4469 = vadd.f32 0.0, %v4468
        %v4470 = vpop.f32.mrb[0].mxu0
        %4471 = vmatprep.mubr.f32.mxu0 0.0
        %4472 = vmatmul.mubr.f32.gmra.mrb[0].mxu0 %v4031
        %v4473 = vpop.f32.mrb[0].mxu0
        %v4474 = vadd.f32 0.0, %v4473
        %v4475 = vpop.f32.mrb[0].mxu0
        %4476 = vmatprep.mubr.f32.mxu0 0.0
        %4477 = vmatmul.mubr.f32.gmra.mrb[0].mxu0 %v4034
        %v4478 = vpop.f32.mrb[0].mxu0
        %v4479 = vadd.f32 0.0, %v4478
        %v4480 = vpop.f32.mrb[0].mxu0
        %4481 = vmatprep.mubr.f32.mxu0 0.0
        %4482 = vmatmul.mubr.f32.gmra.mrb[0].mxu0 %v4269
        %v4483 = vpop.f32.mrb[0].mxu0
        %v4484 = vadd.f32 0.0, %v4483
        %v4485 = vpop.f32.mrb[0].mxu0
        %4486 = vmatprep.mubr.f32.mxu0 0.0
        %4487 = vmatmul.mubr.f32.gmra.mrb[0].mxu0 %v4272
        %v4488 = vpop.f32.mrb[0].mxu0
        %v4489 = vadd.f32 0.0, %v4488
        %v4490 = vpop.f32.mrb[0].mxu0
        %4491 = vmatprep.mubr.f32.mxu0 0.0
        %4492 = vmatmul.mubr.f32.gmra.mrb[0].mxu0 %v4392
        %v4493 = vpop.f32.mrb[0].mxu0
        %v4494 = vadd.f32 0.0, %v4493
        %v4495 = vpop.f32.mrb[0].mxu0
        %4496 = vmatprep.mubr.f32.mxu0 0.0
        %4497 = vmatmul.mubr.f32.gmra.mrb[0].mxu0 %v4395
        %v4498 = vpop.f32.mrb[0].mxu0
        %v4499 = vadd.f32 0.0, %v4498
        %v4500 = vpop.f32.mrb[0].mxu0
        %4501 = vdwg.mxu0
        %v4502 = vadd.f32 %v4379, %v4464
        %v4503 = vadd.f32 %v4380, %v4469
        %v4504 = vadd.f32 %v4381, %v4474
        %v4505 = vadd.f32 %v4382, %v4479
        %v4506 = vadd.f32 %v4383, %v4484
        %v4507 = vadd.f32 %v4384, %v4489
        %v4508 = vadd.f32 %v4385, %v4494
        %v4509 = vadd.f32 %v4386, %v4499
        %v4510 = vld [vmem:[%s5] sm:$0x1]
        %v4512 = vlaneseq
        %v4513 = vshrl.u32 %v4512, 7
        %v4514 = vsub.s32 0, %v4513
        %v4515 = vrot.slane %v4510, %v4514
        %v4517 = vadd.f32 %v4502, %v4515
        %v4518 = vadd.f32 %v4503, %v4515
        %v4519 = vadd.f32 %v4504, %v4515
        %v4520 = vadd.f32 %v4505, %v4515
        %v4521 = vadd.f32 %v4506, %v4515
        %v4522 = vadd.f32 %v4507, %v4515
        %v4523 = vadd.f32 %v4508, %v4515
        %v4524 = vadd.f32 %v4509, %v4515
        %v4525 = vmax.f32 %v4517, 0.0
        %v4526 = vmax.f32 %v4518, 0.0
        %v4527 = vmax.f32 %v4519, 0.0
        %v4528 = vmax.f32 %v4520, 0.0
        %v4529 = vmax.f32 %v4521, 0.0
        %v4530 = vmax.f32 %v4522, 0.0
        %v4531 = vmax.f32 %v4523, 0.0
        %v4532 = vmax.f32 %v4524, 0.0
        %v4533 = vld [vmem:[%s6] sm:$0xff]
        %v4534 = vld [vmem:[%s6 + $0x8] sm:$0xff]
        %v4535 = vld [vmem:[%s6 + $0x10] sm:$0xff]
        %v4536 = vld [vmem:[%s6 + $0x18] sm:$0xff]
        %v4537 = vld [vmem:[%s6 + $0x20] sm:$0xff]
        %v4538 = vld [vmem:[%s6 + $0x28] sm:$0xff]
        %s4539 = scalar_lea.vmem %s6, 48
        %v4540 = vld [vmem:[%s4539] sm:$0xff]
        %v4541 = vld [vmem:[%s4539 + $0x8] sm:$0xff]
        %v4542 = vld [vmem:[%s4539 + $0x10] sm:$0xff]
        %v4543 = vld [vmem:[%s4539 + $0x18] sm:$0xff]
        %v4544 = vld [vmem:[%s4539 + $0x20] sm:$0xff]
        %v4545 = vld [vmem:[%s4539 + $0x28] sm:$0xff]
        %vm4546 = vcmask 392192
        %v4548 = vsel %vm4546, %v4527, 0
        %v4551 = vsel %vm4546, %v4528, 0
        %4553 = vmatprep.subr.mxu0 0.0
        %4554 = vmatpush1.msra.mxu0 %v4540
        %4555 = vmatprep.subr.mxu0 0.0
        %4556 = vmatpush1.msra.mxu0 %v4541
        %4557 = vmatprep.subr.mxu0 0.0
        %4558 = vmatpush1.msra.mxu0 %v4542
        %4559 = vmatprep.subr.mxu0 0.0
        %4560 = vmatpush1.msra.mxu0 %v4543
        %4561 = vmatprep.subr.mxu0 0.0
        %4562 = vmatpush1.msra.mxu0 %v4544
        %4563 = vmatprep.subr.mxu0 0.0
        %4564 = vmatpush1.msra.mxu0 %v4545
        %4565 = vmatprep.subr.mxu0 0.0
        %4566 = vmatpush1.msra.mxu0 0.0
        %4567 = vmatprep.subr.mxu0 0.0
        %4568 = vmatpush1.msra.mxu0 0.0
        %4569 = vmatprep.subr.mxu0 0.0
        %4570 = vmatpush1.msra.mxu0 0.0
        %4571 = vmatprep.subr.mxu0 0.0
        %4572 = vmatpush1.msra.mxu0 0.0
        %4573 = vmatprep.subr.mxu0 0.0
        %4574 = vmatpush1.msra.mxu0 0.0
        %4575 = vmatprep.subr.mxu0 0.0
        %4576 = vmatpush1.msra.mxu0 0.0
        %4577 = vmatprep.subr.mxu0 0.0
        %4578 = vmatpush1.msra.mxu0 0.0
        %4579 = vmatprep.subr.mxu0 0.0
        %4580 = vmatpush1.msra.mxu0 0.0
        %4581 = vmatprep.subr.mxu0 0.0
        %4582 = vmatpush1.msra.mxu0 0.0
        %4583 = vmatprep.subr.mxu0 0.0
        %4584 = vmatpush1.msra.mxu0 0.0
        %4585 = vmatprep.subr.mxu0 0.0
        %4586 = vmatpush1.msra.mxu0 0.0
        %4587 = vmatprep.subr.mxu0 0.0
        %4588 = vmatpush1.msra.mxu0 0.0
        %4589 = vmatprep.subr.mxu0 0.0
        %4590 = vmatpush1.msra.mxu0 0.0
        %4591 = vmatprep.subr.mxu0 0.0
        %4592 = vmatpush1.msra.mxu0 0.0
        %4593 = vmatprep.subr.mxu0 0.0
        %4594 = vmatpush1.msra.mxu0 0.0
        %4595 = vmatprep.subr.mxu0 0.0
        %4596 = vmatpush1.msra.mxu0 0.0
        %4597 = vmatprep.subr.mxu0 0.0
        %4598 = vmatpush1.msra.mxu0 0.0
        %4599 = vmatprep.subr.mxu0 0.0
        %4600 = vmatpush1.msra.mxu0 0.0
        %4601 = vmatprep.subr.mxu0 0.0
        %4602 = vmatpush1.msra.mxu0 0.0
        %4603 = vmatprep.subr.mxu0 0.0
        %4604 = vmatpush1.msra.mxu0 0.0
        %4605 = vmatprep.subr.mxu0 0.0
        %4606 = vmatpush1.msra.mxu0 0.0
        %4607 = vmatprep.subr.mxu0 0.0
        %4608 = vmatpush1.msra.mxu0 0.0
        %4609 = vmatprep.subr.mxu0 0.0
        %4610 = vmatpush1.msra.mxu0 0.0
        %4611 = vmatprep.subr.mxu0 0.0
        %4612 = vmatpush1.msra.mxu0 0.0
        %4613 = vmatprep.subr.mxu0 0.0
        %4614 = vmatpush1.msra.mxu0 0.0
        %4615 = vmatprep.subr.mxu0 0.0
        %4616 = vmatpush1.msra.mxu0 0.0
        %4617 = vmatprep.mubr.f32.mxu0 0.0
        %4618 = vmatmul.mubr.f32.gmra.mrb[0].mxu0 %v4548
        %v4619 = vpop.f32.mrb[0].mxu0
        %v4620 = vadd.f32 0.0, %v4619
        %v4621 = vpop.f32.mrb[0].mxu0
        %4622 = vmatprep.mubr.f32.mxu0 0.0
        %4623 = vmatmul.mubr.f32.gmra.mrb[0].mxu0 %v4551
        %v4624 = vpop.f32.mrb[0].mxu0
        %v4625 = vadd.f32 0.0, %v4624
        %v4626 = vpop.f32.mrb[0].mxu0
        %4627 = vdwg.mxu0
        %v4629 = vsel %vm4546, %v4525, 0
        %v4632 = vsel %vm4546, %v4526, 0
        %4634 = vmatprep.subr.mxu0 0.0
        %4635 = vmatpush1.msra.mxu0 %v4533
        %4636 = vmatprep.subr.mxu0 0.0
        %4637 = vmatpush1.msra.mxu0 %v4534
        %4638 = vmatprep.subr.mxu0 0.0
        %4639 = vmatpush1.msra.mxu0 %v4535
        %4640 = vmatprep.subr.mxu0 0.0
        %4641 = vmatpush1.msra.mxu0 %v4536
        %4642 = vmatprep.subr.mxu0 0.0
        %4643 = vmatpush1.msra.mxu0 %v4537
        %4644 = vmatprep.subr.mxu0 0.0
        %4645 = vmatpush1.msra.mxu0 %v4538
        %4646 = vmatprep.subr.mxu0 0.0
        %4647 = vmatpush1.msra.mxu0 0.0
        %4648 = vmatprep.subr.mxu0 0.0
        %4649 = vmatpush1.msra.mxu0 0.0
        %4650 = vmatprep.subr.mxu0 0.0
        %4651 = vmatpush1.msra.mxu0 0.0
        %4652 = vmatprep.subr.mxu0 0.0
        %4653 = vmatpush1.msra.mxu0 0.0
        %4654 = vmatprep.subr.mxu0 0.0
        %4655 = vmatpush1.msra.mxu0 0.0
        %4656 = vmatprep.subr.mxu0 0.0
        %4657 = vmatpush1.msra.mxu0 0.0
        %4658 = vmatprep.subr.mxu0 0.0
        %4659 = vmatpush1.msra.mxu0 0.0
        %4660 = vmatprep.subr.mxu0 0.0
        %4661 = vmatpush1.msra.mxu0 0.0
        %4662 = vmatprep.subr.mxu0 0.0
        %4663 = vmatpush1.msra.mxu0 0.0
        %4664 = vmatprep.subr.mxu0 0.0
        %4665 = vmatpush1.msra.mxu0 0.0
        %4666 = vmatprep.subr.mxu0 0.0
        %4667 = vmatpush1.msra.mxu0 0.0
        %4668 = vmatprep.subr.mxu0 0.0
        %4669 = vmatpush1.msra.mxu0 0.0
        %4670 = vmatprep.subr.mxu0 0.0
        %4671 = vmatpush1.msra.mxu0 0.0
        %4672 = vmatprep.subr.mxu0 0.0
        %4673 = vmatpush1.msra.mxu0 0.0
        %4674 = vmatprep.subr.mxu0 0.0
        %4675 = vmatpush1.msra.mxu0 0.0
        %4676 = vmatprep.subr.mxu0 0.0
        %4677 = vmatpush1.msra.mxu0 0.0
        %4678 = vmatprep.subr.mxu0 0.0
        %4679 = vmatpush1.msra.mxu0 0.0
        %4680 = vmatprep.subr.mxu0 0.0
        %4681 = vmatpush1.msra.mxu0 0.0
        %4682 = vmatprep.subr.mxu0 0.0
        %4683 = vmatpush1.msra.mxu0 0.0
        %4684 = vmatprep.subr.mxu0 0.0
        %4685 = vmatpush1.msra.mxu0 0.0
        %4686 = vmatprep.subr.mxu0 0.0
        %4687 = vmatpush1.msra.mxu0 0.0
        %4688 = vmatprep.subr.mxu0 0.0
        %4689 = vmatpush1.msra.mxu0 0.0
        %4690 = vmatprep.subr.mxu0 0.0
        %4691 = vmatpush1.msra.mxu0 0.0
        %4692 = vmatprep.subr.mxu0 0.0
        %4693 = vmatpush1.msra.mxu0 0.0
        %4694 = vmatprep.subr.mxu0 0.0
        %4695 = vmatpush1.msra.mxu0 0.0
        %4696 = vmatprep.subr.mxu0 0.0
        %4697 = vmatpush1.msra.mxu0 0.0
        %4698 = vmatprep.mubr.f32.mxu0 0.0
        %4699 = vmatmul.mubr.f32.gmra.mrb[0].mxu0 %v4629
        %v4700 = vpop.f32.mrb[0].mxu0
        %v4701 = vadd.f32 %v4620, %v4700
        %v4702 = vpop.f32.mrb[0].mxu0
        %4703 = vmatprep.mubr.f32.mxu0 0.0
        %4704 = vmatmul.mubr.f32.gmra.mrb[0].mxu0 %v4632
        %v4705 = vpop.f32.mrb[0].mxu0
        %v4706 = vadd.f32 %v4625, %v4705
        %v4707 = vpop.f32.mrb[0].mxu0
        %4708 = vdwg.mxu0
        %s4709 = scalar_lea.vmem %s6, 96
        %v4710 = vld [vmem:[%s4709] sm:$0xff]
        %v4711 = vld [vmem:[%s4709 + $0x8] sm:$0xff]
        %v4712 = vld [vmem:[%s4709 + $0x10] sm:$0xff]
        %v4713 = vld [vmem:[%s4709 + $0x18] sm:$0xff]
        %v4714 = vld [vmem:[%s4709 + $0x20] sm:$0xff]
        %v4715 = vld [vmem:[%s4709 + $0x28] sm:$0xff]
        %v4717 = vsel %vm4546, %v4529, 0
        %v4720 = vsel %vm4546, %v4530, 0
        %4722 = vmatprep.subr.mxu0 0.0
        %4723 = vmatpush1.msra.mxu0 %v4710
        %4724 = vmatprep.subr.mxu0 0.0
        %4725 = vmatpush1.msra.mxu0 %v4711
        %4726 = vmatprep.subr.mxu0 0.0
        %4727 = vmatpush1.msra.mxu0 %v4712
        %4728 = vmatprep.subr.mxu0 0.0
        %4729 = vmatpush1.msra.mxu0 %v4713
        %4730 = vmatprep.subr.mxu0 0.0
        %4731 = vmatpush1.msra.mxu0 %v4714
        %4732 = vmatprep.subr.mxu0 0.0
        %4733 = vmatpush1.msra.mxu0 %v4715
        %4734 = vmatprep.subr.mxu0 0.0
        %4735 = vmatpush1.msra.mxu0 0.0
        %4736 = vmatprep.subr.mxu0 0.0
        %4737 = vmatpush1.msra.mxu0 0.0
        %4738 = vmatprep.subr.mxu0 0.0
        %4739 = vmatpush1.msra.mxu0 0.0
        %4740 = vmatprep.subr.mxu0 0.0
        %4741 = vmatpush1.msra.mxu0 0.0
        %4742 = vmatprep.subr.mxu0 0.0
        %4743 = vmatpush1.msra.mxu0 0.0
        %4744 = vmatprep.subr.mxu0 0.0
        %4745 = vmatpush1.msra.mxu0 0.0
        %4746 = vmatprep.subr.mxu0 0.0
        %4747 = vmatpush1.msra.mxu0 0.0
        %4748 = vmatprep.subr.mxu0 0.0
        %4749 = vmatpush1.msra.mxu0 0.0
        %4750 = vmatprep.subr.mxu0 0.0
        %4751 = vmatpush1.msra.mxu0 0.0
        %4752 = vmatprep.subr.mxu0 0.0
        %4753 = vmatpush1.msra.mxu0 0.0
        %4754 = vmatprep.subr.mxu0 0.0
        %4755 = vmatpush1.msra.mxu0 0.0
        %4756 = vmatprep.subr.mxu0 0.0
        %4757 = vmatpush1.msra.mxu0 0.0
        %4758 = vmatprep.subr.mxu0 0.0
        %4759 = vmatpush1.msra.mxu0 0.0
        %4760 = vmatprep.subr.mxu0 0.0
        %4761 = vmatpush1.msra.mxu0 0.0
        %4762 = vmatprep.subr.mxu0 0.0
        %4763 = vmatpush1.msra.mxu0 0.0
        %4764 = vmatprep.subr.mxu0 0.0
        %4765 = vmatpush1.msra.mxu0 0.0
        %4766 = vmatprep.subr.mxu0 0.0
        %4767 = vmatpush1.msra.mxu0 0.0
        %4768 = vmatprep.subr.mxu0 0.0
        %4769 = vmatpush1.msra.mxu0 0.0
        %4770 = vmatprep.subr.mxu0 0.0
        %4771 = vmatpush1.msra.mxu0 0.0
        %4772 = vmatprep.subr.mxu0 0.0
        %4773 = vmatpush1.msra.mxu0 0.0
        %4774 = vmatprep.subr.mxu0 0.0
        %4775 = vmatpush1.msra.mxu0 0.0
        %4776 = vmatprep.subr.mxu0 0.0
        %4777 = vmatpush1.msra.mxu0 0.0
        %4778 = vmatprep.subr.mxu0 0.0
        %4779 = vmatpush1.msra.mxu0 0.0
        %4780 = vmatprep.subr.mxu0 0.0
        %4781 = vmatpush1.msra.mxu0 0.0
        %4782 = vmatprep.subr.mxu0 0.0
        %4783 = vmatpush1.msra.mxu0 0.0
        %4784 = vmatprep.subr.mxu0 0.0
        %4785 = vmatpush1.msra.mxu0 0.0
        %4786 = vmatprep.mubr.f32.mxu0 0.0
        %4787 = vmatmul.mubr.f32.gmra.mrb[0].mxu0 %v4717
        %v4788 = vpop.f32.mrb[0].mxu0
        %v4789 = vadd.f32 0.0, %v4788
        %v4790 = vpop.f32.mrb[0].mxu0
        %4791 = vmatprep.mubr.f32.mxu0 0.0
        %4792 = vmatmul.mubr.f32.gmra.mrb[0].mxu0 %v4720
        %v4793 = vpop.f32.mrb[0].mxu0
        %v4794 = vadd.f32 0.0, %v4793
        %v4795 = vpop.f32.mrb[0].mxu0
        %4796 = vdwg.mxu0
        %v4797 = vadd.f32 %v4701, %v4789
        %v4798 = vadd.f32 %v4706, %v4794
        %s4799 = scalar_lea.vmem %s6, 144
        %v4800 = vld [vmem:[%s4799] sm:$0xff]
        %v4801 = vld [vmem:[%s4799 + $0x8] sm:$0xff]
        %v4802 = vld [vmem:[%s4799 + $0x10] sm:$0xff]
        %v4803 = vld [vmem:[%s4799 + $0x18] sm:$0xff]
        %v4804 = vld [vmem:[%s4799 + $0x20] sm:$0xff]
        %v4805 = vld [vmem:[%s4799 + $0x28] sm:$0xff]
        %v4807 = vsel %vm4546, %v4531, 0
        %v4810 = vsel %vm4546, %v4532, 0
        %4812 = vmatprep.subr.mxu0 0.0
        %4813 = vmatpush1.msra.mxu0 %v4800
        %4814 = vmatprep.subr.mxu0 0.0
        %4815 = vmatpush1.msra.mxu0 %v4801
        %4816 = vmatprep.subr.mxu0 0.0
        %4817 = vmatpush1.msra.mxu0 %v4802
        %4818 = vmatprep.subr.mxu0 0.0
        %4819 = vmatpush1.msra.mxu0 %v4803
        %4820 = vmatprep.subr.mxu0 0.0
        %4821 = vmatpush1.msra.mxu0 %v4804
        %4822 = vmatprep.subr.mxu0 0.0
        %4823 = vmatpush1.msra.mxu0 %v4805
        %4824 = vmatprep.subr.mxu0 0.0
        %4825 = vmatpush1.msra.mxu0 0.0
        %4826 = vmatprep.subr.mxu0 0.0
        %4827 = vmatpush1.msra.mxu0 0.0
        %4828 = vmatprep.subr.mxu0 0.0
        %4829 = vmatpush1.msra.mxu0 0.0
        %4830 = vmatprep.subr.mxu0 0.0
        %4831 = vmatpush1.msra.mxu0 0.0
        %4832 = vmatprep.subr.mxu0 0.0
        %4833 = vmatpush1.msra.mxu0 0.0
        %4834 = vmatprep.subr.mxu0 0.0
        %4835 = vmatpush1.msra.mxu0 0.0
        %4836 = vmatprep.subr.mxu0 0.0
        %4837 = vmatpush1.msra.mxu0 0.0
        %4838 = vmatprep.subr.mxu0 0.0
        %4839 = vmatpush1.msra.mxu0 0.0
        %4840 = vmatprep.subr.mxu0 0.0
        %4841 = vmatpush1.msra.mxu0 0.0
        %4842 = vmatprep.subr.mxu0 0.0
        %4843 = vmatpush1.msra.mxu0 0.0
        %4844 = vmatprep.subr.mxu0 0.0
        %4845 = vmatpush1.msra.mxu0 0.0
        %4846 = vmatprep.subr.mxu0 0.0
        %4847 = vmatpush1.msra.mxu0 0.0
        %4848 = vmatprep.subr.mxu0 0.0
        %4849 = vmatpush1.msra.mxu0 0.0
        %4850 = vmatprep.subr.mxu0 0.0
        %4851 = vmatpush1.msra.mxu0 0.0
        %4852 = vmatprep.subr.mxu0 0.0
        %4853 = vmatpush1.msra.mxu0 0.0
        %4854 = vmatprep.subr.mxu0 0.0
        %4855 = vmatpush1.msra.mxu0 0.0
        %4856 = vmatprep.subr.mxu0 0.0
        %4857 = vmatpush1.msra.mxu0 0.0
        %4858 = vmatprep.subr.mxu0 0.0
        %4859 = vmatpush1.msra.mxu0 0.0
        %4860 = vmatprep.subr.mxu0 0.0
        %4861 = vmatpush1.msra.mxu0 0.0
        %4862 = vmatprep.subr.mxu0 0.0
        %4863 = vmatpush1.msra.mxu0 0.0
        %4864 = vmatprep.subr.mxu0 0.0
        %4865 = vmatpush1.msra.mxu0 0.0
        %4866 = vmatprep.subr.mxu0 0.0
        %4867 = vmatpush1.msra.mxu0 0.0
        %4868 = vmatprep.subr.mxu0 0.0
        %4869 = vmatpush1.msra.mxu0 0.0
        %4870 = vmatprep.subr.mxu0 0.0
        %4871 = vmatpush1.msra.mxu0 0.0
        %4872 = vmatprep.subr.mxu0 0.0
        %4873 = vmatpush1.msra.mxu0 0.0
        %4874 = vmatprep.subr.mxu0 0.0
        %4875 = vmatpush1.msra.mxu0 0.0
        %4876 = vmatprep.mubr.f32.mxu0 0.0
        %4877 = vmatmul.mubr.f32.gmra.mrb[0].mxu0 %v4807
        %v4878 = vpop.f32.mrb[0].mxu0
        %v4879 = vadd.f32 0.0, %v4878
        %v4880 = vpop.f32.mrb[0].mxu0
        %4881 = vmatprep.mubr.f32.mxu0 0.0
        %4882 = vmatmul.mubr.f32.gmra.mrb[0].mxu0 %v4810
        %v4883 = vpop.f32.mrb[0].mxu0
        %v4884 = vadd.f32 0.0, %v4883
        %v4885 = vpop.f32.mrb[0].mxu0
        %4886 = vdwg.mxu0
        %v4887 = vadd.f32 %v4797, %v4879
        %v4888 = vadd.f32 %v4798, %v4884
        %v4889 = vld [vmem:[%s7] sm:$0x1]
        %v4891 = vlaneseq
        %v4892 = vshrl.u32 %v4891, 7
        %v4893 = vsub.s32 0, %v4892
        %v4894 = vrot.slane %v4889, %v4893
        %v4896 = vadd.f32 %v4887, %v4894
        %v4897 = vadd.f32 %v4888, %v4894
        %v4898 = vmax.f32 %v4896, 0.0
        %v4899 = vmax.f32 %v4897, 0.0
        %v4900 = vld [vmem:[%s1003] sm:$0xff]
        %v4901 = vld [vmem:[%s1003 + $0x8] sm:$0xff]
        %v4902 = vld [vmem:[%s8] sm:$0xff]
        %v4903 = vld [vmem:[%s8 + $0x8] sm:$0xff]
        %v4904 = vld [vmem:[%s8 + $0x10] sm:$0xff]
        %v4905 = vld [vmem:[%s8 + $0x18] sm:$0xff]
        %v4906 = vld [vmem:[%s8 + $0x20] sm:$0xff]
        %v4907 = vld [vmem:[%s8 + $0x28] sm:$0xff]
        %v4908 = vld [vmem:[%s8 + $0x30] sm:$0xff]
        %v4909 = vld [vmem:[%s8 + $0x38] sm:$0xff]
        %v4910 = vld [vmem:[%s9] sm:$0xff]
        %v4911 = vld [vmem:[%s9 + $0x8] sm:$0xff]
        %vm4912 = vcmask 130048
        %v4914 = vsel %vm4912, %v4900, 0
        %v4917 = vsel %vm4912, %v4901, 0
        %4919 = vmatprep.subr.mxu0 0.0
        %4920 = vmatpush1.msra.mxu0 %v4910
        %4921 = vmatprep.subr.mxu0 0.0
        %4922 = vmatpush1.msra.mxu0 %v4911
        %4923 = vmatprep.subr.mxu0 0.0
        %4924 = vmatpush1.msra.mxu0 0.0
        %4925 = vmatprep.subr.mxu0 0.0
        %4926 = vmatpush1.msra.mxu0 0.0
        %4927 = vmatprep.subr.mxu0 0.0
        %4928 = vmatpush1.msra.mxu0 0.0
        %4929 = vmatprep.subr.mxu0 0.0
        %4930 = vmatpush1.msra.mxu0 0.0
        %4931 = vmatprep.subr.mxu0 0.0
        %4932 = vmatpush1.msra.mxu0 0.0
        %4933 = vmatprep.subr.mxu0 0.0
        %4934 = vmatpush1.msra.mxu0 0.0
        %4935 = vmatprep.subr.mxu0 0.0
        %4936 = vmatpush1.msra.mxu0 0.0
        %4937 = vmatprep.subr.mxu0 0.0
        %4938 = vmatpush1.msra.mxu0 0.0
        %4939 = vmatprep.subr.mxu0 0.0
        %4940 = vmatpush1.msra.mxu0 0.0
        %4941 = vmatprep.subr.mxu0 0.0
        %4942 = vmatpush1.msra.mxu0 0.0
        %4943 = vmatprep.subr.mxu0 0.0
        %4944 = vmatpush1.msra.mxu0 0.0
        %4945 = vmatprep.subr.mxu0 0.0
        %4946 = vmatpush1.msra.mxu0 0.0
        %4947 = vmatprep.subr.mxu0 0.0
        %4948 = vmatpush1.msra.mxu0 0.0
        %4949 = vmatprep.subr.mxu0 0.0
        %4950 = vmatpush1.msra.mxu0 0.0
        %4951 = vmatprep.subr.mxu0 0.0
        %4952 = vmatpush1.msra.mxu0 0.0
        %4953 = vmatprep.subr.mxu0 0.0
        %4954 = vmatpush1.msra.mxu0 0.0
        %4955 = vmatprep.subr.mxu0 0.0
        %4956 = vmatpush1.msra.mxu0 0.0
        %4957 = vmatprep.subr.mxu0 0.0
        %4958 = vmatpush1.msra.mxu0 0.0
        %4959 = vmatprep.subr.mxu0 0.0
        %4960 = vmatpush1.msra.mxu0 0.0
        %4961 = vmatprep.subr.mxu0 0.0
        %4962 = vmatpush1.msra.mxu0 0.0
        %4963 = vmatprep.subr.mxu0 0.0
        %4964 = vmatpush1.msra.mxu0 0.0
        %4965 = vmatprep.subr.mxu0 0.0
        %4966 = vmatpush1.msra.mxu0 0.0
        %4967 = vmatprep.subr.mxu0 0.0
        %4968 = vmatpush1.msra.mxu0 0.0
        %4969 = vmatprep.subr.mxu0 0.0
        %4970 = vmatpush1.msra.mxu0 0.0
        %4971 = vmatprep.subr.mxu0 0.0
        %4972 = vmatpush1.msra.mxu0 0.0
        %4973 = vmatprep.subr.mxu0 0.0
        %4974 = vmatpush1.msra.mxu0 0.0
        %4975 = vmatprep.subr.mxu0 0.0
        %4976 = vmatpush1.msra.mxu0 0.0
        %4977 = vmatprep.subr.mxu0 0.0
        %4978 = vmatpush1.msra.mxu0 0.0
        %4979 = vmatprep.subr.mxu0 0.0
        %4980 = vmatpush1.msra.mxu0 0.0
        %4981 = vmatprep.subr.mxu0 0.0
        %4982 = vmatpush1.msra.mxu0 0.0
        %4983 = vmatprep.mubr.f32.mxu0 0.0
        %4984 = vmatmul.mubr.f32.gmra.mrb[0].mxu0 %v4914
        %v4985 = vpop.f32.mrb[0].mxu0
        %v4986 = vadd.f32 0.0, %v4985
        %v4987 = vpop.f32.mrb[0].mxu0
        %4988 = vmatprep.mubr.f32.mxu0 0.0
        %4989 = vmatmul.mubr.f32.gmra.mrb[0].mxu0 %v4917
        %v4990 = vpop.f32.mrb[0].mxu0
        %v4991 = vadd.f32 0.0, %v4990
        %v4992 = vpop.f32.mrb[0].mxu0
        %4993 = vdwg.mxu0
        %vm4994 = vcmask 523264
        %v4996 = vsel %vm4994, %v4898, 0
        %v4999 = vsel %vm4994, %v4899, 0
        %5001 = vmatprep.subr.mxu0 0.0
        %5002 = vmatpush1.msra.mxu0 %v4902
        %5003 = vmatprep.subr.mxu0 0.0
        %5004 = vmatpush1.msra.mxu0 %v4903
        %5005 = vmatprep.subr.mxu0 0.0
        %5006 = vmatpush1.msra.mxu0 %v4904
        %5007 = vmatprep.subr.mxu0 0.0
        %5008 = vmatpush1.msra.mxu0 %v4905
        %5009 = vmatprep.subr.mxu0 0.0
        %5010 = vmatpush1.msra.mxu0 %v4906
        %5011 = vmatprep.subr.mxu0 0.0
        %5012 = vmatpush1.msra.mxu0 %v4907
        %5013 = vmatprep.subr.mxu0 0.0
        %5014 = vmatpush1.msra.mxu0 %v4908
        %5015 = vmatprep.subr.mxu0 0.0
        %5016 = vmatpush1.msra.mxu0 %v4909
        %5017 = vmatprep.subr.mxu0 0.0
        %5018 = vmatpush1.msra.mxu0 0.0
        %5019 = vmatprep.subr.mxu0 0.0
        %5020 = vmatpush1.msra.mxu0 0.0
        %5021 = vmatprep.subr.mxu0 0.0
        %5022 = vmatpush1.msra.mxu0 0.0
        %5023 = vmatprep.subr.mxu0 0.0
        %5024 = vmatpush1.msra.mxu0 0.0
        %5025 = vmatprep.subr.mxu0 0.0
        %5026 = vmatpush1.msra.mxu0 0.0
        %5027 = vmatprep.subr.mxu0 0.0
        %5028 = vmatpush1.msra.mxu0 0.0
        %5029 = vmatprep.subr.mxu0 0.0
        %5030 = vmatpush1.msra.mxu0 0.0
        %5031 = vmatprep.subr.mxu0 0.0
        %5032 = vmatpush1.msra.mxu0 0.0
        %5033 = vmatprep.subr.mxu0 0.0
        %5034 = vmatpush1.msra.mxu0 0.0
        %5035 = vmatprep.subr.mxu0 0.0
        %5036 = vmatpush1.msra.mxu0 0.0
        %5037 = vmatprep.subr.mxu0 0.0
        %5038 = vmatpush1.msra.mxu0 0.0
        %5039 = vmatprep.subr.mxu0 0.0
        %5040 = vmatpush1.msra.mxu0 0.0
        %5041 = vmatprep.subr.mxu0 0.0
        %5042 = vmatpush1.msra.mxu0 0.0
        %5043 = vmatprep.subr.mxu0 0.0
        %5044 = vmatpush1.msra.mxu0 0.0
        %5045 = vmatprep.subr.mxu0 0.0
        %5046 = vmatpush1.msra.mxu0 0.0
        %5047 = vmatprep.subr.mxu0 0.0
        %5048 = vmatpush1.msra.mxu0 0.0
        %5049 = vmatprep.subr.mxu0 0.0
        %5050 = vmatpush1.msra.mxu0 0.0
        %5051 = vmatprep.subr.mxu0 0.0
        %5052 = vmatpush1.msra.mxu0 0.0
        %5053 = vmatprep.subr.mxu0 0.0
        %5054 = vmatpush1.msra.mxu0 0.0
        %5055 = vmatprep.subr.mxu0 0.0
        %5056 = vmatpush1.msra.mxu0 0.0
        %5057 = vmatprep.subr.mxu0 0.0
        %5058 = vmatpush1.msra.mxu0 0.0
        %5059 = vmatprep.subr.mxu0 0.0
        %5060 = vmatpush1.msra.mxu0 0.0
        %5061 = vmatprep.subr.mxu0 0.0
        %5062 = vmatpush1.msra.mxu0 0.0
        %5063 = vmatprep.subr.mxu0 0.0
        %5064 = vmatpush1.msra.mxu0 0.0
        %5065 = vmatprep.mubr.f32.mxu0 0.0
        %5066 = vmatmul.mubr.f32.gmra.mrb[0].mxu0 %v4996
        %v5067 = vpop.f32.mrb[0].mxu0
        %v5068 = vadd.f32 %v4986, %v5067
        %v5069 = vpop.f32.mrb[0].mxu0
        %5070 = vmatprep.mubr.f32.mxu0 0.0
        %5071 = vmatmul.mubr.f32.gmra.mrb[0].mxu0 %v4999
        %v5072 = vpop.f32.mrb[0].mxu0
        %v5073 = vadd.f32 %v4991, %v5072
        %v5074 = vpop.f32.mrb[0].mxu0
        %5075 = vdwg.mxu0
        %v5076 = vld [vmem:[%s10] sm:$0x1]
        %v5078 = vlaneseq
        %v5079 = vshrl.u32 %v5078, 7
        %v5080 = vsub.s32 0, %v5079
        %v5081 = vrot.slane %v5076, %v5080
        %v5083 = vadd.f32 %v5068, %v5081
        %v5084 = vadd.f32 %v5073, %v5081
        %v5085 = vtanh.pop %v5083
        %v5086 = vtanh.pop %v5084
        %v5087 = vld [vmem:[%s11] sm:$0xff]
        %v5088 = vld [vmem:[%s11 + $0x8] sm:$0xff]
        %v5089 = vld [vmem:[%s11 + $0x10] sm:$0xff]
        %v5090 = vld [vmem:[%s11 + $0x18] sm:$0xff]
        %v5091 = vld [vmem:[%s11 + $0x20] sm:$0xff]
        %v5092 = vld [vmem:[%s11 + $0x28] sm:$0xff]
        %v5093 = vld [vmem:[%s11 + $0x30] sm:$0xff]
        %v5094 = vld [vmem:[%s11 + $0x38] sm:$0xff]
        %v5095 = vld [vmem:[%s11 + $0x40] sm:$0xff]
        %v5096 = vld [vmem:[%s11 + $0x48] sm:$0xff]
        %v5097 = vld [vmem:[%s11 + $0x50] sm:$0xff]
        %v5098 = vld [vmem:[%s11 + $0x58] sm:$0xff]
        %v5099 = vld [vmem:[%s11 + $0x60] sm:$0xff]
        %v5100 = vld [vmem:[%s11 + $0x68] sm:$0xff]
        %v5101 = vld [vmem:[%s11 + $0x70] sm:$0xff]
        %v5102 = vld [vmem:[%s11 + $0x78] sm:$0xff]
        %v5103 = vld [vmem:[%s12] sm:$0x1]
        %v5105 = vlaneseq
        %v5106 = vshrl.u32 %v5105, 7
        %v5107 = vsub.s32 0, %v5106
        %v5108 = vrot.slane %v5103, %v5107
        %5110 = vmatprep.subr.mxu0 0.0
        %5111 = vmatpush1.msra.mxu0 %v5087
        %5112 = vmatprep.subr.mxu0 0.0
        %5113 = vmatpush1.msra.mxu0 %v5088
        %5114 = vmatprep.subr.mxu0 0.0
        %5115 = vmatpush1.msra.mxu0 %v5089
        %5116 = vmatprep.subr.mxu0 0.0
        %5117 = vmatpush1.msra.mxu0 %v5090
        %5118 = vmatprep.subr.mxu0 0.0
        %5119 = vmatpush1.msra.mxu0 %v5091
        %5120 = vmatprep.subr.mxu0 0.0
        %5121 = vmatpush1.msra.mxu0 %v5092
        %5122 = vmatprep.subr.mxu0 0.0
        %5123 = vmatpush1.msra.mxu0 %v5093
        %5124 = vmatprep.subr.mxu0 0.0
        %5125 = vmatpush1.msra.mxu0 %v5094
        %5126 = vmatprep.subr.mxu0 0.0
        %5127 = vmatpush1.msra.mxu0 %v5095
        %5128 = vmatprep.subr.mxu0 0.0
        %5129 = vmatpush1.msra.mxu0 %v5096
        %5130 = vmatprep.subr.mxu0 0.0
        %5131 = vmatpush1.msra.mxu0 %v5097
        %5132 = vmatprep.subr.mxu0 0.0
        %5133 = vmatpush1.msra.mxu0 %v5098
        %5134 = vmatprep.subr.mxu0 0.0
        %5135 = vmatpush1.msra.mxu0 %v5099
        %5136 = vmatprep.subr.mxu0 0.0
        %5137 = vmatpush1.msra.mxu0 %v5100
        %5138 = vmatprep.subr.mxu0 0.0
        %5139 = vmatpush1.msra.mxu0 %v5101
        %5140 = vmatprep.subr.mxu0 0.0
        %5141 = vmatpush1.msra.mxu0 %v5102
        %5142 = vmatprep.subr.mxu0 0.0
        %5143 = vmatpush1.msra.mxu0 0.0
        %5144 = vmatprep.subr.mxu0 0.0
        %5145 = vmatpush1.msra.mxu0 0.0
        %5146 = vmatprep.subr.mxu0 0.0
        %5147 = vmatpush1.msra.mxu0 0.0
        %5148 = vmatprep.subr.mxu0 0.0
        %5149 = vmatpush1.msra.mxu0 0.0
        %5150 = vmatprep.subr.mxu0 0.0
        %5151 = vmatpush1.msra.mxu0 0.0
        %5152 = vmatprep.subr.mxu0 0.0
        %5153 = vmatpush1.msra.mxu0 0.0
        %5154 = vmatprep.subr.mxu0 0.0
        %5155 = vmatpush1.msra.mxu0 0.0
        %5156 = vmatprep.subr.mxu0 0.0
        %5157 = vmatpush1.msra.mxu0 0.0
        %5158 = vmatprep.subr.mxu0 0.0
        %5159 = vmatpush1.msra.mxu0 0.0
        %5160 = vmatprep.subr.mxu0 0.0
        %5161 = vmatpush1.msra.mxu0 0.0
        %5162 = vmatprep.subr.mxu0 0.0
        %5163 = vmatpush1.msra.mxu0 0.0
        %5164 = vmatprep.subr.mxu0 0.0
        %5165 = vmatpush1.msra.mxu0 0.0
        %5166 = vmatprep.subr.mxu0 0.0
        %5167 = vmatpush1.msra.mxu0 0.0
        %5168 = vmatprep.subr.mxu0 0.0
        %5169 = vmatpush1.msra.mxu0 0.0
        %5170 = vmatprep.subr.mxu0 0.0
        %5171 = vmatpush1.msra.mxu0 0.0
        %5172 = vmatprep.subr.mxu0 0.0
        %5173 = vmatpush1.msra.mxu0 0.0
        %5174 = vmatprep.mubr.f32.mxu0 0.0
        %5175 = vmatmul.mubr.f32.gmra.mrb[0].mxu0 %v5085
        %v5176 = vpop.f32.mrb[0].mxu0
        %v5177 = vadd.f32 %v5108, %v5176
        %v5178 = vpop.f32.mrb[0].mxu0
        %5179 = vmatprep.mubr.f32.mxu0 0.0
        %5180 = vmatmul.mubr.f32.gmra.mrb[0].mxu0 %v5086
        %v5181 = vpop.f32.mrb[0].mxu0
        %v5182 = vadd.f32 %v5108, %v5181
        %v5183 = vpop.f32.mrb[0].mxu0
        %5184 = vdwg.mxu0
        %v5185 = vlaneseq
        %v5186 = vand.u32 %v5185, 127
        %vm5187 = vcmp.lt.s32.totalorder %v5186, 6
        %v5188 = vsel %vm5187, %v5177, -inf
        %v5189 = vsel %vm5187, %v5182, -inf
        %5190 = vmax.xlane.f32.xlu0 %v5188
        %v5191 = vpop.xlane.xlu0 %5190
        %5192 = vmax.xlane.f32.xlu0 %v5189
        %v5193 = vpop.xlane.xlu0 %5192
        %v5194 = vsub.f32 %v5188, %v5191
        %v5195 = vsub.f32 %v5189, %v5193
        %v5196 = vmul.f32 %v5194, 1.442695
        %v5197 = vpow.pop %v5196
        %v5198 = vmul.f32 %v5195, 1.442695
        %v5199 = vpow.pop %v5198
        %5200 = vadd.xlane.f32.xlu0 %v5197
        %v5201 = vpop.xlane.xlu0 %5200
        %5202 = vadd.xlane.f32.xlu0 %v5199
        %v5203 = vpop.xlane.xlu0 %5202
        %v5204 = vlog2.pop %v5201
        %v5205 = vmul.f32 %v5204, 0.6931472
        %v5206 = vlog2.pop %v5203
        %v5207 = vmul.f32 %v5206, 0.6931472
        %v5208 = vadd.f32 %v5205, %v5191
        %v5209 = vadd.f32 %v5207, %v5193
        %v5210 = vsub.f32 %v5177, %v5208
        %v5211 = vsub.f32 %v5182, %v5209
        %v5212 = vsel %vm5187, %v5210, %v5177
        %v5213 = vsel %vm5187, %v5211, %v5182
        %5214 = vst [vmem:[%s997] sm:$0xff] %v5212
        %5215 = vst [vmem:[%s997 + $0x8] sm:$0xff] %v5213
        %s5216 = sand.u32 %s318, 1
        %s5217 = scalar_lea.sflag [#allocation4], %s5216
        %s5218 = sand.u32 %s318, 1
        %s5219 = smul.addr %s5218, 16
        %s5220 = scalar_lea.vmem [#allocation3], %s5219
        // Predicated region
        $region111: #{tpu_custom_call.1} parent=105 // pred_check
          %p5221 = pneg %p328
        $region112: #{tpu_custom_call.1} parent=105 // pred_check_branch
          %5223 = sbr.rel (%p5221) target = $region114
        $region113: #{tpu_custom_call.1} parent=105 // pred_region
          %s5224 = smul.u32 2, %s27
          %s5226 = ssub.s32 256, 256
          %5227 = vsyncadd %s5217, %s5226
          %s5228 = smul.addr %s5224, 128
          %s5229 = scalar_lea.hbm %s13, %s5228
          %s5230 = sshll.u32 %s5220, 4
          %s5231 = int_to_ptr.vmem [resolvable:$true] %s5230
          %5236 = dma.vmem_to_hbm [thread:$0]  %s5231, 256, %s5229, %s5217, 128, 128, 8
        $region114: #{tpu_custom_call.1} parent=105 // pred_fallthru
          _
      $region106: #{tpu_custom_call.1} parent=5 // pred_fallthru
        _
      %p5237 = scmp.le.s32.totalorder 2, %s22
      // Predicated region
      $region115: #{tpu_custom_call.1} parent=5 // pred_check
        %p5238 = pneg %p5237
      $region116: #{tpu_custom_call.1} parent=5 // pred_check_branch
        %5240 = sbr.rel (%p5238) target = $region118
      $region117: #{tpu_custom_call.1} parent=5 // pred_region
        %s5241 = ssub.s32 %s22, 2
        // Predicated region
        $region119: #{tpu_custom_call.1} parent=117 // pred_check
          %p5242 = pneg %p334
        $region120: #{tpu_custom_call.1} parent=117 // pred_check_branch
          %5244 = sbr.rel (%p5242) target = $region122
        $region121: #{tpu_custom_call.1} parent=117 // pred_region
          %s5245 = sand.u32 %s319, 1
          %s5246 = scalar_lea.sflag [#allocation4], %s5245
          %s5247 = sand.u32 %s319, 1
          %s5248 = smul.addr %s5247, 16
          %s5249 = scalar_lea.vmem [#allocation3], %s5248
          %5250 = dma.done %s5246, 256
        $region122: #{tpu_custom_call.1} parent=117 // pred_fallthru
          _
      $region118: #{tpu_custom_call.1} parent=5 // pred_fallthru
        _
    $region6: #{tpu_custom_call.1} parent=1 // loop_footer
      %s26 = sadd.s32 1, %s22
    $region7: #{tpu_custom_call.1} parent=1 // loop_footer_branch
      %21 = sbr.rel target = $region3
    $region8: #{tpu_custom_call.1} parent=1 // loop_exit
      _
    %5251 = vsyncpa [#allocation4], 1
    %s5252 = scalar_lea.sflag [#allocation4], 1
    %5253 = vsyncpa %s5252, 1

</llo_original>
